<compile_context>
chip_gen: v7x
topology: tpu7x:2x2x1
jax: 0.10.0
libtpu: 0.0.40
codegen_flags: <defaults>
</compile_context>

<pallas_src>
import functools

import jax
import jax.numpy as jnp
from jax.experimental import pallas as pl
from jax.experimental.pallas import tpu as pltpu


# -----------------------------------------------------------------------------
# Pallas kernel: whole forward (all agents) in one step on packed weights.
# -----------------------------------------------------------------------------
def _gppo_kernel(
    obs_ref,    # (B, NA*F)          f32
    w1_ref,     # (NA*F, NA*256)     bf16   per-agent mlp L1 weights, concat on N
    b1_ref,     # (1, NA*256)        f32
    w2_ref,     # (NA*256, NA*H)     bf16   block-diag (agent i keeps its H cols)
    b2_ref,     # (1, NA*H)          f32
    dw1o_ref,   # (NA*F, NA*H)       bf16   decoder L1 obs part, block-diag
    dw1e_ref,   # (NA*H, NA*H)       bf16   decoder L1 emb part, block-diag
    db1_ref,    # (1, NA*H)          f32
    dw2_ref,    # (NA*H, NA*H)       bf16   decoder L2, block-diag
    db2_ref,    # (1, NA*H)          f32
    hw_ref,     # (NA*H, OPAD)       bf16   fused head+head2, block-diag, lane-padded
    hb_ref,     # (1, OPAD)          f32
    out_ref,    # (B, OPAD)          f32
):
    f32 = jnp.float32
    wd = w1_ref.dtype

    x = obs_ref[...]                         # (B, NA*F) f32
    xw = x.astype(wd)                        # bf16 for MXU

    # centralised MLPs (all agents at once):  h = tanh(obs_flat @ W1 + b1)
    h = jnp.tanh(jnp.dot(xw, w1_ref[...], preferred_element_type=f32) + b1_ref[...])
    # emb[:, i*H:(i+1)*H] = h_i @ W2_i[:, i*H:(i+1)*H]   (block-diagonal)
    emb = jnp.dot(h.astype(wd), w2_ref[...], preferred_element_type=f32) + b2_ref[...]

    # decoders: Linear(F+H, H) -> tanh -> Linear(H, H) -> tanh   (block-diag,
    # concat([obs_i, emb_i]) @ W == obs @ W_obs_bd + emb @ W_emb_bd)
    d1 = jnp.tanh(
        jnp.dot(xw, dw1o_ref[...], preferred_element_type=f32)
        + jnp.dot(emb.astype(wd), dw1e_ref[...], preferred_element_type=f32)
        + db1_ref[...]
    )
    d2 = jnp.tanh(
        jnp.dot(d1.astype(wd), dw2_ref[...], preferred_element_type=f32) + db2_ref[...]
    )

    # fused heads (head ++ head2 per agent, block-diag, zero-padded to OPAD lanes)
    out_ref[...] = (
        jnp.dot(d2.astype(wd), hw_ref[...], preferred_element_type=f32) + hb_ref[...]
    )


# -----------------------------------------------------------------------------
# Wrapper
# -----------------------------------------------------------------------------
def gppo_branch_forward(obs, packed, *, n_agents, out_features, out_features2):
    """obs: (B, NA, F) f32 -> (out (B, NA, O1), out2 (B, NA, O2))."""
    B, NA, F = obs.shape
    assert NA == n_agents
    O1, O2 = out_features, out_features2
    OT = NA * (O1 + O2)
    OPAD = packed["head_w"].shape[-1]        # static (lane-padded head width)

    obs_flat = obs.reshape(B, NA * F)

    vmem = pl.BlockSpec(memory_space=pltpu.MemorySpace.VMEM)   # whole array in VMEM

    out_pad = pl.pallas_call(
        _gppo_kernel,
        out_shape=jax.ShapeDtypeStruct((B, OPAD), jnp.float32),
        in_specs=[vmem] * 12,
        out_specs=vmem,
    )(
        obs_flat,
        packed["mlp_w1"], packed["mlp_b1"],
        packed["mlp_w2"], packed["mlp_b2"],
        packed["dec_w1o"], packed["dec_w1e"], packed["dec_b1"],
        packed["dec_w2"], packed["dec_b2"],
        packed["head_w"], packed["head_b"],
    )

    fused = out_pad[:, :OT].reshape(B, NA, O1 + O2)
    return fused[..., :O1], fused[..., O1:]


# -----------------------------------------------------------------------------
# Per-agent parameter construction (nn.Linear shapes).  The PyTorch module's
# share_init_hetero_networks() would make all agents identical; here each agent
# gets distinct weights (the general heterogeneous case) so the packed
# block-diagonal construction is genuinely exercised.
# -----------------------------------------------------------------------------
def make_agent_params(key, *, n_agents, in_features, hidden, out_features, out_features2):
    NA, F, H = n_agents, in_features, hidden

    def linear(key, fan_in, fan_out):
        kw, kb = jax.random.split(key)
        bound = 1.0 / jnp.sqrt(jnp.float32(fan_in))
        w = jax.random.uniform(kw, (fan_in, fan_out), jnp.float32, -bound, bound)
        b = jax.random.uniform(kb, (fan_out,), jnp.float32, -bound, bound)
        return w, b

    agents = []
    agent_keys = jax.random.split(key, NA)
    for i in range(NA):
        ks = jax.random.split(agent_keys[i], 6)
        mlp_w1, mlp_b1 = linear(ks[0], NA * F, 256)        # Linear(NA*F, 256)
        mlp_w2, mlp_b2 = linear(ks[1], 256, NA * H)        # Linear(256, H*NA)
        dec_w1, dec_b1 = linear(ks[2], F + H, H)           # Linear(F+H, H)
        dec_w2, dec_b2 = linear(ks[3], H, H)               # Linear(H, H)
        head_w, head_b = linear(ks[4], H, out_features)    # Linear(H, O1)
        head2_w, head2_b = linear(ks[5], H, out_features2)  # Linear(H, O2)
        agents.append(dict(
            mlp_w1=mlp_w1, mlp_b1=mlp_b1, mlp_w2=mlp_w2, mlp_b2=mlp_b2,
            dec_w1=dec_w1, dec_b1=dec_b1, dec_w2=dec_w2, dec_b2=dec_b2,
            head_w=head_w, head_b=head_b, head2_w=head2_w, head2_b=head2_b,
        ))
    return agents


def pack_params(agents, *, n_agents, in_features, hidden, out_features, out_features2,
                weight_dtype=jnp.bfloat16):
    """Pack per-agent weights into block-diagonal / concatenated kernel operands."""
    from jax.scipy.linalg import block_diag

    NA, F, H = n_agents, in_features, hidden
    O1, O2 = out_features, out_features2

    mlp_w1 = jnp.concatenate([a["mlp_w1"] for a in agents], axis=1)            # (NA*F, NA*256)
    mlp_b1 = jnp.concatenate([a["mlp_b1"] for a in agents])[None, :]           # (1, NA*256)
    # agent i only keeps columns [i*H:(i+1)*H] of its second MLP layer
    mlp_w2 = block_diag(*[a["mlp_w2"][:, i * H:(i + 1) * H]
                          for i, a in enumerate(agents)])                      # (NA*256, NA*H)
    mlp_b2 = jnp.concatenate([a["mlp_b2"][i * H:(i + 1) * H]
                              for i, a in enumerate(agents)])[None, :]          # (1, NA*H)

    dec_w1o = block_diag(*[a["dec_w1"][:F] for a in agents])                   # (NA*F, NA*H)
    dec_w1e = block_diag(*[a["dec_w1"][F:] for a in agents])                   # (NA*H, NA*H)
    dec_b1 = jnp.concatenate([a["dec_b1"] for a in agents])[None, :]
    dec_w2 = block_diag(*[a["dec_w2"] for a in agents])                        # (NA*H, NA*H)
    dec_b2 = jnp.concatenate([a["dec_b2"] for a in agents])[None, :]

    # fused head: per agent concat([head_w, head2_w]) -> block-diag -> lane pad to 128
    head_w = block_diag(*[jnp.concatenate([a["head_w"], a["head2_w"]], axis=1)
                          for a in agents])                                    # (NA*H, NA*(O1+O2))
    head_b = jnp.concatenate([jnp.concatenate([a["head_b"], a["head2_b"]])
                              for a in agents])[None, :]
    OT = NA * (O1 + O2)
    OPAD = ((OT + 127) // 128) * 128
    head_w = jnp.pad(head_w, ((0, 0), (0, OPAD - OT)))
    head_b = jnp.pad(head_b, ((0, 0), (0, OPAD - OT)))

    wd = weight_dtype
    return {
        "mlp_w1": mlp_w1.astype(wd), "mlp_b1": mlp_b1,
        "mlp_w2": mlp_w2.astype(wd), "mlp_b2": mlp_b2,
        "dec_w1o": dec_w1o.astype(wd), "dec_w1e": dec_w1e.astype(wd), "dec_b1": dec_b1,
        "dec_w2": dec_w2.astype(wd), "dec_b2": dec_b2,
        "head_w": head_w.astype(wd), "head_b": head_b,
    }


# -----------------------------------------------------------------------------
# Pure-JAX reference (mirrors the PyTorch per-agent forward, full f32)
# -----------------------------------------------------------------------------
def ref_forward(obs, agents):
    B, NA, F = obs.shape
    H = agents[0]["dec_w2"].shape[0]
    x = obs.reshape(B, NA * F)
    outs, outs2 = [], []
    for i, p in enumerate(agents):
        h = jnp.tanh(x @ p["mlp_w1"] + p["mlp_b1"])                 # (B, 256)
        emb_full = h @ p["mlp_w2"] + p["mlp_b2"]                    # (B, NA*H)
        emb_i = emb_full.reshape(B, NA, H)[:, i]                    # (B, H)
        d_in = jnp.concatenate([obs[:, i], emb_i], axis=-1)         # (B, F+H)
        d1 = jnp.tanh(d_in @ p["dec_w1"] + p["dec_b1"])
        d2 = jnp.tanh(d1 @ p["dec_w2"] + p["dec_b2"])
        outs.append(d2 @ p["head_w"] + p["head_b"])
        outs2.append(d2 @ p["head2_w"] + p["head2_b"])
    return jnp.stack(outs, axis=1), jnp.stack(outs2, axis=1)


if __name__ == "__main__":
    B, NA, F = 8, 4, 16
    H, O1, O2 = 128, 8, 1

    key = jax.random.PRNGKey(0)
    k_obs, k_par = jax.random.split(key)
    obs = jax.random.normal(k_obs, (B, NA, F), jnp.float32)
    # pos / vel exist in the module signature but are unused on the centralised path.

    agents = make_agent_params(k_par, n_agents=NA, in_features=F, hidden=H,
                               out_features=O1, out_features2=O2)
    packed = pack_params(agents, n_agents=NA, in_features=F, hidden=H,
                         out_features=O1, out_features2=O2,
                         weight_dtype=jnp.bfloat16)

    fwd = jax.jit(functools.partial(gppo_branch_forward,
                                    n_agents=NA, out_features=O1, out_features2=O2))
    out, out2 = fwd(obs, packed)
    out = jax.block_until_ready(out)
    out2 = jax.block_until_ready(out2)

    ref_out, ref_out2 = ref_forward(obs, agents)
    assert out.shape == (B, NA, O1) and out2.shape == (B, NA, O2)
    # bf16 weights on the MXU path vs f32 reference -> loosened tolerance.
    assert jnp.allclose(out, ref_out, rtol=5e-2, atol=5e-2), \
        float(jnp.max(jnp.abs(out - ref_out)))
    assert jnp.allclose(out2, ref_out2, rtol=5e-2, atol=5e-2), \
        float(jnp.max(jnp.abs(out2 - ref_out2)))

    print("KERNEL_OK")
</pallas_src>

<mosaic_0001>
module attributes {stable_mosaic.version = 11 : i64} {
  func.func @_gppo_kernel(%arg0: memref<8x64xf32, #tpu.memory_space<vmem>>, %arg1: memref<64x1024xbf16, #tpu.memory_space<vmem>>, %arg2: memref<1x1024xf32, #tpu.memory_space<vmem>>, %arg3: memref<1024x512xbf16, #tpu.memory_space<vmem>>, %arg4: memref<1x512xf32, #tpu.memory_space<vmem>>, %arg5: memref<64x512xbf16, #tpu.memory_space<vmem>>, %arg6: memref<512x512xbf16, #tpu.memory_space<vmem>>, %arg7: memref<1x512xf32, #tpu.memory_space<vmem>>, %arg8: memref<512x512xbf16, #tpu.memory_space<vmem>>, %arg9: memref<1x512xf32, #tpu.memory_space<vmem>>, %arg10: memref<512x128xbf16, #tpu.memory_space<vmem>>, %arg11: memref<1x128xf32, #tpu.memory_space<vmem>>, %arg12: memref<8x128xf32, #tpu.memory_space<vmem>>) attributes {dimension_semantics = [], scalar_prefetch = 0 : i64, scratch_operands = 0 : i64, tpu.core_type = #tpu.core_type<tc>} {
    %c0 = arith.constant 0 : index
    %c0_0 = arith.constant 0 : index
    %0 = vector.load %arg0[%c0, %c0_0] : memref<8x64xf32, #tpu.memory_space<vmem>>, vector<8x64xf32>
    %1 = arith.truncf %0 : vector<8x64xf32> to vector<8x64xbf16>
    %c0_1 = arith.constant 0 : index
    %c0_2 = arith.constant 0 : index
    %2 = vector.load %arg1[%c0_1, %c0_2] : memref<64x1024xbf16, #tpu.memory_space<vmem>>, vector<64x1024xbf16>
    %cst = arith.constant dense<0.000000e+00> : vector<8x1024xf32>
    %3 = tpu.matmul %1, %2, %cst {dimension_numbers = #tpu.dot_dimension_numbers<[1], [0], [0], [1], [0, 0, 1, 1], [], []>} : vector<8x64xbf16>, vector<64x1024xbf16>, vector<8x1024xf32> -> vector<8x1024xf32>
    %c0_3 = arith.constant 0 : index
    %c0_4 = arith.constant 0 : index
    %4 = vector.load %arg2[%c0_3, %c0_4] : memref<1x1024xf32, #tpu.memory_space<vmem>>, vector<1x1024xf32>
    %5 = vector.broadcast %4 : vector<1x1024xf32> to vector<8x1024xf32>
    %6 = arith.addf %3, %5 : vector<8x1024xf32>
    %7 = math.tanh %6 : vector<8x1024xf32>
    %8 = arith.truncf %7 : vector<8x1024xf32> to vector<8x1024xbf16>
    %c0_5 = arith.constant 0 : index
    %c0_6 = arith.constant 0 : index
    %9 = vector.load %arg3[%c0_5, %c0_6] : memref<1024x512xbf16, #tpu.memory_space<vmem>>, vector<1024x512xbf16>
    %cst_7 = arith.constant dense<0.000000e+00> : vector<8x512xf32>
    %10 = tpu.matmul %8, %9, %cst_7 {dimension_numbers = #tpu.dot_dimension_numbers<[1], [0], [0], [1], [0, 0, 1, 1], [], []>} : vector<8x1024xbf16>, vector<1024x512xbf16>, vector<8x512xf32> -> vector<8x512xf32>
    %c0_8 = arith.constant 0 : index
    %c0_9 = arith.constant 0 : index
    %11 = vector.load %arg4[%c0_8, %c0_9] : memref<1x512xf32, #tpu.memory_space<vmem>>, vector<1x512xf32>
    %12 = vector.broadcast %11 : vector<1x512xf32> to vector<8x512xf32>
    %13 = arith.addf %10, %12 : vector<8x512xf32>
    %c0_10 = arith.constant 0 : index
    %c0_11 = arith.constant 0 : index
    %14 = vector.load %arg5[%c0_10, %c0_11] : memref<64x512xbf16, #tpu.memory_space<vmem>>, vector<64x512xbf16>
    %cst_12 = arith.constant dense<0.000000e+00> : vector<8x512xf32>
    %15 = tpu.matmul %1, %14, %cst_12 {dimension_numbers = #tpu.dot_dimension_numbers<[1], [0], [0], [1], [0, 0, 1, 1], [], []>} : vector<8x64xbf16>, vector<64x512xbf16>, vector<8x512xf32> -> vector<8x512xf32>
    %16 = arith.truncf %13 : vector<8x512xf32> to vector<8x512xbf16>
    %c0_13 = arith.constant 0 : index
    %c0_14 = arith.constant 0 : index
    %17 = vector.load %arg6[%c0_13, %c0_14] : memref<512x512xbf16, #tpu.memory_space<vmem>>, vector<512x512xbf16>
    %cst_15 = arith.constant dense<0.000000e+00> : vector<8x512xf32>
    %18 = tpu.matmul %16, %17, %cst_15 {dimension_numbers = #tpu.dot_dimension_numbers<[1], [0], [0], [1], [0, 0, 1, 1], [], []>} : vector<8x512xbf16>, vector<512x512xbf16>, vector<8x512xf32> -> vector<8x512xf32>
    %19 = arith.addf %15, %18 : vector<8x512xf32>
    %c0_16 = arith.constant 0 : index
    %c0_17 = arith.constant 0 : index
    %20 = vector.load %arg7[%c0_16, %c0_17] : memref<1x512xf32, #tpu.memory_space<vmem>>, vector<1x512xf32>
    %21 = vector.broadcast %20 : vector<1x512xf32> to vector<8x512xf32>
    %22 = arith.addf %19, %21 : vector<8x512xf32>
    %23 = math.tanh %22 : vector<8x512xf32>
    %24 = arith.truncf %23 : vector<8x512xf32> to vector<8x512xbf16>
    %c0_18 = arith.constant 0 : index
    %c0_19 = arith.constant 0 : index
    %25 = vector.load %arg8[%c0_18, %c0_19] : memref<512x512xbf16, #tpu.memory_space<vmem>>, vector<512x512xbf16>
    %cst_20 = arith.constant dense<0.000000e+00> : vector<8x512xf32>
    %26 = tpu.matmul %24, %25, %cst_20 {dimension_numbers = #tpu.dot_dimension_numbers<[1], [0], [0], [1], [0, 0, 1, 1], [], []>} : vector<8x512xbf16>, vector<512x512xbf16>, vector<8x512xf32> -> vector<8x512xf32>
    %c0_21 = arith.constant 0 : index
    %c0_22 = arith.constant 0 : index
    %27 = vector.load %arg9[%c0_21, %c0_22] : memref<1x512xf32, #tpu.memory_space<vmem>>, vector<1x512xf32>
    %28 = vector.broadcast %27 : vector<1x512xf32> to vector<8x512xf32>
    %29 = arith.addf %26, %28 : vector<8x512xf32>
    %30 = math.tanh %29 : vector<8x512xf32>
    %31 = arith.truncf %30 : vector<8x512xf32> to vector<8x512xbf16>
    %c0_23 = arith.constant 0 : index
    %c0_24 = arith.constant 0 : index
    %32 = vector.load %arg10[%c0_23, %c0_24] : memref<512x128xbf16, #tpu.memory_space<vmem>>, vector<512x128xbf16>
    %cst_25 = arith.constant dense<0.000000e+00> : vector<8x128xf32>
    %33 = tpu.matmul %31, %32, %cst_25 {dimension_numbers = #tpu.dot_dimension_numbers<[1], [0], [0], [1], [0, 0, 1, 1], [], []>} : vector<8x512xbf16>, vector<512x128xbf16>, vector<8x128xf32> -> vector<8x128xf32>
    %c0_26 = arith.constant 0 : index
    %c0_27 = arith.constant 0 : index
    %34 = vector.load %arg11[%c0_26, %c0_27] : memref<1x128xf32, #tpu.memory_space<vmem>>, vector<1x128xf32>
    %35 = vector.broadcast %34 : vector<1x128xf32> to vector<8x128xf32>
    %36 = arith.addf %33, %35 : vector<8x128xf32>
    %c0_28 = arith.constant 0 : index
    %c0_29 = arith.constant 0 : index
    %37 = vector.load %arg12[%c0_28, %c0_29] : memref<8x128xf32, #tpu.memory_space<vmem>>, vector<8x128xf32>
    tpu.vector_store %arg12[%c0_28, %c0_29], %36 {strides = array<i32>} : memref<8x128xf32, #tpu.memory_space<vmem>>, vector<8x128xf32>,
    return
  }
}

</mosaic_0001>

<llo_original>
// kernel: gppo_branch_forward.1
$region0: #{gppo_branch_forward.1}
  #allocation0 [shape = 'u32[]', space=smem, size = 0x4, offset = 0x4, fixed_abs, tag = 'smem constant byte address 0x4 - core index']
  #allocation1 [shape = 'u32[144,128]{1,0:T(1,128)}', space=vmem, size = 0x12000, scoped, tag = 'internal scratch']
  %s0 = inlined_call_operand.vmem [shape: f32[8,64], index: 0, kind: input, shape index: {}]
  %s1 = inlined_call_operand.hbm [shape: bf16[64,1024], index: 1, kind: input, shape index: {}]
  %s2 = inlined_call_operand.vmem [shape: f32[1,1024], index: 2, kind: input, shape index: {}]
  %s3 = inlined_call_operand.hbm [shape: bf16[1024,512], index: 3, kind: input, shape index: {}]
  %s4 = inlined_call_operand.vmem [shape: f32[1,512], index: 4, kind: input, shape index: {}]
  %s5 = inlined_call_operand.hbm [shape: bf16[64,512], index: 5, kind: input, shape index: {}]
  %s6 = inlined_call_operand.hbm [shape: bf16[512,512], index: 6, kind: input, shape index: {}]
  %s7 = inlined_call_operand.vmem [shape: f32[1,512], index: 7, kind: input, shape index: {}]
  %s8 = inlined_call_operand.hbm [shape: bf16[512,512], index: 8, kind: input, shape index: {}]
  %s9 = inlined_call_operand.vmem [shape: f32[1,512], index: 9, kind: input, shape index: {}]
  %s10 = inlined_call_operand.hbm [shape: bf16[512,128], index: 10, kind: input, shape index: {}]
  %s11 = inlined_call_operand.vmem [shape: f32[1,128], index: 11, kind: input, shape index: {}]
  %s12 = inlined_call_operand.vmem [shape: f32[8,128], index: 12, kind: output, shape index: {}]
  %s13 = sld [smem:[#allocation0]]
  $region82: #{gppo_branch_forward.1} parent=0
    _
  %s15 = ssub.s32 1, %s13
  %s16 = scalar_select 0, %s15, %s13
  $region1: #{gppo_branch_forward.1} parent=0
    #allocation2 [shape = 'u8[131072]{0}', space=vmem, size = 0x20000, scoped, tag = 'input window, operand 1, single buffered']
    #allocation3 [shape = 's32[1]{0}', space=sflag, size = 0x4, scoped, tag = 'scoped memory for gppo_branch_forward.1']
    #allocation4 [shape = 'u8[1048576]{0}', space=vmem, size = 0x100000, scoped, tag = 'input window, operand 3, single buffered']
    #allocation5 [shape = 's32[1]{0}', space=sflag, size = 0x4, scoped, tag = 'scoped memory for gppo_branch_forward.1']
    #allocation6 [shape = 'u8[65536]{0}', space=vmem, size = 0x10000, scoped, tag = 'input window, operand 5, single buffered']
    #allocation7 [shape = 'u8[524288]{0}', space=vmem, size = 0x80000, scoped, tag = 'input window, operand 6, single buffered']
    #allocation8 [shape = 's32[1]{0}', space=sflag, size = 0x4, scoped, tag = 'scoped memory for gppo_branch_forward.1']
    #allocation9 [shape = 'u8[524288]{0}', space=vmem, size = 0x80000, scoped, tag = 'input window, operand 8, single buffered']
    #allocation10 [shape = 'u8[131072]{0}', space=vmem, size = 0x20000, scoped, tag = 'input window, operand 10, single buffered']
    #allocation11 [shape = 's32[1]{0}', space=sflag, size = 0x4, scoped, tag = 'scoped memory for gppo_branch_forward.1']
    %17 = vsyncpa [#allocation3], 0
    %18 = vsyncpa [#allocation5], 0
    %19 = vsyncpa [#allocation8], 0
    %20 = vsyncpa [#allocation11], 0
    // Predicated region
    $region2: #{gppo_branch_forward.1} parent=1 // pred_check
      _
    $region3: #{gppo_branch_forward.1} parent=1 // pred_check_branch
      %22 = sbr.rel (0) target = $region5
    $region4: #{gppo_branch_forward.1} parent=1 // pred_region
      _
    $region5: #{gppo_branch_forward.1} parent=1 // pred_fallthru
      _
    // Predicated region
    $region6: #{gppo_branch_forward.1} parent=1 // pred_check
      _
    $region7: #{gppo_branch_forward.1} parent=1 // pred_check_branch
      %24 = sbr.rel (0) target = $region9
    $region8: #{gppo_branch_forward.1} parent=1 // pred_region
      %s26 = ssub.s32 4096, 4096
      %27 = vsyncadd [#allocation3], %s26
      %s28 = sshll.u32 [#allocation2], 4
      %s29 = int_to_ptr.vmem [resolvable:$true] %s28
      %34 = dma.hbm_to_vmem [thread:$0]  %s1, 4096, %s29, [#allocation3], 512, 512, 32
    $region9: #{gppo_branch_forward.1} parent=1 // pred_fallthru
      _
    // Predicated region
    $region10: #{gppo_branch_forward.1} parent=1 // pred_check
      _
    $region11: #{gppo_branch_forward.1} parent=1 // pred_check_branch
      %36 = sbr.rel (0) target = $region13
    $region12: #{gppo_branch_forward.1} parent=1 // pred_region
      _
    $region13: #{gppo_branch_forward.1} parent=1 // pred_fallthru
      _
    // Predicated region
    $region14: #{gppo_branch_forward.1} parent=1 // pred_check
      _
    $region15: #{gppo_branch_forward.1} parent=1 // pred_check_branch
      %38 = sbr.rel (0) target = $region17
    $region16: #{gppo_branch_forward.1} parent=1 // pred_region
      %s40 = ssub.s32 32768, 32768
      %41 = vsyncadd [#allocation5], %s40
      %s42 = sshll.u32 [#allocation4], 4
      %s43 = int_to_ptr.vmem [resolvable:$true] %s42
      %48 = dma.hbm_to_vmem [thread:$0]  %s3, 32768, %s43, [#allocation5], 256, 256, 16
    $region17: #{gppo_branch_forward.1} parent=1 // pred_fallthru
      _
    // Predicated region
    $region18: #{gppo_branch_forward.1} parent=1 // pred_check
      _
    $region19: #{gppo_branch_forward.1} parent=1 // pred_check_branch
      %50 = sbr.rel (0) target = $region21
    $region20: #{gppo_branch_forward.1} parent=1 // pred_region
      _
    $region21: #{gppo_branch_forward.1} parent=1 // pred_fallthru
      _
    // Predicated region
    $region22: #{gppo_branch_forward.1} parent=1 // pred_check
      _
    $region23: #{gppo_branch_forward.1} parent=1 // pred_check_branch
      %52 = sbr.rel (0) target = $region25
    $region24: #{gppo_branch_forward.1} parent=1 // pred_region
      %s54 = ssub.s32 2048, 2048
      %55 = vsyncadd [#allocation5], %s54
      %s56 = sshll.u32 [#allocation6], 4
      %s57 = int_to_ptr.vmem [resolvable:$true] %s56
      %62 = dma.hbm_to_vmem [thread:$0]  %s5, 2048, %s57, [#allocation5], 256, 256, 16
    $region25: #{gppo_branch_forward.1} parent=1 // pred_fallthru
      _
    // Predicated region
    $region26: #{gppo_branch_forward.1} parent=1 // pred_check
      _
    $region27: #{gppo_branch_forward.1} parent=1 // pred_check_branch
      %64 = sbr.rel (0) target = $region29
    $region28: #{gppo_branch_forward.1} parent=1 // pred_region
      %s66 = ssub.s32 16384, 16384
      %67 = vsyncadd [#allocation8], %s66
      %s68 = sshll.u32 [#allocation7], 4
      %s69 = int_to_ptr.vmem [resolvable:$true] %s68
      %74 = dma.hbm_to_vmem [thread:$0]  %s6, 16384, %s69, [#allocation8], 256, 256, 16
    $region29: #{gppo_branch_forward.1} parent=1 // pred_fallthru
      _
    // Predicated region
    $region30: #{gppo_branch_forward.1} parent=1 // pred_check
      _
    $region31: #{gppo_branch_forward.1} parent=1 // pred_check_branch
      %76 = sbr.rel (0) target = $region33
    $region32: #{gppo_branch_forward.1} parent=1 // pred_region
      _
    $region33: #{gppo_branch_forward.1} parent=1 // pred_fallthru
      _
    // Predicated region
    $region34: #{gppo_branch_forward.1} parent=1 // pred_check
      _
    $region35: #{gppo_branch_forward.1} parent=1 // pred_check_branch
      %78 = sbr.rel (0) target = $region37
    $region36: #{gppo_branch_forward.1} parent=1 // pred_region
      %s80 = ssub.s32 16384, 16384
      %81 = vsyncadd [#allocation8], %s80
      %s82 = sshll.u32 [#allocation9], 4
      %s83 = int_to_ptr.vmem [resolvable:$true] %s82
      %88 = dma.hbm_to_vmem [thread:$0]  %s8, 16384, %s83, [#allocation8], 256, 256, 16
    $region37: #{gppo_branch_forward.1} parent=1 // pred_fallthru
      _
    // Predicated region
    $region38: #{gppo_branch_forward.1} parent=1 // pred_check
      _
    $region39: #{gppo_branch_forward.1} parent=1 // pred_check_branch
      %90 = sbr.rel (0) target = $region41
    $region40: #{gppo_branch_forward.1} parent=1 // pred_region
      _
    $region41: #{gppo_branch_forward.1} parent=1 // pred_fallthru
      _
    // Predicated region
    $region42: #{gppo_branch_forward.1} parent=1 // pred_check
      _
    $region43: #{gppo_branch_forward.1} parent=1 // pred_check_branch
      %92 = sbr.rel (0) target = $region45
    $region44: #{gppo_branch_forward.1} parent=1 // pred_region
      %s94 = ssub.s32 4096, 4096
      %95 = vsyncadd [#allocation11], %s94
      %s96 = sshll.u32 [#allocation10], 4
      %s97 = int_to_ptr.vmem [resolvable:$true] %s96
      %102 = dma.hbm_to_vmem [thread:$0]  %s10, 4096, %s97, [#allocation11], 64, 64, 4
    $region45: #{gppo_branch_forward.1} parent=1 // pred_fallthru
      _
    // Predicated region
    $region46: #{gppo_branch_forward.1} parent=1 // pred_check
      _
    $region47: #{gppo_branch_forward.1} parent=1 // pred_check_branch
      %104 = sbr.rel (0) target = $region49
    $region48: #{gppo_branch_forward.1} parent=1 // pred_region
      _
    $region49: #{gppo_branch_forward.1} parent=1 // pred_fallthru
      _
    // Predicated region
    $region50: #{gppo_branch_forward.1} parent=1 // pred_check
      _
    $region51: #{gppo_branch_forward.1} parent=1 // pred_check_branch
      %106 = sbr.rel (0) target = $region53
    $region52: #{gppo_branch_forward.1} parent=1 // pred_region
      %107 = dma.done [#allocation3], 4096
    $region53: #{gppo_branch_forward.1} parent=1 // pred_fallthru
      _
    // Predicated region
    $region54: #{gppo_branch_forward.1} parent=1 // pred_check
      _
    $region55: #{gppo_branch_forward.1} parent=1 // pred_check_branch
      %109 = sbr.rel (0) target = $region57
    $region56: #{gppo_branch_forward.1} parent=1 // pred_region
      %110 = dma.done [#allocation5], 32768
    $region57: #{gppo_branch_forward.1} parent=1 // pred_fallthru
      _
    // Predicated region
    $region58: #{gppo_branch_forward.1} parent=1 // pred_check
      _
    $region59: #{gppo_branch_forward.1} parent=1 // pred_check_branch
      %112 = sbr.rel (0) target = $region61
    $region60: #{gppo_branch_forward.1} parent=1 // pred_region
      %113 = dma.done [#allocation5], 2048
    $region61: #{gppo_branch_forward.1} parent=1 // pred_fallthru
      _
    // Predicated region
    $region62: #{gppo_branch_forward.1} parent=1 // pred_check
      _
    $region63: #{gppo_branch_forward.1} parent=1 // pred_check_branch
      %115 = sbr.rel (0) target = $region65
    $region64: #{gppo_branch_forward.1} parent=1 // pred_region
      %116 = dma.done [#allocation8], 16384
    $region65: #{gppo_branch_forward.1} parent=1 // pred_fallthru
      _
    // Predicated region
    $region66: #{gppo_branch_forward.1} parent=1 // pred_check
      _
    $region67: #{gppo_branch_forward.1} parent=1 // pred_check_branch
      %118 = sbr.rel (0) target = $region69
    $region68: #{gppo_branch_forward.1} parent=1 // pred_region
      %119 = dma.done [#allocation8], 16384
    $region69: #{gppo_branch_forward.1} parent=1 // pred_fallthru
      _
    // Predicated region
    $region70: #{gppo_branch_forward.1} parent=1 // pred_check
      _
    $region71: #{gppo_branch_forward.1} parent=1 // pred_check_branch
      %121 = sbr.rel (0) target = $region73
    $region72: #{gppo_branch_forward.1} parent=1 // pred_region
      %122 = dma.done [#allocation11], 4096
    $region73: #{gppo_branch_forward.1} parent=1 // pred_fallthru
      _
    %v124 = vld [vmem:[%s0] sm:$0xff]
    %v125 = vpack.c.bf16 %v124, %v124
    %v126 = vld [vmem:[#allocation2] sm:$0xff]
    %v127 = vld [vmem:[#allocation2 + $0x8] sm:$0xff]
    %v128 = vld [vmem:[#allocation2 + $0x10] sm:$0xff]
    %v129 = vld [vmem:[#allocation2 + $0x18] sm:$0xff]
    %v130 = vld [vmem:[#allocation2 + $0x20] sm:$0xff]
    %v131 = vld [vmem:[#allocation2 + $0x28] sm:$0xff]
    %v132 = vld [vmem:[#allocation2 + $0x30] sm:$0xff]
    %v133 = vld [vmem:[#allocation2 + $0x38] sm:$0xff]
    %v134 = vld [vmem:[#allocation2 + $0x40] sm:$0xff]
    %v135 = vld [vmem:[#allocation2 + $0x48] sm:$0xff]
    %v136 = vld [vmem:[#allocation2 + $0x50] sm:$0xff]
    %v137 = vld [vmem:[#allocation2 + $0x58] sm:$0xff]
    %v138 = vld [vmem:[#allocation2 + $0x60] sm:$0xff]
    %v139 = vld [vmem:[#allocation2 + $0x68] sm:$0xff]
    %v140 = vld [vmem:[#allocation2 + $0x70] sm:$0xff]
    %v141 = vld [vmem:[#allocation2 + $0x78] sm:$0xff]
    %v142 = vld [vmem:[#allocation2 + $0x80] sm:$0xff]
    %v143 = vld [vmem:[#allocation2 + $0x88] sm:$0xff]
    %v144 = vld [vmem:[#allocation2 + $0x90] sm:$0xff]
    %v145 = vld [vmem:[#allocation2 + $0x98] sm:$0xff]
    %v146 = vld [vmem:[#allocation2 + $0xa0] sm:$0xff]
    %v147 = vld [vmem:[#allocation2 + $0xa8] sm:$0xff]
    %v148 = vld [vmem:[#allocation2 + $0xb0] sm:$0xff]
    %v149 = vld [vmem:[#allocation2 + $0xb8] sm:$0xff]
    %v150 = vld [vmem:[#allocation2 + $0xc0] sm:$0xff]
    %v151 = vld [vmem:[#allocation2 + $0xc8] sm:$0xff]
    %v152 = vld [vmem:[#allocation2 + $0xd0] sm:$0xff]
    %v153 = vld [vmem:[#allocation2 + $0xd8] sm:$0xff]
    %v154 = vld [vmem:[#allocation2 + $0xe0] sm:$0xff]
    %v155 = vld [vmem:[#allocation2 + $0xe8] sm:$0xff]
    %v156 = vld [vmem:[#allocation2 + $0xf0] sm:$0xff]
    %v157 = vld [vmem:[#allocation2 + $0xf8] sm:$0xff]
    %v158 = vld [vmem:[%s2] sm:$0xff]
    %v160 = vlaneseq
    %v161 = vshrl.u32 %v160, 7
    %v162 = vsub.s32 0, %v161
    %v163 = vrot.slane %v158, %v162
    %v164 = vlaneseq
    %v165 = vshrl.u32 %v164, 7
    %v166 = vsub.s32 1, %v165
    %v167 = vrot.slane %v158, %v166
    %v168 = vlaneseq
    %v169 = vshrl.u32 %v168, 7
    %v170 = vsub.s32 2, %v169
    %v171 = vrot.slane %v158, %v170
    %v172 = vlaneseq
    %v173 = vshrl.u32 %v172, 7
    %v174 = vsub.s32 3, %v173
    %v175 = vrot.slane %v158, %v174
    %v176 = vlaneseq
    %v177 = vshrl.u32 %v176, 7
    %v178 = vsub.s32 4, %v177
    %v179 = vrot.slane %v158, %v178
    %v180 = vlaneseq
    %v181 = vshrl.u32 %v180, 7
    %v182 = vsub.s32 5, %v181
    %v183 = vrot.slane %v158, %v182
    %v184 = vlaneseq
    %v185 = vshrl.u32 %v184, 7
    %v186 = vsub.s32 6, %v185
    %v187 = vrot.slane %v158, %v186
    %v188 = vlaneseq
    %v189 = vshrl.u32 %v188, 7
    %v190 = vsub.s32 7, %v189
    %v191 = vrot.slane %v158, %v190
    %v232 = vunpack.c.l.b16 %v126
    %v233 = vunpack.c.h.b16 %v126
    %v234 = vunpack.c.l.b16 %v127
    %v235 = vunpack.c.h.b16 %v127
    %v236 = vunpack.c.l.b16 %v128
    %v237 = vunpack.c.h.b16 %v128
    %v238 = vunpack.c.l.b16 %v129
    %v239 = vunpack.c.h.b16 %v129
    %v240 = vunpack.c.l.b16 %v130
    %v241 = vunpack.c.h.b16 %v130
    %v242 = vunpack.c.l.b16 %v131
    %v243 = vunpack.c.h.b16 %v131
    %v244 = vunpack.c.l.b16 %v132
    %v245 = vunpack.c.h.b16 %v132
    %v246 = vunpack.c.l.b16 %v133
    %v247 = vunpack.c.h.b16 %v133
    %v248 = vunpack.c.l.b16 %v134
    %v249 = vunpack.c.h.b16 %v134
    %v250 = vunpack.c.l.b16 %v135
    %v251 = vunpack.c.h.b16 %v135
    %v252 = vunpack.c.l.b16 %v136
    %v253 = vunpack.c.h.b16 %v136
    %v254 = vunpack.c.l.b16 %v137
    %v255 = vunpack.c.h.b16 %v137
    %v256 = vunpack.c.l.b16 %v138
    %v257 = vunpack.c.h.b16 %v138
    %v258 = vunpack.c.l.b16 %v139
    %v259 = vunpack.c.h.b16 %v139
    %v260 = vunpack.c.l.b16 %v140
    %v261 = vunpack.c.h.b16 %v140
    %v262 = vunpack.c.l.b16 %v141
    %v263 = vunpack.c.h.b16 %v141
    %v264 = vunpack.c.l.b16 %v142
    %v265 = vunpack.c.h.b16 %v142
    %v266 = vunpack.c.l.b16 %v143
    %v267 = vunpack.c.h.b16 %v143
    %v268 = vunpack.c.l.b16 %v144
    %v269 = vunpack.c.h.b16 %v144
    %v270 = vunpack.c.l.b16 %v145
    %v271 = vunpack.c.h.b16 %v145
    %v272 = vunpack.c.l.b16 %v146
    %v273 = vunpack.c.h.b16 %v146
    %v274 = vunpack.c.l.b16 %v147
    %v275 = vunpack.c.h.b16 %v147
    %v276 = vunpack.c.l.b16 %v148
    %v277 = vunpack.c.h.b16 %v148
    %v278 = vunpack.c.l.b16 %v149
    %v279 = vunpack.c.h.b16 %v149
    %v280 = vunpack.c.l.b16 %v150
    %v281 = vunpack.c.h.b16 %v150
    %v282 = vunpack.c.l.b16 %v151
    %v283 = vunpack.c.h.b16 %v151
    %v284 = vunpack.c.l.b16 %v152
    %v285 = vunpack.c.h.b16 %v152
    %v286 = vunpack.c.l.b16 %v153
    %v287 = vunpack.c.h.b16 %v153
    %v288 = vunpack.c.l.b16 %v154
    %v289 = vunpack.c.h.b16 %v154
    %v290 = vunpack.c.l.b16 %v155
    %v291 = vunpack.c.h.b16 %v155
    %v292 = vunpack.c.l.b16 %v156
    %v293 = vunpack.c.h.b16 %v156
    %v294 = vunpack.c.l.b16 %v157
    %v295 = vunpack.c.h.b16 %v157
    %v296 = vpack.c.b16 %v240, %v232
    %v297 = vpack.c.b16 %v241, %v233
    %v298 = vpack.c.b16 %v242, %v234
    %v299 = vpack.c.b16 %v243, %v235
    %v300 = vpack.c.b16 %v244, %v236
    %v301 = vpack.c.b16 %v245, %v237
    %v302 = vpack.c.b16 %v246, %v238
    %v303 = vpack.c.b16 %v247, %v239
    %v304 = vpack.c.b16 %v256, %v248
    %v305 = vpack.c.b16 %v257, %v249
    %v306 = vpack.c.b16 %v258, %v250
    %v307 = vpack.c.b16 %v259, %v251
    %v308 = vpack.c.b16 %v260, %v252
    %v309 = vpack.c.b16 %v261, %v253
    %v310 = vpack.c.b16 %v262, %v254
    %v311 = vpack.c.b16 %v263, %v255
    %v312 = vpack.c.b16 %v272, %v264
    %v313 = vpack.c.b16 %v273, %v265
    %v314 = vpack.c.b16 %v274, %v266
    %v315 = vpack.c.b16 %v275, %v267
    %v316 = vpack.c.b16 %v276, %v268
    %v317 = vpack.c.b16 %v277, %v269
    %v318 = vpack.c.b16 %v278, %v270
    %v319 = vpack.c.b16 %v279, %v271
    %v320 = vpack.c.b16 %v288, %v280
    %v321 = vpack.c.b16 %v289, %v281
    %v322 = vpack.c.b16 %v290, %v282
    %v323 = vpack.c.b16 %v291, %v283
    %v324 = vpack.c.b16 %v292, %v284
    %v325 = vpack.c.b16 %v293, %v285
    %v326 = vpack.c.b16 %v294, %v286
    %v327 = vpack.c.b16 %v295, %v287
    %vm360 = vcmask 523264
    %v362 = vsel %vm360, %v125, 0
    %364 = vmatprep.subr.bf16.mxu0 %v297
    %365 = vmatpush1.bf16.msra.mxu0 %v296
    %366 = vmatprep.subr.bf16.mxu0 %v305
    %367 = vmatpush1.bf16.msra.mxu0 %v304
    %368 = vmatprep.subr.bf16.mxu0 %v313
    %369 = vmatpush1.bf16.msra.mxu0 %v312
    %370 = vmatprep.subr.bf16.mxu0 %v321
    %371 = vmatpush1.bf16.msra.mxu0 %v320
    %372 = vmatprep.subr.bf16.mxu0 0
    %373 = vmatpush1.bf16.msra.mxu0 0
    %374 = vmatprep.subr.bf16.mxu0 0
    %375 = vmatpush1.bf16.msra.mxu0 0
    %376 = vmatprep.subr.bf16.mxu0 0
    %377 = vmatpush1.bf16.msra.mxu0 0
    %378 = vmatprep.subr.bf16.mxu0 0
    %379 = vmatpush1.bf16.msra.mxu0 0
    %380 = vmatprep.subr.bf16.mxu0 0
    %381 = vmatpush1.bf16.msra.mxu0 0
    %382 = vmatprep.subr.bf16.mxu0 0
    %383 = vmatpush1.bf16.msra.mxu0 0
    %384 = vmatprep.subr.bf16.mxu0 0
    %385 = vmatpush1.bf16.msra.mxu0 0
    %386 = vmatprep.subr.bf16.mxu0 0
    %387 = vmatpush1.bf16.msra.mxu0 0
    %388 = vmatprep.subr.bf16.mxu0 0
    %389 = vmatpush1.bf16.msra.mxu0 0
    %390 = vmatprep.subr.bf16.mxu0 0
    %391 = vmatpush1.bf16.msra.mxu0 0
    %392 = vmatprep.subr.bf16.mxu0 0
    %393 = vmatpush1.bf16.msra.mxu0 0
    %394 = vmatprep.subr.bf16.mxu0 0
    %395 = vmatpush1.bf16.msra.mxu0 0
    %396 = vmatprep.mubr.bf16.mxu0 0
    %397 = vmatmul.mubr.bf16.gmra.mrb[0].mxu0 %v362
    %v398 = vpop.f32.mrb[0].mxu0
    %v399 = vadd.f32 %v163, %v398
    %v400 = vpop.f32.mrb[0].mxu0
    %v401 = vadd.f32 %v167, %v400
    %v402 = vpop.f32.mrb[0].mxu0
    %v403 = vpop.f32.mrb[0].mxu0
    %404 = vdwg.mxu0
    %405 = vmatprep.subr.bf16.mxu0 %v299
    %406 = vmatpush1.bf16.msra.mxu0 %v298
    %407 = vmatprep.subr.bf16.mxu0 %v307
    %408 = vmatpush1.bf16.msra.mxu0 %v306
    %409 = vmatprep.subr.bf16.mxu0 %v315
    %410 = vmatpush1.bf16.msra.mxu0 %v314
    %411 = vmatprep.subr.bf16.mxu0 %v323
    %412 = vmatpush1.bf16.msra.mxu0 %v322
    %413 = vmatprep.subr.bf16.mxu0 0
    %414 = vmatpush1.bf16.msra.mxu0 0
    %415 = vmatprep.subr.bf16.mxu0 0
    %416 = vmatpush1.bf16.msra.mxu0 0
    %417 = vmatprep.subr.bf16.mxu0 0
    %418 = vmatpush1.bf16.msra.mxu0 0
    %419 = vmatprep.subr.bf16.mxu0 0
    %420 = vmatpush1.bf16.msra.mxu0 0
    %421 = vmatprep.subr.bf16.mxu0 0
    %422 = vmatpush1.bf16.msra.mxu0 0
    %423 = vmatprep.subr.bf16.mxu0 0
    %424 = vmatpush1.bf16.msra.mxu0 0
    %425 = vmatprep.subr.bf16.mxu0 0
    %426 = vmatpush1.bf16.msra.mxu0 0
    %427 = vmatprep.subr.bf16.mxu0 0
    %428 = vmatpush1.bf16.msra.mxu0 0
    %429 = vmatprep.subr.bf16.mxu0 0
    %430 = vmatpush1.bf16.msra.mxu0 0
    %431 = vmatprep.subr.bf16.mxu0 0
    %432 = vmatpush1.bf16.msra.mxu0 0
    %433 = vmatprep.subr.bf16.mxu0 0
    %434 = vmatpush1.bf16.msra.mxu0 0
    %435 = vmatprep.subr.bf16.mxu0 0
    %436 = vmatpush1.bf16.msra.mxu0 0
    %437 = vmatprep.mubr.bf16.mxu0 0
    %438 = vmatmul.mubr.bf16.gmra.mrb[0].mxu0 %v362
    %v439 = vpop.f32.mrb[0].mxu0
    %v440 = vadd.f32 %v171, %v439
    %v441 = vpop.f32.mrb[0].mxu0
    %v442 = vadd.f32 %v175, %v441
    %v443 = vpop.f32.mrb[0].mxu0
    %v444 = vpop.f32.mrb[0].mxu0
    %445 = vdwg.mxu0
    %446 = vmatprep.subr.bf16.mxu0 %v301
    %447 = vmatpush1.bf16.msra.mxu0 %v300
    %448 = vmatprep.subr.bf16.mxu0 %v309
    %449 = vmatpush1.bf16.msra.mxu0 %v308
    %450 = vmatprep.subr.bf16.mxu0 %v317
    %451 = vmatpush1.bf16.msra.mxu0 %v316
    %452 = vmatprep.subr.bf16.mxu0 %v325
    %453 = vmatpush1.bf16.msra.mxu0 %v324
    %454 = vmatprep.subr.bf16.mxu0 0
    %455 = vmatpush1.bf16.msra.mxu0 0
    %456 = vmatprep.subr.bf16.mxu0 0
    %457 = vmatpush1.bf16.msra.mxu0 0
    %458 = vmatprep.subr.bf16.mxu0 0
    %459 = vmatpush1.bf16.msra.mxu0 0
    %460 = vmatprep.subr.bf16.mxu0 0
    %461 = vmatpush1.bf16.msra.mxu0 0
    %462 = vmatprep.subr.bf16.mxu0 0
    %463 = vmatpush1.bf16.msra.mxu0 0
    %464 = vmatprep.subr.bf16.mxu0 0
    %465 = vmatpush1.bf16.msra.mxu0 0
    %466 = vmatprep.subr.bf16.mxu0 0
    %467 = vmatpush1.bf16.msra.mxu0 0
    %468 = vmatprep.subr.bf16.mxu0 0
    %469 = vmatpush1.bf16.msra.mxu0 0
    %470 = vmatprep.subr.bf16.mxu0 0
    %471 = vmatpush1.bf16.msra.mxu0 0
    %472 = vmatprep.subr.bf16.mxu0 0
    %473 = vmatpush1.bf16.msra.mxu0 0
    %474 = vmatprep.subr.bf16.mxu0 0
    %475 = vmatpush1.bf16.msra.mxu0 0
    %476 = vmatprep.subr.bf16.mxu0 0
    %477 = vmatpush1.bf16.msra.mxu0 0
    %478 = vmatprep.mubr.bf16.mxu0 0
    %479 = vmatmul.mubr.bf16.gmra.mrb[0].mxu0 %v362
    %v480 = vpop.f32.mrb[0].mxu0
    %v481 = vadd.f32 %v179, %v480
    %v482 = vpop.f32.mrb[0].mxu0
    %v483 = vadd.f32 %v183, %v482
    %v484 = vpop.f32.mrb[0].mxu0
    %v485 = vpop.f32.mrb[0].mxu0
    %486 = vdwg.mxu0
    %487 = vmatprep.subr.bf16.mxu0 %v303
    %488 = vmatpush1.bf16.msra.mxu0 %v302
    %489 = vmatprep.subr.bf16.mxu0 %v311
    %490 = vmatpush1.bf16.msra.mxu0 %v310
    %491 = vmatprep.subr.bf16.mxu0 %v319
    %492 = vmatpush1.bf16.msra.mxu0 %v318
    %493 = vmatprep.subr.bf16.mxu0 %v327
    %494 = vmatpush1.bf16.msra.mxu0 %v326
    %495 = vmatprep.subr.bf16.mxu0 0
    %496 = vmatpush1.bf16.msra.mxu0 0
    %497 = vmatprep.subr.bf16.mxu0 0
    %498 = vmatpush1.bf16.msra.mxu0 0
    %499 = vmatprep.subr.bf16.mxu0 0
    %500 = vmatpush1.bf16.msra.mxu0 0
    %501 = vmatprep.subr.bf16.mxu0 0
    %502 = vmatpush1.bf16.msra.mxu0 0
    %503 = vmatprep.subr.bf16.mxu0 0
    %504 = vmatpush1.bf16.msra.mxu0 0
    %505 = vmatprep.subr.bf16.mxu0 0
    %506 = vmatpush1.bf16.msra.mxu0 0
    %507 = vmatprep.subr.bf16.mxu0 0
    %508 = vmatpush1.bf16.msra.mxu0 0
    %509 = vmatprep.subr.bf16.mxu0 0
    %510 = vmatpush1.bf16.msra.mxu0 0
    %511 = vmatprep.subr.bf16.mxu0 0
    %512 = vmatpush1.bf16.msra.mxu0 0
    %513 = vmatprep.subr.bf16.mxu0 0
    %514 = vmatpush1.bf16.msra.mxu0 0
    %515 = vmatprep.subr.bf16.mxu0 0
    %516 = vmatpush1.bf16.msra.mxu0 0
    %517 = vmatprep.subr.bf16.mxu0 0
    %518 = vmatpush1.bf16.msra.mxu0 0
    %519 = vmatprep.mubr.bf16.mxu0 0
    %520 = vmatmul.mubr.bf16.gmra.mrb[0].mxu0 %v362
    %v521 = vpop.f32.mrb[0].mxu0
    %v522 = vadd.f32 %v187, %v521
    %v523 = vpop.f32.mrb[0].mxu0
    %v524 = vadd.f32 %v191, %v523
    %v525 = vpop.f32.mrb[0].mxu0
    %v526 = vpop.f32.mrb[0].mxu0
    %527 = vdwg.mxu0
    %v528 = vtanh.pop %v399
    %v529 = vtanh.pop %v401
    %v530 = vtanh.pop %v440
    %v531 = vtanh.pop %v442
    %v532 = vtanh.pop %v481
    %v533 = vtanh.pop %v483
    %v534 = vtanh.pop %v522
    %v535 = vtanh.pop %v524
    %v536 = vpack.c.bf16 %v528, %v528
    %v537 = vpack.c.bf16 %v529, %v529
    %v538 = vpack.c.bf16 %v530, %v530
    %v539 = vpack.c.bf16 %v531, %v531
    %v540 = vpack.c.bf16 %v532, %v532
    %v541 = vpack.c.bf16 %v533, %v533
    %v542 = vpack.c.bf16 %v534, %v534
    %v543 = vpack.c.bf16 %v535, %v535
    %v544 = vld [vmem:[#allocation4] sm:$0xff]
    %v545 = vld [vmem:[#allocation4 + $0x8] sm:$0xff]
    %v546 = vld [vmem:[#allocation4 + $0x10] sm:$0xff]
    %v547 = vld [vmem:[#allocation4 + $0x18] sm:$0xff]
    %v548 = vld [vmem:[#allocation4 + $0x20] sm:$0xff]
    %v549 = vld [vmem:[#allocation4 + $0x28] sm:$0xff]
    %v550 = vld [vmem:[#allocation4 + $0x30] sm:$0xff]
    %v551 = vld [vmem:[#allocation4 + $0x38] sm:$0xff]
    %v552 = vld [vmem:[#allocation4 + $0x40] sm:$0xff]
    %v553 = vld [vmem:[#allocation4 + $0x48] sm:$0xff]
    %v554 = vld [vmem:[#allocation4 + $0x50] sm:$0xff]
    %v555 = vld [vmem:[#allocation4 + $0x58] sm:$0xff]
    %v556 = vld [vmem:[#allocation4 + $0x60] sm:$0xff]
    %v557 = vld [vmem:[#allocation4 + $0x68] sm:$0xff]
    %v558 = vld [vmem:[#allocation4 + $0x70] sm:$0xff]
    %v559 = vld [vmem:[#allocation4 + $0x78] sm:$0xff]
    %v560 = vld [vmem:[#allocation4 + $0x80] sm:$0xff]
    %v561 = vld [vmem:[#allocation4 + $0x88] sm:$0xff]
    %v562 = vld [vmem:[#allocation4 + $0x90] sm:$0xff]
    %v563 = vld [vmem:[#allocation4 + $0x98] sm:$0xff]
    %v564 = vld [vmem:[#allocation4 + $0xa0] sm:$0xff]
    %v565 = vld [vmem:[#allocation4 + $0xa8] sm:$0xff]
    %v566 = vld [vmem:[#allocation4 + $0xb0] sm:$0xff]
    %v567 = vld [vmem:[#allocation4 + $0xb8] sm:$0xff]
    %v568 = vld [vmem:[#allocation4 + $0xc0] sm:$0xff]
    %v569 = vld [vmem:[#allocation4 + $0xc8] sm:$0xff]
    %v570 = vld [vmem:[#allocation4 + $0xd0] sm:$0xff]
    %v571 = vld [vmem:[#allocation4 + $0xd8] sm:$0xff]
    %v572 = vld [vmem:[#allocation4 + $0xe0] sm:$0xff]
    %v573 = vld [vmem:[#allocation4 + $0xe8] sm:$0xff]
    %v574 = vld [vmem:[#allocation4 + $0xf0] sm:$0xff]
    %v575 = vld [vmem:[#allocation4 + $0xf8] sm:$0xff]
    %v576 = vld [vmem:[#allocation4 + $0x100] sm:$0xff]
    %v577 = vld [vmem:[#allocation4 + $0x108] sm:$0xff]
    %v578 = vld [vmem:[#allocation4 + $0x110] sm:$0xff]
    %v579 = vld [vmem:[#allocation4 + $0x118] sm:$0xff]
    %v580 = vld [vmem:[#allocation4 + $0x120] sm:$0xff]
    %v581 = vld [vmem:[#allocation4 + $0x128] sm:$0xff]
    %v582 = vld [vmem:[#allocation4 + $0x130] sm:$0xff]
    %v583 = vld [vmem:[#allocation4 + $0x138] sm:$0xff]
    %v584 = vld [vmem:[#allocation4 + $0x140] sm:$0xff]
    %v585 = vld [vmem:[#allocation4 + $0x148] sm:$0xff]
    %v586 = vld [vmem:[#allocation4 + $0x150] sm:$0xff]
    %v587 = vld [vmem:[#allocation4 + $0x158] sm:$0xff]
    %v588 = vld [vmem:[#allocation4 + $0x160] sm:$0xff]
    %v589 = vld [vmem:[#allocation4 + $0x168] sm:$0xff]
    %v590 = vld [vmem:[#allocation4 + $0x170] sm:$0xff]
    %v591 = vld [vmem:[#allocation4 + $0x178] sm:$0xff]
    %v592 = vld [vmem:[#allocation4 + $0x180] sm:$0xff]
    %v593 = vld [vmem:[#allocation4 + $0x188] sm:$0xff]
    %v594 = vld [vmem:[#allocation4 + $0x190] sm:$0xff]
    %v595 = vld [vmem:[#allocation4 + $0x198] sm:$0xff]
    %v596 = vld [vmem:[#allocation4 + $0x1a0] sm:$0xff]
    %v597 = vld [vmem:[#allocation4 + $0x1a8] sm:$0xff]
    %v598 = vld [vmem:[#allocation4 + $0x1b0] sm:$0xff]
    %v599 = vld [vmem:[#allocation4 + $0x1b8] sm:$0xff]
    %v600 = vld [vmem:[#allocation4 + $0x1c0] sm:$0xff]
    %v601 = vld [vmem:[#allocation4 + $0x1c8] sm:$0xff]
    %v602 = vld [vmem:[#allocation4 + $0x1d0] sm:$0xff]
    %v603 = vld [vmem:[#allocation4 + $0x1d8] sm:$0xff]
    %v604 = vld [vmem:[#allocation4 + $0x1e0] sm:$0xff]
    %v605 = vld [vmem:[#allocation4 + $0x1e8] sm:$0xff]
    %v606 = vld [vmem:[#allocation4 + $0x1f0] sm:$0xff]
    %v607 = vld [vmem:[#allocation4 + $0x1f8] sm:$0xff]
    %v608 = vld [vmem:[#allocation4 + $0x200] sm:$0xff]
    %v609 = vld [vmem:[#allocation4 + $0x208] sm:$0xff]
    %v610 = vld [vmem:[#allocation4 + $0x210] sm:$0xff]
    %v611 = vld [vmem:[#allocation4 + $0x218] sm:$0xff]
    %v612 = vld [vmem:[#allocation4 + $0x220] sm:$0xff]
    %v613 = vld [vmem:[#allocation4 + $0x228] sm:$0xff]
    %v614 = vld [vmem:[#allocation4 + $0x230] sm:$0xff]
    %v615 = vld [vmem:[#allocation4 + $0x238] sm:$0xff]
    %v616 = vld [vmem:[#allocation4 + $0x240] sm:$0xff]
    %v617 = vld [vmem:[#allocation4 + $0x248] sm:$0xff]
    %v618 = vld [vmem:[#allocation4 + $0x250] sm:$0xff]
    %v619 = vld [vmem:[#allocation4 + $0x258] sm:$0xff]
    %v620 = vld [vmem:[#allocation4 + $0x260] sm:$0xff]
    %v621 = vld [vmem:[#allocation4 + $0x268] sm:$0xff]
    %v622 = vld [vmem:[#allocation4 + $0x270] sm:$0xff]
    %v623 = vld [vmem:[#allocation4 + $0x278] sm:$0xff]
    %v624 = vld [vmem:[#allocation4 + $0x280] sm:$0xff]
    %v625 = vld [vmem:[#allocation4 + $0x288] sm:$0xff]
    %v626 = vld [vmem:[#allocation4 + $0x290] sm:$0xff]
    %v627 = vld [vmem:[#allocation4 + $0x298] sm:$0xff]
    %v628 = vld [vmem:[#allocation4 + $0x2a0] sm:$0xff]
    %v629 = vld [vmem:[#allocation4 + $0x2a8] sm:$0xff]
    %v630 = vld [vmem:[#allocation4 + $0x2b0] sm:$0xff]
    %v631 = vld [vmem:[#allocation4 + $0x2b8] sm:$0xff]
    %v632 = vld [vmem:[#allocation4 + $0x2c0] sm:$0xff]
    %v633 = vld [vmem:[#allocation4 + $0x2c8] sm:$0xff]
    %v634 = vld [vmem:[#allocation4 + $0x2d0] sm:$0xff]
    %v635 = vld [vmem:[#allocation4 + $0x2d8] sm:$0xff]
    %v636 = vld [vmem:[#allocation4 + $0x2e0] sm:$0xff]
    %v637 = vld [vmem:[#allocation4 + $0x2e8] sm:$0xff]
    %v638 = vld [vmem:[#allocation4 + $0x2f0] sm:$0xff]
    %v639 = vld [vmem:[#allocation4 + $0x2f8] sm:$0xff]
    %v640 = vld [vmem:[#allocation4 + $0x300] sm:$0xff]
    %v641 = vld [vmem:[#allocation4 + $0x308] sm:$0xff]
    %v642 = vld [vmem:[#allocation4 + $0x310] sm:$0xff]
    %v643 = vld [vmem:[#allocation4 + $0x318] sm:$0xff]
    %v644 = vld [vmem:[#allocation4 + $0x320] sm:$0xff]
    %v645 = vld [vmem:[#allocation4 + $0x328] sm:$0xff]
    %v646 = vld [vmem:[#allocation4 + $0x330] sm:$0xff]
    %v647 = vld [vmem:[#allocation4 + $0x338] sm:$0xff]
    %v648 = vld [vmem:[#allocation4 + $0x340] sm:$0xff]
    %v649 = vld [vmem:[#allocation4 + $0x348] sm:$0xff]
    %v650 = vld [vmem:[#allocation4 + $0x350] sm:$0xff]
    %v651 = vld [vmem:[#allocation4 + $0x358] sm:$0xff]
    %v652 = vld [vmem:[#allocation4 + $0x360] sm:$0xff]
    %v653 = vld [vmem:[#allocation4 + $0x368] sm:$0xff]
    %v654 = vld [vmem:[#allocation4 + $0x370] sm:$0xff]
    %v655 = vld [vmem:[#allocation4 + $0x378] sm:$0xff]
    %v656 = vld [vmem:[#allocation4 + $0x380] sm:$0xff]
    %v657 = vld [vmem:[#allocation4 + $0x388] sm:$0xff]
    %v658 = vld [vmem:[#allocation4 + $0x390] sm:$0xff]
    %v659 = vld [vmem:[#allocation4 + $0x398] sm:$0xff]
    %v660 = vld [vmem:[#allocation4 + $0x3a0] sm:$0xff]
    %v661 = vld [vmem:[#allocation4 + $0x3a8] sm:$0xff]
    %v662 = vld [vmem:[#allocation4 + $0x3b0] sm:$0xff]
    %v663 = vld [vmem:[#allocation4 + $0x3b8] sm:$0xff]
    %v664 = vld [vmem:[#allocation4 + $0x3c0] sm:$0xff]
    %v665 = vld [vmem:[#allocation4 + $0x3c8] sm:$0xff]
    %v666 = vld [vmem:[#allocation4 + $0x3d0] sm:$0xff]
    %v667 = vld [vmem:[#allocation4 + $0x3d8] sm:$0xff]
    %v668 = vld [vmem:[#allocation4 + $0x3e0] sm:$0xff]
    %v669 = vld [vmem:[#allocation4 + $0x3e8] sm:$0xff]
    %v670 = vld [vmem:[#allocation4 + $0x3f0] sm:$0xff]
    %v671 = vld [vmem:[#allocation4 + $0x3f8] sm:$0xff]
    %v672 = vld [vmem:[#allocation4 + $0x400] sm:$0xff]
    %v673 = vld [vmem:[#allocation4 + $0x408] sm:$0xff]
    %v674 = vld [vmem:[#allocation4 + $0x410] sm:$0xff]
    %v675 = vld [vmem:[#allocation4 + $0x418] sm:$0xff]
    %v676 = vld [vmem:[#allocation4 + $0x420] sm:$0xff]
    %v677 = vld [vmem:[#allocation4 + $0x428] sm:$0xff]
    %v678 = vld [vmem:[#allocation4 + $0x430] sm:$0xff]
    %v679 = vld [vmem:[#allocation4 + $0x438] sm:$0xff]
    %v680 = vld [vmem:[#allocation4 + $0x440] sm:$0xff]
    %v681 = vld [vmem:[#allocation4 + $0x448] sm:$0xff]
    %v682 = vld [vmem:[#allocation4 + $0x450] sm:$0xff]
    %v683 = vld [vmem:[#allocation4 + $0x458] sm:$0xff]
    %v684 = vld [vmem:[#allocation4 + $0x460] sm:$0xff]
    %v685 = vld [vmem:[#allocation4 + $0x468] sm:$0xff]
    %v686 = vld [vmem:[#allocation4 + $0x470] sm:$0xff]
    %v687 = vld [vmem:[#allocation4 + $0x478] sm:$0xff]
    %v688 = vld [vmem:[#allocation4 + $0x480] sm:$0xff]
    %v689 = vld [vmem:[#allocation4 + $0x488] sm:$0xff]
    %v690 = vld [vmem:[#allocation4 + $0x490] sm:$0xff]
    %v691 = vld [vmem:[#allocation4 + $0x498] sm:$0xff]
    %v692 = vld [vmem:[#allocation4 + $0x4a0] sm:$0xff]
    %v693 = vld [vmem:[#allocation4 + $0x4a8] sm:$0xff]
    %v694 = vld [vmem:[#allocation4 + $0x4b0] sm:$0xff]
    %v695 = vld [vmem:[#allocation4 + $0x4b8] sm:$0xff]
    %v696 = vld [vmem:[#allocation4 + $0x4c0] sm:$0xff]
    %v697 = vld [vmem:[#allocation4 + $0x4c8] sm:$0xff]
    %v698 = vld [vmem:[#allocation4 + $0x4d0] sm:$0xff]
    %v699 = vld [vmem:[#allocation4 + $0x4d8] sm:$0xff]
    %v700 = vld [vmem:[#allocation4 + $0x4e0] sm:$0xff]
    %v701 = vld [vmem:[#allocation4 + $0x4e8] sm:$0xff]
    %v702 = vld [vmem:[#allocation4 + $0x4f0] sm:$0xff]
    %v703 = vld [vmem:[#allocation4 + $0x4f8] sm:$0xff]
    %v704 = vld [vmem:[#allocation4 + $0x500] sm:$0xff]
    %v705 = vld [vmem:[#allocation4 + $0x508] sm:$0xff]
    %v706 = vld [vmem:[#allocation4 + $0x510] sm:$0xff]
    %v707 = vld [vmem:[#allocation4 + $0x518] sm:$0xff]
    %v708 = vld [vmem:[#allocation4 + $0x520] sm:$0xff]
    %v709 = vld [vmem:[#allocation4 + $0x528] sm:$0xff]
    %v710 = vld [vmem:[#allocation4 + $0x530] sm:$0xff]
    %v711 = vld [vmem:[#allocation4 + $0x538] sm:$0xff]
    %v712 = vld [vmem:[#allocation4 + $0x540] sm:$0xff]
    %v713 = vld [vmem:[#allocation4 + $0x548] sm:$0xff]
    %v714 = vld [vmem:[#allocation4 + $0x550] sm:$0xff]
    %v715 = vld [vmem:[#allocation4 + $0x558] sm:$0xff]
    %v716 = vld [vmem:[#allocation4 + $0x560] sm:$0xff]
    %v717 = vld [vmem:[#allocation4 + $0x568] sm:$0xff]
    %v718 = vld [vmem:[#allocation4 + $0x570] sm:$0xff]
    %v719 = vld [vmem:[#allocation4 + $0x578] sm:$0xff]
    %v720 = vld [vmem:[#allocation4 + $0x580] sm:$0xff]
    %v721 = vld [vmem:[#allocation4 + $0x588] sm:$0xff]
    %v722 = vld [vmem:[#allocation4 + $0x590] sm:$0xff]
    %v723 = vld [vmem:[#allocation4 + $0x598] sm:$0xff]
    %v724 = vld [vmem:[#allocation4 + $0x5a0] sm:$0xff]
    %v725 = vld [vmem:[#allocation4 + $0x5a8] sm:$0xff]
    %v726 = vld [vmem:[#allocation4 + $0x5b0] sm:$0xff]
    %v727 = vld [vmem:[#allocation4 + $0x5b8] sm:$0xff]
    %v728 = vld [vmem:[#allocation4 + $0x5c0] sm:$0xff]
    %v729 = vld [vmem:[#allocation4 + $0x5c8] sm:$0xff]
    %v730 = vld [vmem:[#allocation4 + $0x5d0] sm:$0xff]
    %v731 = vld [vmem:[#allocation4 + $0x5d8] sm:$0xff]
    %v732 = vld [vmem:[#allocation4 + $0x5e0] sm:$0xff]
    %v733 = vld [vmem:[#allocation4 + $0x5e8] sm:$0xff]
    %v734 = vld [vmem:[#allocation4 + $0x5f0] sm:$0xff]
    %v735 = vld [vmem:[#allocation4 + $0x5f8] sm:$0xff]
    %v736 = vld [vmem:[#allocation4 + $0x600] sm:$0xff]
    %v737 = vld [vmem:[#allocation4 + $0x608] sm:$0xff]
    %v738 = vld [vmem:[#allocation4 + $0x610] sm:$0xff]
    %v739 = vld [vmem:[#allocation4 + $0x618] sm:$0xff]
    %v740 = vld [vmem:[#allocation4 + $0x620] sm:$0xff]
    %v741 = vld [vmem:[#allocation4 + $0x628] sm:$0xff]
    %v742 = vld [vmem:[#allocation4 + $0x630] sm:$0xff]
    %v743 = vld [vmem:[#allocation4 + $0x638] sm:$0xff]
    %v744 = vld [vmem:[#allocation4 + $0x640] sm:$0xff]
    %v745 = vld [vmem:[#allocation4 + $0x648] sm:$0xff]
    %v746 = vld [vmem:[#allocation4 + $0x650] sm:$0xff]
    %v747 = vld [vmem:[#allocation4 + $0x658] sm:$0xff]
    %v748 = vld [vmem:[#allocation4 + $0x660] sm:$0xff]
    %v749 = vld [vmem:[#allocation4 + $0x668] sm:$0xff]
    %v750 = vld [vmem:[#allocation4 + $0x670] sm:$0xff]
    %v751 = vld [vmem:[#allocation4 + $0x678] sm:$0xff]
    %v752 = vld [vmem:[#allocation4 + $0x680] sm:$0xff]
    %v753 = vld [vmem:[#allocation4 + $0x688] sm:$0xff]
    %v754 = vld [vmem:[#allocation4 + $0x690] sm:$0xff]
    %v755 = vld [vmem:[#allocation4 + $0x698] sm:$0xff]
    %v756 = vld [vmem:[#allocation4 + $0x6a0] sm:$0xff]
    %v757 = vld [vmem:[#allocation4 + $0x6a8] sm:$0xff]
    %v758 = vld [vmem:[#allocation4 + $0x6b0] sm:$0xff]
    %v759 = vld [vmem:[#allocation4 + $0x6b8] sm:$0xff]
    %v760 = vld [vmem:[#allocation4 + $0x6c0] sm:$0xff]
    %v761 = vld [vmem:[#allocation4 + $0x6c8] sm:$0xff]
    %v762 = vld [vmem:[#allocation4 + $0x6d0] sm:$0xff]
    %v763 = vld [vmem:[#allocation4 + $0x6d8] sm:$0xff]
    %v764 = vld [vmem:[#allocation4 + $0x6e0] sm:$0xff]
    %v765 = vld [vmem:[#allocation4 + $0x6e8] sm:$0xff]
    %v766 = vld [vmem:[#allocation4 + $0x6f0] sm:$0xff]
    %v767 = vld [vmem:[#allocation4 + $0x6f8] sm:$0xff]
    %v768 = vld [vmem:[#allocation4 + $0x700] sm:$0xff]
    %v769 = vld [vmem:[#allocation4 + $0x708] sm:$0xff]
    %v770 = vld [vmem:[#allocation4 + $0x710] sm:$0xff]
    %v771 = vld [vmem:[#allocation4 + $0x718] sm:$0xff]
    %v772 = vld [vmem:[#allocation4 + $0x720] sm:$0xff]
    %v773 = vld [vmem:[#allocation4 + $0x728] sm:$0xff]
    %v774 = vld [vmem:[#allocation4 + $0x730] sm:$0xff]
    %v775 = vld [vmem:[#allocation4 + $0x738] sm:$0xff]
    %v776 = vld [vmem:[#allocation4 + $0x740] sm:$0xff]
    %v777 = vld [vmem:[#allocation4 + $0x748] sm:$0xff]
    %v778 = vld [vmem:[#allocation4 + $0x750] sm:$0xff]
    %v779 = vld [vmem:[#allocation4 + $0x758] sm:$0xff]
    %v780 = vld [vmem:[#allocation4 + $0x760] sm:$0xff]
    %v781 = vld [vmem:[#allocation4 + $0x768] sm:$0xff]
    %v782 = vld [vmem:[#allocation4 + $0x770] sm:$0xff]
    %v783 = vld [vmem:[#allocation4 + $0x778] sm:$0xff]
    %v784 = vld [vmem:[#allocation4 + $0x780] sm:$0xff]
    %v785 = vld [vmem:[#allocation4 + $0x788] sm:$0xff]
    %v786 = vld [vmem:[#allocation4 + $0x790] sm:$0xff]
    %v787 = vld [vmem:[#allocation4 + $0x798] sm:$0xff]
    %v788 = vld [vmem:[#allocation4 + $0x7a0] sm:$0xff]
    %v789 = vld [vmem:[#allocation4 + $0x7a8] sm:$0xff]
    %v790 = vld [vmem:[#allocation4 + $0x7b0] sm:$0xff]
    %v791 = vld [vmem:[#allocation4 + $0x7b8] sm:$0xff]
    %v792 = vld [vmem:[#allocation4 + $0x7c0] sm:$0xff]
    %v793 = vld [vmem:[#allocation4 + $0x7c8] sm:$0xff]
    %v794 = vld [vmem:[#allocation4 + $0x7d0] sm:$0xff]
    %v795 = vld [vmem:[#allocation4 + $0x7d8] sm:$0xff]
    %v796 = vld [vmem:[#allocation4 + $0x7e0] sm:$0xff]
    %v797 = vld [vmem:[#allocation4 + $0x7e8] sm:$0xff]
    %v798 = vld [vmem:[#allocation4 + $0x7f0] sm:$0xff]
    %v799 = vld [vmem:[#allocation4 + $0x7f8] sm:$0xff]
    %v800 = vld [vmem:[%s4] sm:$0xf]
    %v802 = vlaneseq
    %v803 = vshrl.u32 %v802, 7
    %v804 = vsub.s32 0, %v803
    %v805 = vrot.slane %v800, %v804
    %v806 = vlaneseq
    %v807 = vshrl.u32 %v806, 7
    %v808 = vsub.s32 1, %v807
    %v809 = vrot.slane %v800, %v808
    %v810 = vlaneseq
    %v811 = vshrl.u32 %v810, 7
    %v812 = vsub.s32 2, %v811
    %v813 = vrot.slane %v800, %v812
    %v814 = vlaneseq
    %v815 = vshrl.u32 %v814, 7
    %v816 = vsub.s32 3, %v815
    %v817 = vrot.slane %v800, %v816
    %v1078 = vunpack.c.l.b16 %v544
    %v1079 = vunpack.c.h.b16 %v544
    %v1080 = vunpack.c.l.b16 %v545
    %v1081 = vunpack.c.h.b16 %v545
    %v1082 = vunpack.c.l.b16 %v546
    %v1083 = vunpack.c.h.b16 %v546
    %v1084 = vunpack.c.l.b16 %v547
    %v1085 = vunpack.c.h.b16 %v547
    %v1086 = vunpack.c.l.b16 %v548
    %v1087 = vunpack.c.h.b16 %v548
    %v1088 = vunpack.c.l.b16 %v549
    %v1089 = vunpack.c.h.b16 %v549
    %v1090 = vunpack.c.l.b16 %v550
    %v1091 = vunpack.c.h.b16 %v550
    %v1092 = vunpack.c.l.b16 %v551
    %v1093 = vunpack.c.h.b16 %v551
    %v1094 = vunpack.c.l.b16 %v552
    %v1095 = vunpack.c.h.b16 %v552
    %v1096 = vunpack.c.l.b16 %v553
    %v1097 = vunpack.c.h.b16 %v553
    %v1098 = vunpack.c.l.b16 %v554
    %v1099 = vunpack.c.h.b16 %v554
    %v1100 = vunpack.c.l.b16 %v555
    %v1101 = vunpack.c.h.b16 %v555
    %v1102 = vunpack.c.l.b16 %v556
    %v1103 = vunpack.c.h.b16 %v556
    %v1104 = vunpack.c.l.b16 %v557
    %v1105 = vunpack.c.h.b16 %v557
    %v1106 = vunpack.c.l.b16 %v558
    %v1107 = vunpack.c.h.b16 %v558
    %v1108 = vunpack.c.l.b16 %v559
    %v1109 = vunpack.c.h.b16 %v559
    %v1110 = vunpack.c.l.b16 %v560
    %v1111 = vunpack.c.h.b16 %v560
    %v1112 = vunpack.c.l.b16 %v561
    %v1113 = vunpack.c.h.b16 %v561
    %v1114 = vunpack.c.l.b16 %v562
    %v1115 = vunpack.c.h.b16 %v562
    %v1116 = vunpack.c.l.b16 %v563
    %v1117 = vunpack.c.h.b16 %v563
    %v1118 = vunpack.c.l.b16 %v564
    %v1119 = vunpack.c.h.b16 %v564
    %v1120 = vunpack.c.l.b16 %v565
    %v1121 = vunpack.c.h.b16 %v565
    %v1122 = vunpack.c.l.b16 %v566
    %v1123 = vunpack.c.h.b16 %v566
    %v1124 = vunpack.c.l.b16 %v567
    %v1125 = vunpack.c.h.b16 %v567
    %v1126 = vunpack.c.l.b16 %v568
    %v1127 = vunpack.c.h.b16 %v568
    %v1128 = vunpack.c.l.b16 %v569
    %v1129 = vunpack.c.h.b16 %v569
    %v1130 = vunpack.c.l.b16 %v570
    %v1131 = vunpack.c.h.b16 %v570
    %v1132 = vunpack.c.l.b16 %v571
    %v1133 = vunpack.c.h.b16 %v571
    %v1134 = vunpack.c.l.b16 %v572
    %v1135 = vunpack.c.h.b16 %v572
    %v1136 = vunpack.c.l.b16 %v573
    %v1137 = vunpack.c.h.b16 %v573
    %v1138 = vunpack.c.l.b16 %v574
    %v1139 = vunpack.c.h.b16 %v574
    %v1140 = vunpack.c.l.b16 %v575
    %v1141 = vunpack.c.h.b16 %v575
    %v1142 = vunpack.c.l.b16 %v576
    %v1143 = vunpack.c.h.b16 %v576
    %v1144 = vunpack.c.l.b16 %v577
    %v1145 = vunpack.c.h.b16 %v577
    %v1146 = vunpack.c.l.b16 %v578
    %v1147 = vunpack.c.h.b16 %v578
    %v1148 = vunpack.c.l.b16 %v579
    %v1149 = vunpack.c.h.b16 %v579
    %v1150 = vunpack.c.l.b16 %v580
    %v1151 = vunpack.c.h.b16 %v580
    %v1152 = vunpack.c.l.b16 %v581
    %v1153 = vunpack.c.h.b16 %v581
    %v1154 = vunpack.c.l.b16 %v582
    %v1155 = vunpack.c.h.b16 %v582
    %v1156 = vunpack.c.l.b16 %v583
    %v1157 = vunpack.c.h.b16 %v583
    %v1158 = vunpack.c.l.b16 %v584
    %v1159 = vunpack.c.h.b16 %v584
    %v1160 = vunpack.c.l.b16 %v585
    %v1161 = vunpack.c.h.b16 %v585
    %v1162 = vunpack.c.l.b16 %v586
    %v1163 = vunpack.c.h.b16 %v586
    %v1164 = vunpack.c.l.b16 %v587
    %v1165 = vunpack.c.h.b16 %v587
    %v1166 = vunpack.c.l.b16 %v588
    %v1167 = vunpack.c.h.b16 %v588
    %v1168 = vunpack.c.l.b16 %v589
    %v1169 = vunpack.c.h.b16 %v589
    %v1170 = vunpack.c.l.b16 %v590
    %v1171 = vunpack.c.h.b16 %v590
    %v1172 = vunpack.c.l.b16 %v591
    %v1173 = vunpack.c.h.b16 %v591
    %v1174 = vunpack.c.l.b16 %v592
    %v1175 = vunpack.c.h.b16 %v592
    %v1176 = vunpack.c.l.b16 %v593
    %v1177 = vunpack.c.h.b16 %v593
    %v1178 = vunpack.c.l.b16 %v594
    %v1179 = vunpack.c.h.b16 %v594
    %v1180 = vunpack.c.l.b16 %v595
    %v1181 = vunpack.c.h.b16 %v595
    %v1182 = vunpack.c.l.b16 %v596
    %v1183 = vunpack.c.h.b16 %v596
    %v1184 = vunpack.c.l.b16 %v597
    %v1185 = vunpack.c.h.b16 %v597
    %v1186 = vunpack.c.l.b16 %v598
    %v1187 = vunpack.c.h.b16 %v598
    %v1188 = vunpack.c.l.b16 %v599
    %v1189 = vunpack.c.h.b16 %v599
    %v1190 = vunpack.c.l.b16 %v600
    %v1191 = vunpack.c.h.b16 %v600
    %v1192 = vunpack.c.l.b16 %v601
    %v1193 = vunpack.c.h.b16 %v601
    %v1194 = vunpack.c.l.b16 %v602
    %v1195 = vunpack.c.h.b16 %v602
    %v1196 = vunpack.c.l.b16 %v603
    %v1197 = vunpack.c.h.b16 %v603
    %v1198 = vunpack.c.l.b16 %v604
    %v1199 = vunpack.c.h.b16 %v604
    %v1200 = vunpack.c.l.b16 %v605
    %v1201 = vunpack.c.h.b16 %v605
    %v1202 = vunpack.c.l.b16 %v606
    %v1203 = vunpack.c.h.b16 %v606
    %v1204 = vunpack.c.l.b16 %v607
    %v1205 = vunpack.c.h.b16 %v607
    %v1206 = vunpack.c.l.b16 %v608
    %v1207 = vunpack.c.h.b16 %v608
    %v1208 = vunpack.c.l.b16 %v609
    %v1209 = vunpack.c.h.b16 %v609
    %v1210 = vunpack.c.l.b16 %v610
    %v1211 = vunpack.c.h.b16 %v610
    %v1212 = vunpack.c.l.b16 %v611
    %v1213 = vunpack.c.h.b16 %v611
    %v1214 = vunpack.c.l.b16 %v612
    %v1215 = vunpack.c.h.b16 %v612
    %v1216 = vunpack.c.l.b16 %v613
    %v1217 = vunpack.c.h.b16 %v613
    %v1218 = vunpack.c.l.b16 %v614
    %v1219 = vunpack.c.h.b16 %v614
    %v1220 = vunpack.c.l.b16 %v615
    %v1221 = vunpack.c.h.b16 %v615
    %v1222 = vunpack.c.l.b16 %v616
    %v1223 = vunpack.c.h.b16 %v616
    %v1224 = vunpack.c.l.b16 %v617
    %v1225 = vunpack.c.h.b16 %v617
    %v1226 = vunpack.c.l.b16 %v618
    %v1227 = vunpack.c.h.b16 %v618
    %v1228 = vunpack.c.l.b16 %v619
    %v1229 = vunpack.c.h.b16 %v619
    %v1230 = vunpack.c.l.b16 %v620
    %v1231 = vunpack.c.h.b16 %v620
    %v1232 = vunpack.c.l.b16 %v621
    %v1233 = vunpack.c.h.b16 %v621
    %v1234 = vunpack.c.l.b16 %v622
    %v1235 = vunpack.c.h.b16 %v622
    %v1236 = vunpack.c.l.b16 %v623
    %v1237 = vunpack.c.h.b16 %v623
    %v1238 = vunpack.c.l.b16 %v624
    %v1239 = vunpack.c.h.b16 %v624
    %v1240 = vunpack.c.l.b16 %v625
    %v1241 = vunpack.c.h.b16 %v625
    %v1242 = vunpack.c.l.b16 %v626
    %v1243 = vunpack.c.h.b16 %v626
    %v1244 = vunpack.c.l.b16 %v627
    %v1245 = vunpack.c.h.b16 %v627
    %v1246 = vunpack.c.l.b16 %v628
    %v1247 = vunpack.c.h.b16 %v628
    %v1248 = vunpack.c.l.b16 %v629
    %v1249 = vunpack.c.h.b16 %v629
    %v1250 = vunpack.c.l.b16 %v630
    %v1251 = vunpack.c.h.b16 %v630
    %v1252 = vunpack.c.l.b16 %v631
    %v1253 = vunpack.c.h.b16 %v631
    %v1254 = vunpack.c.l.b16 %v632
    %v1255 = vunpack.c.h.b16 %v632
    %v1256 = vunpack.c.l.b16 %v633
    %v1257 = vunpack.c.h.b16 %v633
    %v1258 = vunpack.c.l.b16 %v634
    %v1259 = vunpack.c.h.b16 %v634
    %v1260 = vunpack.c.l.b16 %v635
    %v1261 = vunpack.c.h.b16 %v635
    %v1262 = vunpack.c.l.b16 %v636
    %v1263 = vunpack.c.h.b16 %v636
    %v1264 = vunpack.c.l.b16 %v637
    %v1265 = vunpack.c.h.b16 %v637
    %v1266 = vunpack.c.l.b16 %v638
    %v1267 = vunpack.c.h.b16 %v638
    %v1268 = vunpack.c.l.b16 %v639
    %v1269 = vunpack.c.h.b16 %v639
    %v1270 = vunpack.c.l.b16 %v640
    %v1271 = vunpack.c.h.b16 %v640
    %v1272 = vunpack.c.l.b16 %v641
    %v1273 = vunpack.c.h.b16 %v641
    %v1274 = vunpack.c.l.b16 %v642
    %v1275 = vunpack.c.h.b16 %v642
    %v1276 = vunpack.c.l.b16 %v643
    %v1277 = vunpack.c.h.b16 %v643
    %v1278 = vunpack.c.l.b16 %v644
    %v1279 = vunpack.c.h.b16 %v644
    %v1280 = vunpack.c.l.b16 %v645
    %v1281 = vunpack.c.h.b16 %v645
    %v1282 = vunpack.c.l.b16 %v646
    %v1283 = vunpack.c.h.b16 %v646
    %v1284 = vunpack.c.l.b16 %v647
    %v1285 = vunpack.c.h.b16 %v647
    %v1286 = vunpack.c.l.b16 %v648
    %v1287 = vunpack.c.h.b16 %v648
    %v1288 = vunpack.c.l.b16 %v649
    %v1289 = vunpack.c.h.b16 %v649
    %v1290 = vunpack.c.l.b16 %v650
    %v1291 = vunpack.c.h.b16 %v650
    %v1292 = vunpack.c.l.b16 %v651
    %v1293 = vunpack.c.h.b16 %v651
    %v1294 = vunpack.c.l.b16 %v652
    %v1295 = vunpack.c.h.b16 %v652
    %v1296 = vunpack.c.l.b16 %v653
    %v1297 = vunpack.c.h.b16 %v653
    %v1298 = vunpack.c.l.b16 %v654
    %v1299 = vunpack.c.h.b16 %v654
    %v1300 = vunpack.c.l.b16 %v655
    %v1301 = vunpack.c.h.b16 %v655
    %v1302 = vunpack.c.l.b16 %v656
    %v1303 = vunpack.c.h.b16 %v656
    %v1304 = vunpack.c.l.b16 %v657
    %v1305 = vunpack.c.h.b16 %v657
    %v1306 = vunpack.c.l.b16 %v658
    %v1307 = vunpack.c.h.b16 %v658
    %v1308 = vunpack.c.l.b16 %v659
    %v1309 = vunpack.c.h.b16 %v659
    %v1310 = vunpack.c.l.b16 %v660
    %v1311 = vunpack.c.h.b16 %v660
    %v1312 = vunpack.c.l.b16 %v661
    %v1313 = vunpack.c.h.b16 %v661
    %v1314 = vunpack.c.l.b16 %v662
    %v1315 = vunpack.c.h.b16 %v662
    %v1316 = vunpack.c.l.b16 %v663
    %v1317 = vunpack.c.h.b16 %v663
    %v1318 = vunpack.c.l.b16 %v664
    %v1319 = vunpack.c.h.b16 %v664
    %v1320 = vunpack.c.l.b16 %v665
    %v1321 = vunpack.c.h.b16 %v665
    %v1322 = vunpack.c.l.b16 %v666
    %v1323 = vunpack.c.h.b16 %v666
    %v1324 = vunpack.c.l.b16 %v667
    %v1325 = vunpack.c.h.b16 %v667
    %v1326 = vunpack.c.l.b16 %v668
    %v1327 = vunpack.c.h.b16 %v668
    %v1328 = vunpack.c.l.b16 %v669
    %v1329 = vunpack.c.h.b16 %v669
    %v1330 = vunpack.c.l.b16 %v670
    %v1331 = vunpack.c.h.b16 %v670
    %v1332 = vunpack.c.l.b16 %v671
    %v1333 = vunpack.c.h.b16 %v671
    %v1334 = vunpack.c.l.b16 %v672
    %v1335 = vunpack.c.h.b16 %v672
    %v1336 = vunpack.c.l.b16 %v673
    %v1337 = vunpack.c.h.b16 %v673
    %v1338 = vunpack.c.l.b16 %v674
    %v1339 = vunpack.c.h.b16 %v674
    %v1340 = vunpack.c.l.b16 %v675
    %v1341 = vunpack.c.h.b16 %v675
    %v1342 = vunpack.c.l.b16 %v676
    %v1343 = vunpack.c.h.b16 %v676
    %v1344 = vunpack.c.l.b16 %v677
    %v1345 = vunpack.c.h.b16 %v677
    %v1346 = vunpack.c.l.b16 %v678
    %v1347 = vunpack.c.h.b16 %v678
    %v1348 = vunpack.c.l.b16 %v679
    %v1349 = vunpack.c.h.b16 %v679
    %v1350 = vunpack.c.l.b16 %v680
    %v1351 = vunpack.c.h.b16 %v680
    %v1352 = vunpack.c.l.b16 %v681
    %v1353 = vunpack.c.h.b16 %v681
    %v1354 = vunpack.c.l.b16 %v682
    %v1355 = vunpack.c.h.b16 %v682
    %v1356 = vunpack.c.l.b16 %v683
    %v1357 = vunpack.c.h.b16 %v683
    %v1358 = vunpack.c.l.b16 %v684
    %v1359 = vunpack.c.h.b16 %v684
    %v1360 = vunpack.c.l.b16 %v685
    %v1361 = vunpack.c.h.b16 %v685
    %v1362 = vunpack.c.l.b16 %v686
    %v1363 = vunpack.c.h.b16 %v686
    %v1364 = vunpack.c.l.b16 %v687
    %v1365 = vunpack.c.h.b16 %v687
    %v1366 = vunpack.c.l.b16 %v688
    %v1367 = vunpack.c.h.b16 %v688
    %v1368 = vunpack.c.l.b16 %v689
    %v1369 = vunpack.c.h.b16 %v689
    %v1370 = vunpack.c.l.b16 %v690
    %v1371 = vunpack.c.h.b16 %v690
    %v1372 = vunpack.c.l.b16 %v691
    %v1373 = vunpack.c.h.b16 %v691
    %v1374 = vunpack.c.l.b16 %v692
    %v1375 = vunpack.c.h.b16 %v692
    %v1376 = vunpack.c.l.b16 %v693
    %v1377 = vunpack.c.h.b16 %v693
    %v1378 = vunpack.c.l.b16 %v694
    %v1379 = vunpack.c.h.b16 %v694
    %v1380 = vunpack.c.l.b16 %v695
    %v1381 = vunpack.c.h.b16 %v695
    %v1382 = vunpack.c.l.b16 %v696
    %v1383 = vunpack.c.h.b16 %v696
    %v1384 = vunpack.c.l.b16 %v697
    %v1385 = vunpack.c.h.b16 %v697
    %v1386 = vunpack.c.l.b16 %v698
    %v1387 = vunpack.c.h.b16 %v698
    %v1388 = vunpack.c.l.b16 %v699
    %v1389 = vunpack.c.h.b16 %v699
    %v1390 = vunpack.c.l.b16 %v700
    %v1391 = vunpack.c.h.b16 %v700
    %v1392 = vunpack.c.l.b16 %v701
    %v1393 = vunpack.c.h.b16 %v701
    %v1394 = vunpack.c.l.b16 %v702
    %v1395 = vunpack.c.h.b16 %v702
    %v1396 = vunpack.c.l.b16 %v703
    %v1397 = vunpack.c.h.b16 %v703
    %v1398 = vunpack.c.l.b16 %v704
    %v1399 = vunpack.c.h.b16 %v704
    %v1400 = vunpack.c.l.b16 %v705
    %v1401 = vunpack.c.h.b16 %v705
    %v1402 = vunpack.c.l.b16 %v706
    %v1403 = vunpack.c.h.b16 %v706
    %v1404 = vunpack.c.l.b16 %v707
    %v1405 = vunpack.c.h.b16 %v707
    %v1406 = vunpack.c.l.b16 %v708
    %v1407 = vunpack.c.h.b16 %v708
    %v1408 = vunpack.c.l.b16 %v709
    %v1409 = vunpack.c.h.b16 %v709
    %v1410 = vunpack.c.l.b16 %v710
    %v1411 = vunpack.c.h.b16 %v710
    %v1412 = vunpack.c.l.b16 %v711
    %v1413 = vunpack.c.h.b16 %v711
    %v1414 = vunpack.c.l.b16 %v712
    %v1415 = vunpack.c.h.b16 %v712
    %v1416 = vunpack.c.l.b16 %v713
    %v1417 = vunpack.c.h.b16 %v713
    %v1418 = vunpack.c.l.b16 %v714
    %v1419 = vunpack.c.h.b16 %v714
    %v1420 = vunpack.c.l.b16 %v715
    %v1421 = vunpack.c.h.b16 %v715
    %v1422 = vunpack.c.l.b16 %v716
    %v1423 = vunpack.c.h.b16 %v716
    %v1424 = vunpack.c.l.b16 %v717
    %v1425 = vunpack.c.h.b16 %v717
    %v1426 = vunpack.c.l.b16 %v718
    %v1427 = vunpack.c.h.b16 %v718
    %v1428 = vunpack.c.l.b16 %v719
    %v1429 = vunpack.c.h.b16 %v719
    %v1430 = vunpack.c.l.b16 %v720
    %v1431 = vunpack.c.h.b16 %v720
    %v1432 = vunpack.c.l.b16 %v721
    %v1433 = vunpack.c.h.b16 %v721
    %v1434 = vunpack.c.l.b16 %v722
    %v1435 = vunpack.c.h.b16 %v722
    %v1436 = vunpack.c.l.b16 %v723
    %v1437 = vunpack.c.h.b16 %v723
    %v1438 = vunpack.c.l.b16 %v724
    %v1439 = vunpack.c.h.b16 %v724
    %v1440 = vunpack.c.l.b16 %v725
    %v1441 = vunpack.c.h.b16 %v725
    %v1442 = vunpack.c.l.b16 %v726
    %v1443 = vunpack.c.h.b16 %v726
    %v1444 = vunpack.c.l.b16 %v727
    %v1445 = vunpack.c.h.b16 %v727
    %v1446 = vunpack.c.l.b16 %v728
    %v1447 = vunpack.c.h.b16 %v728
    %v1448 = vunpack.c.l.b16 %v729
    %v1449 = vunpack.c.h.b16 %v729
    %v1450 = vunpack.c.l.b16 %v730
    %v1451 = vunpack.c.h.b16 %v730
    %v1452 = vunpack.c.l.b16 %v731
    %v1453 = vunpack.c.h.b16 %v731
    %v1454 = vunpack.c.l.b16 %v732
    %v1455 = vunpack.c.h.b16 %v732
    %v1456 = vunpack.c.l.b16 %v733
    %v1457 = vunpack.c.h.b16 %v733
    %v1458 = vunpack.c.l.b16 %v734
    %v1459 = vunpack.c.h.b16 %v734
    %v1460 = vunpack.c.l.b16 %v735
    %v1461 = vunpack.c.h.b16 %v735
    %v1462 = vunpack.c.l.b16 %v736
    %v1463 = vunpack.c.h.b16 %v736
    %v1464 = vunpack.c.l.b16 %v737
    %v1465 = vunpack.c.h.b16 %v737
    %v1466 = vunpack.c.l.b16 %v738
    %v1467 = vunpack.c.h.b16 %v738
    %v1468 = vunpack.c.l.b16 %v739
    %v1469 = vunpack.c.h.b16 %v739
    %v1470 = vunpack.c.l.b16 %v740
    %v1471 = vunpack.c.h.b16 %v740
    %v1472 = vunpack.c.l.b16 %v741
    %v1473 = vunpack.c.h.b16 %v741
    %v1474 = vunpack.c.l.b16 %v742
    %v1475 = vunpack.c.h.b16 %v742
    %v1476 = vunpack.c.l.b16 %v743
    %v1477 = vunpack.c.h.b16 %v743
    %v1478 = vunpack.c.l.b16 %v744
    %v1479 = vunpack.c.h.b16 %v744
    %v1480 = vunpack.c.l.b16 %v745
    %v1481 = vunpack.c.h.b16 %v745
    %v1482 = vunpack.c.l.b16 %v746
    %v1483 = vunpack.c.h.b16 %v746
    %v1484 = vunpack.c.l.b16 %v747
    %v1485 = vunpack.c.h.b16 %v747
    %v1486 = vunpack.c.l.b16 %v748
    %v1487 = vunpack.c.h.b16 %v748
    %v1488 = vunpack.c.l.b16 %v749
    %v1489 = vunpack.c.h.b16 %v749
    %v1490 = vunpack.c.l.b16 %v750
    %v1491 = vunpack.c.h.b16 %v750
    %v1492 = vunpack.c.l.b16 %v751
    %v1493 = vunpack.c.h.b16 %v751
    %v1494 = vunpack.c.l.b16 %v752
    %v1495 = vunpack.c.h.b16 %v752
    %v1496 = vunpack.c.l.b16 %v753
    %v1497 = vunpack.c.h.b16 %v753
    %v1498 = vunpack.c.l.b16 %v754
    %v1499 = vunpack.c.h.b16 %v754
    %v1500 = vunpack.c.l.b16 %v755
    %v1501 = vunpack.c.h.b16 %v755
    %v1502 = vunpack.c.l.b16 %v756
    %v1503 = vunpack.c.h.b16 %v756
    %v1504 = vunpack.c.l.b16 %v757
    %v1505 = vunpack.c.h.b16 %v757
    %v1506 = vunpack.c.l.b16 %v758
    %v1507 = vunpack.c.h.b16 %v758
    %v1508 = vunpack.c.l.b16 %v759
    %v1509 = vunpack.c.h.b16 %v759
    %v1510 = vunpack.c.l.b16 %v760
    %v1511 = vunpack.c.h.b16 %v760
    %v1512 = vunpack.c.l.b16 %v761
    %v1513 = vunpack.c.h.b16 %v761
    %v1514 = vunpack.c.l.b16 %v762
    %v1515 = vunpack.c.h.b16 %v762
    %v1516 = vunpack.c.l.b16 %v763
    %v1517 = vunpack.c.h.b16 %v763
    %v1518 = vunpack.c.l.b16 %v764
    %v1519 = vunpack.c.h.b16 %v764
    %v1520 = vunpack.c.l.b16 %v765
    %v1521 = vunpack.c.h.b16 %v765
    %v1522 = vunpack.c.l.b16 %v766
    %v1523 = vunpack.c.h.b16 %v766
    %v1524 = vunpack.c.l.b16 %v767
    %v1525 = vunpack.c.h.b16 %v767
    %v1526 = vunpack.c.l.b16 %v768
    %v1527 = vunpack.c.h.b16 %v768
    %v1528 = vunpack.c.l.b16 %v769
    %v1529 = vunpack.c.h.b16 %v769
    %v1530 = vunpack.c.l.b16 %v770
    %v1531 = vunpack.c.h.b16 %v770
    %v1532 = vunpack.c.l.b16 %v771
    %v1533 = vunpack.c.h.b16 %v771
    %v1534 = vunpack.c.l.b16 %v772
    %v1535 = vunpack.c.h.b16 %v772
    %v1536 = vunpack.c.l.b16 %v773
    %v1537 = vunpack.c.h.b16 %v773
    %v1538 = vunpack.c.l.b16 %v774
    %v1539 = vunpack.c.h.b16 %v774
    %v1540 = vunpack.c.l.b16 %v775
    %v1541 = vunpack.c.h.b16 %v775
    %v1542 = vunpack.c.l.b16 %v776
    %v1543 = vunpack.c.h.b16 %v776
    %v1544 = vunpack.c.l.b16 %v777
    %v1545 = vunpack.c.h.b16 %v777
    %v1546 = vunpack.c.l.b16 %v778
    %v1547 = vunpack.c.h.b16 %v778
    %v1548 = vunpack.c.l.b16 %v779
    %v1549 = vunpack.c.h.b16 %v779
    %v1550 = vunpack.c.l.b16 %v780
    %v1551 = vunpack.c.h.b16 %v780
    %v1552 = vunpack.c.l.b16 %v781
    %v1553 = vunpack.c.h.b16 %v781
    %v1554 = vunpack.c.l.b16 %v782
    %v1555 = vunpack.c.h.b16 %v782
    %v1556 = vunpack.c.l.b16 %v783
    %v1557 = vunpack.c.h.b16 %v783
    %v1558 = vunpack.c.l.b16 %v784
    %v1559 = vunpack.c.h.b16 %v784
    %v1560 = vunpack.c.l.b16 %v785
    %v1561 = vunpack.c.h.b16 %v785
    %v1562 = vunpack.c.l.b16 %v786
    %v1563 = vunpack.c.h.b16 %v786
    %v1564 = vunpack.c.l.b16 %v787
    %v1565 = vunpack.c.h.b16 %v787
    %v1566 = vunpack.c.l.b16 %v788
    %v1567 = vunpack.c.h.b16 %v788
    %v1568 = vunpack.c.l.b16 %v789
    %v1569 = vunpack.c.h.b16 %v789
    %v1570 = vunpack.c.l.b16 %v790
    %v1571 = vunpack.c.h.b16 %v790
    %v1572 = vunpack.c.l.b16 %v791
    %v1573 = vunpack.c.h.b16 %v791
    %v1574 = vunpack.c.l.b16 %v792
    %v1575 = vunpack.c.h.b16 %v792
    %v1576 = vunpack.c.l.b16 %v793
    %v1577 = vunpack.c.h.b16 %v793
    %v1578 = vunpack.c.l.b16 %v794
    %v1579 = vunpack.c.h.b16 %v794
    %v1580 = vunpack.c.l.b16 %v795
    %v1581 = vunpack.c.h.b16 %v795
    %v1582 = vunpack.c.l.b16 %v796
    %v1583 = vunpack.c.h.b16 %v796
    %v1584 = vunpack.c.l.b16 %v797
    %v1585 = vunpack.c.h.b16 %v797
    %v1586 = vunpack.c.l.b16 %v798
    %v1587 = vunpack.c.h.b16 %v798
    %v1588 = vunpack.c.l.b16 %v799
    %v1589 = vunpack.c.h.b16 %v799
    %v1590 = vpack.c.b16 %v1082, %v1078
    %v1591 = vpack.c.b16 %v1083, %v1079
    %v1592 = vpack.c.b16 %v1084, %v1080
    %v1593 = vpack.c.b16 %v1085, %v1081
    %v1594 = vpack.c.b16 %v1090, %v1086
    %v1595 = vpack.c.b16 %v1091, %v1087
    %v1596 = vpack.c.b16 %v1092, %v1088
    %v1597 = vpack.c.b16 %v1093, %v1089
    %v1598 = vpack.c.b16 %v1098, %v1094
    %v1599 = vpack.c.b16 %v1099, %v1095
    %v1600 = vpack.c.b16 %v1100, %v1096
    %v1601 = vpack.c.b16 %v1101, %v1097
    %v1602 = vpack.c.b16 %v1106, %v1102
    %v1603 = vpack.c.b16 %v1107, %v1103
    %v1604 = vpack.c.b16 %v1108, %v1104
    %v1605 = vpack.c.b16 %v1109, %v1105
    %v1606 = vpack.c.b16 %v1114, %v1110
    %v1607 = vpack.c.b16 %v1115, %v1111
    %v1608 = vpack.c.b16 %v1116, %v1112
    %v1609 = vpack.c.b16 %v1117, %v1113
    %v1610 = vpack.c.b16 %v1122, %v1118
    %v1611 = vpack.c.b16 %v1123, %v1119
    %v1612 = vpack.c.b16 %v1124, %v1120
    %v1613 = vpack.c.b16 %v1125, %v1121
    %v1614 = vpack.c.b16 %v1130, %v1126
    %v1615 = vpack.c.b16 %v1131, %v1127
    %v1616 = vpack.c.b16 %v1132, %v1128
    %v1617 = vpack.c.b16 %v1133, %v1129
    %v1618 = vpack.c.b16 %v1138, %v1134
    %v1619 = vpack.c.b16 %v1139, %v1135
    %v1620 = vpack.c.b16 %v1140, %v1136
    %v1621 = vpack.c.b16 %v1141, %v1137
    %v1622 = vpack.c.b16 %v1146, %v1142
    %v1623 = vpack.c.b16 %v1147, %v1143
    %v1624 = vpack.c.b16 %v1148, %v1144
    %v1625 = vpack.c.b16 %v1149, %v1145
    %v1626 = vpack.c.b16 %v1154, %v1150
    %v1627 = vpack.c.b16 %v1155, %v1151
    %v1628 = vpack.c.b16 %v1156, %v1152
    %v1629 = vpack.c.b16 %v1157, %v1153
    %v1630 = vpack.c.b16 %v1162, %v1158
    %v1631 = vpack.c.b16 %v1163, %v1159
    %v1632 = vpack.c.b16 %v1164, %v1160
    %v1633 = vpack.c.b16 %v1165, %v1161
    %v1634 = vpack.c.b16 %v1170, %v1166
    %v1635 = vpack.c.b16 %v1171, %v1167
    %v1636 = vpack.c.b16 %v1172, %v1168
    %v1637 = vpack.c.b16 %v1173, %v1169
    %v1638 = vpack.c.b16 %v1178, %v1174
    %v1639 = vpack.c.b16 %v1179, %v1175
    %v1640 = vpack.c.b16 %v1180, %v1176
    %v1641 = vpack.c.b16 %v1181, %v1177
    %v1642 = vpack.c.b16 %v1186, %v1182
    %v1643 = vpack.c.b16 %v1187, %v1183
    %v1644 = vpack.c.b16 %v1188, %v1184
    %v1645 = vpack.c.b16 %v1189, %v1185
    %v1646 = vpack.c.b16 %v1194, %v1190
    %v1647 = vpack.c.b16 %v1195, %v1191
    %v1648 = vpack.c.b16 %v1196, %v1192
    %v1649 = vpack.c.b16 %v1197, %v1193
    %v1650 = vpack.c.b16 %v1202, %v1198
    %v1651 = vpack.c.b16 %v1203, %v1199
    %v1652 = vpack.c.b16 %v1204, %v1200
    %v1653 = vpack.c.b16 %v1205, %v1201
    %v1654 = vpack.c.b16 %v1210, %v1206
    %v1655 = vpack.c.b16 %v1211, %v1207
    %v1656 = vpack.c.b16 %v1212, %v1208
    %v1657 = vpack.c.b16 %v1213, %v1209
    %v1658 = vpack.c.b16 %v1218, %v1214
    %v1659 = vpack.c.b16 %v1219, %v1215
    %v1660 = vpack.c.b16 %v1220, %v1216
    %v1661 = vpack.c.b16 %v1221, %v1217
    %v1662 = vpack.c.b16 %v1226, %v1222
    %v1663 = vpack.c.b16 %v1227, %v1223
    %v1664 = vpack.c.b16 %v1228, %v1224
    %v1665 = vpack.c.b16 %v1229, %v1225
    %v1666 = vpack.c.b16 %v1234, %v1230
    %v1667 = vpack.c.b16 %v1235, %v1231
    %v1668 = vpack.c.b16 %v1236, %v1232
    %v1669 = vpack.c.b16 %v1237, %v1233
    %v1670 = vpack.c.b16 %v1242, %v1238
    %v1671 = vpack.c.b16 %v1243, %v1239
    %v1672 = vpack.c.b16 %v1244, %v1240
    %v1673 = vpack.c.b16 %v1245, %v1241
    %v1674 = vpack.c.b16 %v1250, %v1246
    %v1675 = vpack.c.b16 %v1251, %v1247
    %v1676 = vpack.c.b16 %v1252, %v1248
    %v1677 = vpack.c.b16 %v1253, %v1249
    %v1678 = vpack.c.b16 %v1258, %v1254
    %v1679 = vpack.c.b16 %v1259, %v1255
    %v1680 = vpack.c.b16 %v1260, %v1256
    %v1681 = vpack.c.b16 %v1261, %v1257
    %v1682 = vpack.c.b16 %v1266, %v1262
    %v1683 = vpack.c.b16 %v1267, %v1263
    %v1684 = vpack.c.b16 %v1268, %v1264
    %v1685 = vpack.c.b16 %v1269, %v1265
    %v1686 = vpack.c.b16 %v1274, %v1270
    %v1687 = vpack.c.b16 %v1275, %v1271
    %v1688 = vpack.c.b16 %v1276, %v1272
    %v1689 = vpack.c.b16 %v1277, %v1273
    %v1690 = vpack.c.b16 %v1282, %v1278
    %v1691 = vpack.c.b16 %v1283, %v1279
    %v1692 = vpack.c.b16 %v1284, %v1280
    %v1693 = vpack.c.b16 %v1285, %v1281
    %v1694 = vpack.c.b16 %v1290, %v1286
    %v1695 = vpack.c.b16 %v1291, %v1287
    %v1696 = vpack.c.b16 %v1292, %v1288
    %v1697 = vpack.c.b16 %v1293, %v1289
    %v1698 = vpack.c.b16 %v1298, %v1294
    %v1699 = vpack.c.b16 %v1299, %v1295
    %v1700 = vpack.c.b16 %v1300, %v1296
    %v1701 = vpack.c.b16 %v1301, %v1297
    %v1702 = vpack.c.b16 %v1306, %v1302
    %v1703 = vpack.c.b16 %v1307, %v1303
    %v1704 = vpack.c.b16 %v1308, %v1304
    %v1705 = vpack.c.b16 %v1309, %v1305
    %v1706 = vpack.c.b16 %v1314, %v1310
    %v1707 = vpack.c.b16 %v1315, %v1311
    %v1708 = vpack.c.b16 %v1316, %v1312
    %v1709 = vpack.c.b16 %v1317, %v1313
    %v1710 = vpack.c.b16 %v1322, %v1318
    %v1711 = vpack.c.b16 %v1323, %v1319
    %v1712 = vpack.c.b16 %v1324, %v1320
    %v1713 = vpack.c.b16 %v1325, %v1321
    %v1714 = vpack.c.b16 %v1330, %v1326
    %v1715 = vpack.c.b16 %v1331, %v1327
    %v1716 = vpack.c.b16 %v1332, %v1328
    %v1717 = vpack.c.b16 %v1333, %v1329
    %v1718 = vpack.c.b16 %v1338, %v1334
    %v1719 = vpack.c.b16 %v1339, %v1335
    %v1720 = vpack.c.b16 %v1340, %v1336
    %v1721 = vpack.c.b16 %v1341, %v1337
    %v1722 = vpack.c.b16 %v1346, %v1342
    %v1723 = vpack.c.b16 %v1347, %v1343
    %v1724 = vpack.c.b16 %v1348, %v1344
    %v1725 = vpack.c.b16 %v1349, %v1345
    %v1726 = vpack.c.b16 %v1354, %v1350
    %v1727 = vpack.c.b16 %v1355, %v1351
    %v1728 = vpack.c.b16 %v1356, %v1352
    %v1729 = vpack.c.b16 %v1357, %v1353
    %v1730 = vpack.c.b16 %v1362, %v1358
    %v1731 = vpack.c.b16 %v1363, %v1359
    %v1732 = vpack.c.b16 %v1364, %v1360
    %v1733 = vpack.c.b16 %v1365, %v1361
    %v1734 = vpack.c.b16 %v1370, %v1366
    %v1735 = vpack.c.b16 %v1371, %v1367
    %v1736 = vpack.c.b16 %v1372, %v1368
    %v1737 = vpack.c.b16 %v1373, %v1369
    %v1738 = vpack.c.b16 %v1378, %v1374
    %v1739 = vpack.c.b16 %v1379, %v1375
    %v1740 = vpack.c.b16 %v1380, %v1376
    %v1741 = vpack.c.b16 %v1381, %v1377
    %v1742 = vpack.c.b16 %v1386, %v1382
    %v1743 = vpack.c.b16 %v1387, %v1383
    %v1744 = vpack.c.b16 %v1388, %v1384
    %v1745 = vpack.c.b16 %v1389, %v1385
    %v1746 = vpack.c.b16 %v1394, %v1390
    %v1747 = vpack.c.b16 %v1395, %v1391
    %v1748 = vpack.c.b16 %v1396, %v1392
    %v1749 = vpack.c.b16 %v1397, %v1393
    %v1750 = vpack.c.b16 %v1402, %v1398
    %v1751 = vpack.c.b16 %v1403, %v1399
    %v1752 = vpack.c.b16 %v1404, %v1400
    %v1753 = vpack.c.b16 %v1405, %v1401
    %v1754 = vpack.c.b16 %v1410, %v1406
    %v1755 = vpack.c.b16 %v1411, %v1407
    %v1756 = vpack.c.b16 %v1412, %v1408
    %v1757 = vpack.c.b16 %v1413, %v1409
    %v1758 = vpack.c.b16 %v1418, %v1414
    %v1759 = vpack.c.b16 %v1419, %v1415
    %v1760 = vpack.c.b16 %v1420, %v1416
    %v1761 = vpack.c.b16 %v1421, %v1417
    %v1762 = vpack.c.b16 %v1426, %v1422
    %v1763 = vpack.c.b16 %v1427, %v1423
    %v1764 = vpack.c.b16 %v1428, %v1424
    %v1765 = vpack.c.b16 %v1429, %v1425
    %v1766 = vpack.c.b16 %v1434, %v1430
    %v1767 = vpack.c.b16 %v1435, %v1431
    %v1768 = vpack.c.b16 %v1436, %v1432
    %v1769 = vpack.c.b16 %v1437, %v1433
    %v1770 = vpack.c.b16 %v1442, %v1438
    %v1771 = vpack.c.b16 %v1443, %v1439
    %v1772 = vpack.c.b16 %v1444, %v1440
    %v1773 = vpack.c.b16 %v1445, %v1441
    %v1774 = vpack.c.b16 %v1450, %v1446
    %v1775 = vpack.c.b16 %v1451, %v1447
    %v1776 = vpack.c.b16 %v1452, %v1448
    %v1777 = vpack.c.b16 %v1453, %v1449
    %v1778 = vpack.c.b16 %v1458, %v1454
    %v1779 = vpack.c.b16 %v1459, %v1455
    %v1780 = vpack.c.b16 %v1460, %v1456
    %v1781 = vpack.c.b16 %v1461, %v1457
    %v1782 = vpack.c.b16 %v1466, %v1462
    %v1783 = vpack.c.b16 %v1467, %v1463
    %v1784 = vpack.c.b16 %v1468, %v1464
    %v1785 = vpack.c.b16 %v1469, %v1465
    %v1786 = vpack.c.b16 %v1474, %v1470
    %v1787 = vpack.c.b16 %v1475, %v1471
    %v1788 = vpack.c.b16 %v1476, %v1472
    %v1789 = vpack.c.b16 %v1477, %v1473
    %v1790 = vpack.c.b16 %v1482, %v1478
    %v1791 = vpack.c.b16 %v1483, %v1479
    %v1792 = vpack.c.b16 %v1484, %v1480
    %v1793 = vpack.c.b16 %v1485, %v1481
    %v1794 = vpack.c.b16 %v1490, %v1486
    %v1795 = vpack.c.b16 %v1491, %v1487
    %v1796 = vpack.c.b16 %v1492, %v1488
    %v1797 = vpack.c.b16 %v1493, %v1489
    %v1798 = vpack.c.b16 %v1498, %v1494
    %v1799 = vpack.c.b16 %v1499, %v1495
    %v1800 = vpack.c.b16 %v1500, %v1496
    %v1801 = vpack.c.b16 %v1501, %v1497
    %v1802 = vpack.c.b16 %v1506, %v1502
    %v1803 = vpack.c.b16 %v1507, %v1503
    %v1804 = vpack.c.b16 %v1508, %v1504
    %v1805 = vpack.c.b16 %v1509, %v1505
    %v1806 = vpack.c.b16 %v1514, %v1510
    %v1807 = vpack.c.b16 %v1515, %v1511
    %v1808 = vpack.c.b16 %v1516, %v1512
    %v1809 = vpack.c.b16 %v1517, %v1513
    %v1810 = vpack.c.b16 %v1522, %v1518
    %v1811 = vpack.c.b16 %v1523, %v1519
    %v1812 = vpack.c.b16 %v1524, %v1520
    %v1813 = vpack.c.b16 %v1525, %v1521
    %v1814 = vpack.c.b16 %v1530, %v1526
    %v1815 = vpack.c.b16 %v1531, %v1527
    %v1816 = vpack.c.b16 %v1532, %v1528
    %v1817 = vpack.c.b16 %v1533, %v1529
    %v1818 = vpack.c.b16 %v1538, %v1534
    %v1819 = vpack.c.b16 %v1539, %v1535
    %v1820 = vpack.c.b16 %v1540, %v1536
    %v1821 = vpack.c.b16 %v1541, %v1537
    %v1822 = vpack.c.b16 %v1546, %v1542
    %v1823 = vpack.c.b16 %v1547, %v1543
    %v1824 = vpack.c.b16 %v1548, %v1544
    %v1825 = vpack.c.b16 %v1549, %v1545
    %v1826 = vpack.c.b16 %v1554, %v1550
    %v1827 = vpack.c.b16 %v1555, %v1551
    %v1828 = vpack.c.b16 %v1556, %v1552
    %v1829 = vpack.c.b16 %v1557, %v1553
    %v1830 = vpack.c.b16 %v1562, %v1558
    %v1831 = vpack.c.b16 %v1563, %v1559
    %v1832 = vpack.c.b16 %v1564, %v1560
    %v1833 = vpack.c.b16 %v1565, %v1561
    %v1834 = vpack.c.b16 %v1570, %v1566
    %v1835 = vpack.c.b16 %v1571, %v1567
    %v1836 = vpack.c.b16 %v1572, %v1568
    %v1837 = vpack.c.b16 %v1573, %v1569
    %v1838 = vpack.c.b16 %v1578, %v1574
    %v1839 = vpack.c.b16 %v1579, %v1575
    %v1840 = vpack.c.b16 %v1580, %v1576
    %v1841 = vpack.c.b16 %v1581, %v1577
    %v1842 = vpack.c.b16 %v1586, %v1582
    %v1843 = vpack.c.b16 %v1587, %v1583
    %v1844 = vpack.c.b16 %v1588, %v1584
    %v1845 = vpack.c.b16 %v1589, %v1585
    %2102 = vmatprep.subr.bf16.mxu0 %v1591
    %2103 = vmatpush1.bf16.msra.mxu0 %v1590
    %2104 = vmatprep.subr.bf16.mxu0 %v1595
    %2105 = vmatpush1.bf16.msra.mxu0 %v1594
    %2106 = vmatprep.subr.bf16.mxu0 %v1599
    %2107 = vmatpush1.bf16.msra.mxu0 %v1598
    %2108 = vmatprep.subr.bf16.mxu0 %v1603
    %2109 = vmatpush1.bf16.msra.mxu0 %v1602
    %2110 = vmatprep.subr.bf16.mxu0 %v1607
    %2111 = vmatpush1.bf16.msra.mxu0 %v1606
    %2112 = vmatprep.subr.bf16.mxu0 %v1611
    %2113 = vmatpush1.bf16.msra.mxu0 %v1610
    %2114 = vmatprep.subr.bf16.mxu0 %v1615
    %2115 = vmatpush1.bf16.msra.mxu0 %v1614
    %2116 = vmatprep.subr.bf16.mxu0 %v1619
    %2117 = vmatpush1.bf16.msra.mxu0 %v1618
    %2118 = vmatprep.subr.bf16.mxu0 %v1623
    %2119 = vmatpush1.bf16.msra.mxu0 %v1622
    %2120 = vmatprep.subr.bf16.mxu0 %v1627
    %2121 = vmatpush1.bf16.msra.mxu0 %v1626
    %2122 = vmatprep.subr.bf16.mxu0 %v1631
    %2123 = vmatpush1.bf16.msra.mxu0 %v1630
    %2124 = vmatprep.subr.bf16.mxu0 %v1635
    %2125 = vmatpush1.bf16.msra.mxu0 %v1634
    %2126 = vmatprep.subr.bf16.mxu0 %v1639
    %2127 = vmatpush1.bf16.msra.mxu0 %v1638
    %2128 = vmatprep.subr.bf16.mxu0 %v1643
    %2129 = vmatpush1.bf16.msra.mxu0 %v1642
    %2130 = vmatprep.subr.bf16.mxu0 %v1647
    %2131 = vmatpush1.bf16.msra.mxu0 %v1646
    %2132 = vmatprep.subr.bf16.mxu0 %v1651
    %2133 = vmatpush1.bf16.msra.mxu0 %v1650
    %2134 = vmatprep.mubr.bf16.mxu0 %v537
    %2135 = vmatmul.mubr.bf16.gmra.mrb[0].mxu0 %v536
    %v2136 = vpop.f32.mrb[0].mxu0
    %v2137 = vadd.f32 %v805, %v2136
    %v2138 = vpop.f32.mrb[0].mxu0
    %v2139 = vadd.f32 %v809, %v2138
    %v2140 = vpop.f32.mrb[0].mxu0
    %v2141 = vpop.f32.mrb[0].mxu0
    %2142 = vdwg.mxu0
    %2143 = vmatprep.subr.bf16.mxu0 %v1655
    %2144 = vmatpush1.bf16.msra.mxu0 %v1654
    %2145 = vmatprep.subr.bf16.mxu0 %v1659
    %2146 = vmatpush1.bf16.msra.mxu0 %v1658
    %2147 = vmatprep.subr.bf16.mxu0 %v1663
    %2148 = vmatpush1.bf16.msra.mxu0 %v1662
    %2149 = vmatprep.subr.bf16.mxu0 %v1667
    %2150 = vmatpush1.bf16.msra.mxu0 %v1666
    %2151 = vmatprep.subr.bf16.mxu0 %v1671
    %2152 = vmatpush1.bf16.msra.mxu0 %v1670
    %2153 = vmatprep.subr.bf16.mxu0 %v1675
    %2154 = vmatpush1.bf16.msra.mxu0 %v1674
    %2155 = vmatprep.subr.bf16.mxu0 %v1679
    %2156 = vmatpush1.bf16.msra.mxu0 %v1678
    %2157 = vmatprep.subr.bf16.mxu0 %v1683
    %2158 = vmatpush1.bf16.msra.mxu0 %v1682
    %2159 = vmatprep.subr.bf16.mxu0 %v1687
    %2160 = vmatpush1.bf16.msra.mxu0 %v1686
    %2161 = vmatprep.subr.bf16.mxu0 %v1691
    %2162 = vmatpush1.bf16.msra.mxu0 %v1690
    %2163 = vmatprep.subr.bf16.mxu0 %v1695
    %2164 = vmatpush1.bf16.msra.mxu0 %v1694
    %2165 = vmatprep.subr.bf16.mxu0 %v1699
    %2166 = vmatpush1.bf16.msra.mxu0 %v1698
    %2167 = vmatprep.subr.bf16.mxu0 %v1703
    %2168 = vmatpush1.bf16.msra.mxu0 %v1702
    %2169 = vmatprep.subr.bf16.mxu0 %v1707
    %2170 = vmatpush1.bf16.msra.mxu0 %v1706
    %2171 = vmatprep.subr.bf16.mxu0 %v1711
    %2172 = vmatpush1.bf16.msra.mxu0 %v1710
    %2173 = vmatprep.subr.bf16.mxu0 %v1715
    %2174 = vmatpush1.bf16.msra.mxu0 %v1714
    %2175 = vmatprep.mubr.bf16.mxu0 %v539
    %2176 = vmatmul.mubr.bf16.gmra.mrb[0].mxu0 %v538
    %v2177 = vpop.f32.mrb[0].mxu0
    %v2178 = vadd.f32 %v2137, %v2177
    %v2179 = vpop.f32.mrb[0].mxu0
    %v2180 = vadd.f32 %v2139, %v2179
    %v2181 = vpop.f32.mrb[0].mxu0
    %v2182 = vpop.f32.mrb[0].mxu0
    %2183 = vdwg.mxu0
    %2184 = vmatprep.subr.bf16.mxu0 %v1719
    %2185 = vmatpush1.bf16.msra.mxu0 %v1718
    %2186 = vmatprep.subr.bf16.mxu0 %v1723
    %2187 = vmatpush1.bf16.msra.mxu0 %v1722
    %2188 = vmatprep.subr.bf16.mxu0 %v1727
    %2189 = vmatpush1.bf16.msra.mxu0 %v1726
    %2190 = vmatprep.subr.bf16.mxu0 %v1731
    %2191 = vmatpush1.bf16.msra.mxu0 %v1730
    %2192 = vmatprep.subr.bf16.mxu0 %v1735
    %2193 = vmatpush1.bf16.msra.mxu0 %v1734
    %2194 = vmatprep.subr.bf16.mxu0 %v1739
    %2195 = vmatpush1.bf16.msra.mxu0 %v1738
    %2196 = vmatprep.subr.bf16.mxu0 %v1743
    %2197 = vmatpush1.bf16.msra.mxu0 %v1742
    %2198 = vmatprep.subr.bf16.mxu0 %v1747
    %2199 = vmatpush1.bf16.msra.mxu0 %v1746
    %2200 = vmatprep.subr.bf16.mxu0 %v1751
    %2201 = vmatpush1.bf16.msra.mxu0 %v1750
    %2202 = vmatprep.subr.bf16.mxu0 %v1755
    %2203 = vmatpush1.bf16.msra.mxu0 %v1754
    %2204 = vmatprep.subr.bf16.mxu0 %v1759
    %2205 = vmatpush1.bf16.msra.mxu0 %v1758
    %2206 = vmatprep.subr.bf16.mxu0 %v1763
    %2207 = vmatpush1.bf16.msra.mxu0 %v1762
    %2208 = vmatprep.subr.bf16.mxu0 %v1767
    %2209 = vmatpush1.bf16.msra.mxu0 %v1766
    %2210 = vmatprep.subr.bf16.mxu0 %v1771
    %2211 = vmatpush1.bf16.msra.mxu0 %v1770
    %2212 = vmatprep.subr.bf16.mxu0 %v1775
    %2213 = vmatpush1.bf16.msra.mxu0 %v1774
    %2214 = vmatprep.subr.bf16.mxu0 %v1779
    %2215 = vmatpush1.bf16.msra.mxu0 %v1778
    %2216 = vmatprep.mubr.bf16.mxu0 %v541
    %2217 = vmatmul.mubr.bf16.gmra.mrb[0].mxu0 %v540
    %v2218 = vpop.f32.mrb[0].mxu0
    %v2219 = vadd.f32 %v2178, %v2218
    %v2220 = vpop.f32.mrb[0].mxu0
    %v2221 = vadd.f32 %v2180, %v2220
    %v2222 = vpop.f32.mrb[0].mxu0
    %v2223 = vpop.f32.mrb[0].mxu0
    %2224 = vdwg.mxu0
    %2225 = vmatprep.subr.bf16.mxu0 %v1783
    %2226 = vmatpush1.bf16.msra.mxu0 %v1782
    %2227 = vmatprep.subr.bf16.mxu0 %v1787
    %2228 = vmatpush1.bf16.msra.mxu0 %v1786
    %2229 = vmatprep.subr.bf16.mxu0 %v1791
    %2230 = vmatpush1.bf16.msra.mxu0 %v1790
    %2231 = vmatprep.subr.bf16.mxu0 %v1795
    %2232 = vmatpush1.bf16.msra.mxu0 %v1794
    %2233 = vmatprep.subr.bf16.mxu0 %v1799
    %2234 = vmatpush1.bf16.msra.mxu0 %v1798
    %2235 = vmatprep.subr.bf16.mxu0 %v1803
    %2236 = vmatpush1.bf16.msra.mxu0 %v1802
    %2237 = vmatprep.subr.bf16.mxu0 %v1807
    %2238 = vmatpush1.bf16.msra.mxu0 %v1806
    %2239 = vmatprep.subr.bf16.mxu0 %v1811
    %2240 = vmatpush1.bf16.msra.mxu0 %v1810
    %2241 = vmatprep.subr.bf16.mxu0 %v1815
    %2242 = vmatpush1.bf16.msra.mxu0 %v1814
    %2243 = vmatprep.subr.bf16.mxu0 %v1819
    %2244 = vmatpush1.bf16.msra.mxu0 %v1818
    %2245 = vmatprep.subr.bf16.mxu0 %v1823
    %2246 = vmatpush1.bf16.msra.mxu0 %v1822
    %2247 = vmatprep.subr.bf16.mxu0 %v1827
    %2248 = vmatpush1.bf16.msra.mxu0 %v1826
    %2249 = vmatprep.subr.bf16.mxu0 %v1831
    %2250 = vmatpush1.bf16.msra.mxu0 %v1830
    %2251 = vmatprep.subr.bf16.mxu0 %v1835
    %2252 = vmatpush1.bf16.msra.mxu0 %v1834
    %2253 = vmatprep.subr.bf16.mxu0 %v1839
    %2254 = vmatpush1.bf16.msra.mxu0 %v1838
    %2255 = vmatprep.subr.bf16.mxu0 %v1843
    %2256 = vmatpush1.bf16.msra.mxu0 %v1842
    %2257 = vmatprep.mubr.bf16.mxu0 %v543
    %2258 = vmatmul.mubr.bf16.gmra.mrb[0].mxu0 %v542
    %v2259 = vpop.f32.mrb[0].mxu0
    %v2260 = vadd.f32 %v2219, %v2259
    %v2261 = vpop.f32.mrb[0].mxu0
    %v2262 = vadd.f32 %v2221, %v2261
    %v2263 = vpop.f32.mrb[0].mxu0
    %v2264 = vpop.f32.mrb[0].mxu0
    %2265 = vdwg.mxu0
    %2266 = vmatprep.subr.bf16.mxu0 %v1593
    %2267 = vmatpush1.bf16.msra.mxu0 %v1592
    %2268 = vmatprep.subr.bf16.mxu0 %v1597
    %2269 = vmatpush1.bf16.msra.mxu0 %v1596
    %2270 = vmatprep.subr.bf16.mxu0 %v1601
    %2271 = vmatpush1.bf16.msra.mxu0 %v1600
    %2272 = vmatprep.subr.bf16.mxu0 %v1605
    %2273 = vmatpush1.bf16.msra.mxu0 %v1604
    %2274 = vmatprep.subr.bf16.mxu0 %v1609
    %2275 = vmatpush1.bf16.msra.mxu0 %v1608
    %2276 = vmatprep.subr.bf16.mxu0 %v1613
    %2277 = vmatpush1.bf16.msra.mxu0 %v1612
    %2278 = vmatprep.subr.bf16.mxu0 %v1617
    %2279 = vmatpush1.bf16.msra.mxu0 %v1616
    %2280 = vmatprep.subr.bf16.mxu0 %v1621
    %2281 = vmatpush1.bf16.msra.mxu0 %v1620
    %2282 = vmatprep.subr.bf16.mxu0 %v1625
    %2283 = vmatpush1.bf16.msra.mxu0 %v1624
    %2284 = vmatprep.subr.bf16.mxu0 %v1629
    %2285 = vmatpush1.bf16.msra.mxu0 %v1628
    %2286 = vmatprep.subr.bf16.mxu0 %v1633
    %2287 = vmatpush1.bf16.msra.mxu0 %v1632
    %2288 = vmatprep.subr.bf16.mxu0 %v1637
    %2289 = vmatpush1.bf16.msra.mxu0 %v1636
    %2290 = vmatprep.subr.bf16.mxu0 %v1641
    %2291 = vmatpush1.bf16.msra.mxu0 %v1640
    %2292 = vmatprep.subr.bf16.mxu0 %v1645
    %2293 = vmatpush1.bf16.msra.mxu0 %v1644
    %2294 = vmatprep.subr.bf16.mxu0 %v1649
    %2295 = vmatpush1.bf16.msra.mxu0 %v1648
    %2296 = vmatprep.subr.bf16.mxu0 %v1653
    %2297 = vmatpush1.bf16.msra.mxu0 %v1652
    %2298 = vmatprep.mubr.bf16.mxu0 %v537
    %2299 = vmatmul.mubr.bf16.gmra.mrb[0].mxu0 %v536
    %v2300 = vpop.f32.mrb[0].mxu0
    %v2301 = vadd.f32 %v813, %v2300
    %v2302 = vpop.f32.mrb[0].mxu0
    %v2303 = vadd.f32 %v817, %v2302
    %v2304 = vpop.f32.mrb[0].mxu0
    %v2305 = vpop.f32.mrb[0].mxu0
    %2306 = vdwg.mxu0
    %2307 = vmatprep.subr.bf16.mxu0 %v1657
    %2308 = vmatpush1.bf16.msra.mxu0 %v1656
    %2309 = vmatprep.subr.bf16.mxu0 %v1661
    %2310 = vmatpush1.bf16.msra.mxu0 %v1660
    %2311 = vmatprep.subr.bf16.mxu0 %v1665
    %2312 = vmatpush1.bf16.msra.mxu0 %v1664
    %2313 = vmatprep.subr.bf16.mxu0 %v1669
    %2314 = vmatpush1.bf16.msra.mxu0 %v1668
    %2315 = vmatprep.subr.bf16.mxu0 %v1673
    %2316 = vmatpush1.bf16.msra.mxu0 %v1672
    %2317 = vmatprep.subr.bf16.mxu0 %v1677
    %2318 = vmatpush1.bf16.msra.mxu0 %v1676
    %2319 = vmatprep.subr.bf16.mxu0 %v1681
    %2320 = vmatpush1.bf16.msra.mxu0 %v1680
    %2321 = vmatprep.subr.bf16.mxu0 %v1685
    %2322 = vmatpush1.bf16.msra.mxu0 %v1684
    %2323 = vmatprep.subr.bf16.mxu0 %v1689
    %2324 = vmatpush1.bf16.msra.mxu0 %v1688
    %2325 = vmatprep.subr.bf16.mxu0 %v1693
    %2326 = vmatpush1.bf16.msra.mxu0 %v1692
    %2327 = vmatprep.subr.bf16.mxu0 %v1697
    %2328 = vmatpush1.bf16.msra.mxu0 %v1696
    %2329 = vmatprep.subr.bf16.mxu0 %v1701
    %2330 = vmatpush1.bf16.msra.mxu0 %v1700
    %2331 = vmatprep.subr.bf16.mxu0 %v1705
    %2332 = vmatpush1.bf16.msra.mxu0 %v1704
    %2333 = vmatprep.subr.bf16.mxu0 %v1709
    %2334 = vmatpush1.bf16.msra.mxu0 %v1708
    %2335 = vmatprep.subr.bf16.mxu0 %v1713
    %2336 = vmatpush1.bf16.msra.mxu0 %v1712
    %2337 = vmatprep.subr.bf16.mxu0 %v1717
    %2338 = vmatpush1.bf16.msra.mxu0 %v1716
    %2339 = vmatprep.mubr.bf16.mxu0 %v539
    %2340 = vmatmul.mubr.bf16.gmra.mrb[0].mxu0 %v538
    %v2341 = vpop.f32.mrb[0].mxu0
    %v2342 = vadd.f32 %v2301, %v2341
    %v2343 = vpop.f32.mrb[0].mxu0
    %v2344 = vadd.f32 %v2303, %v2343
    %v2345 = vpop.f32.mrb[0].mxu0
    %v2346 = vpop.f32.mrb[0].mxu0
    %2347 = vdwg.mxu0
    %2348 = vmatprep.subr.bf16.mxu0 %v1721
    %2349 = vmatpush1.bf16.msra.mxu0 %v1720
    %2350 = vmatprep.subr.bf16.mxu0 %v1725
    %2351 = vmatpush1.bf16.msra.mxu0 %v1724
    %2352 = vmatprep.subr.bf16.mxu0 %v1729
    %2353 = vmatpush1.bf16.msra.mxu0 %v1728
    %2354 = vmatprep.subr.bf16.mxu0 %v1733
    %2355 = vmatpush1.bf16.msra.mxu0 %v1732
    %2356 = vmatprep.subr.bf16.mxu0 %v1737
    %2357 = vmatpush1.bf16.msra.mxu0 %v1736
    %2358 = vmatprep.subr.bf16.mxu0 %v1741
    %2359 = vmatpush1.bf16.msra.mxu0 %v1740
    %2360 = vmatprep.subr.bf16.mxu0 %v1745
    %2361 = vmatpush1.bf16.msra.mxu0 %v1744
    %2362 = vmatprep.subr.bf16.mxu0 %v1749
    %2363 = vmatpush1.bf16.msra.mxu0 %v1748
    %2364 = vmatprep.subr.bf16.mxu0 %v1753
    %2365 = vmatpush1.bf16.msra.mxu0 %v1752
    %2366 = vmatprep.subr.bf16.mxu0 %v1757
    %2367 = vmatpush1.bf16.msra.mxu0 %v1756
    %2368 = vmatprep.subr.bf16.mxu0 %v1761
    %2369 = vmatpush1.bf16.msra.mxu0 %v1760
    %2370 = vmatprep.subr.bf16.mxu0 %v1765
    %2371 = vmatpush1.bf16.msra.mxu0 %v1764
    %2372 = vmatprep.subr.bf16.mxu0 %v1769
    %2373 = vmatpush1.bf16.msra.mxu0 %v1768
    %2374 = vmatprep.subr.bf16.mxu0 %v1773
    %2375 = vmatpush1.bf16.msra.mxu0 %v1772
    %2376 = vmatprep.subr.bf16.mxu0 %v1777
    %2377 = vmatpush1.bf16.msra.mxu0 %v1776
    %2378 = vmatprep.subr.bf16.mxu0 %v1781
    %2379 = vmatpush1.bf16.msra.mxu0 %v1780
    %2380 = vmatprep.mubr.bf16.mxu0 %v541
    %2381 = vmatmul.mubr.bf16.gmra.mrb[0].mxu0 %v540
    %v2382 = vpop.f32.mrb[0].mxu0
    %v2383 = vadd.f32 %v2342, %v2382
    %v2384 = vpop.f32.mrb[0].mxu0
    %v2385 = vadd.f32 %v2344, %v2384
    %v2386 = vpop.f32.mrb[0].mxu0
    %v2387 = vpop.f32.mrb[0].mxu0
    %2388 = vdwg.mxu0
    %2389 = vmatprep.subr.bf16.mxu0 %v1785
    %2390 = vmatpush1.bf16.msra.mxu0 %v1784
    %2391 = vmatprep.subr.bf16.mxu0 %v1789
    %2392 = vmatpush1.bf16.msra.mxu0 %v1788
    %2393 = vmatprep.subr.bf16.mxu0 %v1793
    %2394 = vmatpush1.bf16.msra.mxu0 %v1792
    %2395 = vmatprep.subr.bf16.mxu0 %v1797
    %2396 = vmatpush1.bf16.msra.mxu0 %v1796
    %2397 = vmatprep.subr.bf16.mxu0 %v1801
    %2398 = vmatpush1.bf16.msra.mxu0 %v1800
    %2399 = vmatprep.subr.bf16.mxu0 %v1805
    %2400 = vmatpush1.bf16.msra.mxu0 %v1804
    %2401 = vmatprep.subr.bf16.mxu0 %v1809
    %2402 = vmatpush1.bf16.msra.mxu0 %v1808
    %2403 = vmatprep.subr.bf16.mxu0 %v1813
    %2404 = vmatpush1.bf16.msra.mxu0 %v1812
    %2405 = vmatprep.subr.bf16.mxu0 %v1817
    %2406 = vmatpush1.bf16.msra.mxu0 %v1816
    %2407 = vmatprep.subr.bf16.mxu0 %v1821
    %2408 = vmatpush1.bf16.msra.mxu0 %v1820
    %2409 = vmatprep.subr.bf16.mxu0 %v1825
    %2410 = vmatpush1.bf16.msra.mxu0 %v1824
    %2411 = vmatprep.subr.bf16.mxu0 %v1829
    %2412 = vmatpush1.bf16.msra.mxu0 %v1828
    %2413 = vmatprep.subr.bf16.mxu0 %v1833
    %2414 = vmatpush1.bf16.msra.mxu0 %v1832
    %2415 = vmatprep.subr.bf16.mxu0 %v1837
    %2416 = vmatpush1.bf16.msra.mxu0 %v1836
    %2417 = vmatprep.subr.bf16.mxu0 %v1841
    %2418 = vmatpush1.bf16.msra.mxu0 %v1840
    %2419 = vmatprep.subr.bf16.mxu0 %v1845
    %2420 = vmatpush1.bf16.msra.mxu0 %v1844
    %2421 = vmatprep.mubr.bf16.mxu0 %v543
    %2422 = vmatmul.mubr.bf16.gmra.mrb[0].mxu0 %v542
    %v2423 = vpop.f32.mrb[0].mxu0
    %v2424 = vadd.f32 %v2383, %v2423
    %v2425 = vpop.f32.mrb[0].mxu0
    %v2426 = vadd.f32 %v2385, %v2425
    %v2427 = vpop.f32.mrb[0].mxu0
    %v2428 = vpop.f32.mrb[0].mxu0
    %2429 = vdwg.mxu0
    %v2430 = vld [vmem:[#allocation6] sm:$0xff]
    %v2431 = vld [vmem:[#allocation6 + $0x8] sm:$0xff]
    %v2432 = vld [vmem:[#allocation6 + $0x10] sm:$0xff]
    %v2433 = vld [vmem:[#allocation6 + $0x18] sm:$0xff]
    %v2434 = vld [vmem:[#allocation6 + $0x20] sm:$0xff]
    %v2435 = vld [vmem:[#allocation6 + $0x28] sm:$0xff]
    %v2436 = vld [vmem:[#allocation6 + $0x30] sm:$0xff]
    %v2437 = vld [vmem:[#allocation6 + $0x38] sm:$0xff]
    %v2438 = vld [vmem:[#allocation6 + $0x40] sm:$0xff]
    %v2439 = vld [vmem:[#allocation6 + $0x48] sm:$0xff]
    %v2440 = vld [vmem:[#allocation6 + $0x50] sm:$0xff]
    %v2441 = vld [vmem:[#allocation6 + $0x58] sm:$0xff]
    %v2442 = vld [vmem:[#allocation6 + $0x60] sm:$0xff]
    %v2443 = vld [vmem:[#allocation6 + $0x68] sm:$0xff]
    %v2444 = vld [vmem:[#allocation6 + $0x70] sm:$0xff]
    %v2445 = vld [vmem:[#allocation6 + $0x78] sm:$0xff]
    %v2446 = vpack.c.bf16 %v2260, %v2260
    %v2447 = vpack.c.bf16 %v2262, %v2262
    %v2448 = vpack.c.bf16 %v2424, %v2424
    %v2449 = vpack.c.bf16 %v2426, %v2426
    %v2450 = vld [vmem:[#allocation7] sm:$0xff]
    %v2451 = vld [vmem:[#allocation7 + $0x8] sm:$0xff]
    %v2452 = vld [vmem:[#allocation7 + $0x10] sm:$0xff]
    %v2453 = vld [vmem:[#allocation7 + $0x18] sm:$0xff]
    %v2454 = vld [vmem:[#allocation7 + $0x20] sm:$0xff]
    %v2455 = vld [vmem:[#allocation7 + $0x28] sm:$0xff]
    %v2456 = vld [vmem:[#allocation7 + $0x30] sm:$0xff]
    %v2457 = vld [vmem:[#allocation7 + $0x38] sm:$0xff]
    %v2458 = vld [vmem:[#allocation7 + $0x40] sm:$0xff]
    %v2459 = vld [vmem:[#allocation7 + $0x48] sm:$0xff]
    %v2460 = vld [vmem:[#allocation7 + $0x50] sm:$0xff]
    %v2461 = vld [vmem:[#allocation7 + $0x58] sm:$0xff]
    %v2462 = vld [vmem:[#allocation7 + $0x60] sm:$0xff]
    %v2463 = vld [vmem:[#allocation7 + $0x68] sm:$0xff]
    %v2464 = vld [vmem:[#allocation7 + $0x70] sm:$0xff]
    %v2465 = vld [vmem:[#allocation7 + $0x78] sm:$0xff]
    %v2466 = vld [vmem:[#allocation7 + $0x80] sm:$0xff]
    %v2467 = vld [vmem:[#allocation7 + $0x88] sm:$0xff]
    %v2468 = vld [vmem:[#allocation7 + $0x90] sm:$0xff]
    %v2469 = vld [vmem:[#allocation7 + $0x98] sm:$0xff]
    %v2470 = vld [vmem:[#allocation7 + $0xa0] sm:$0xff]
    %v2471 = vld [vmem:[#allocation7 + $0xa8] sm:$0xff]
    %v2472 = vld [vmem:[#allocation7 + $0xb0] sm:$0xff]
    %v2473 = vld [vmem:[#allocation7 + $0xb8] sm:$0xff]
    %v2474 = vld [vmem:[#allocation7 + $0xc0] sm:$0xff]
    %v2475 = vld [vmem:[#allocation7 + $0xc8] sm:$0xff]
    %v2476 = vld [vmem:[#allocation7 + $0xd0] sm:$0xff]
    %v2477 = vld [vmem:[#allocation7 + $0xd8] sm:$0xff]
    %v2478 = vld [vmem:[#allocation7 + $0xe0] sm:$0xff]
    %v2479 = vld [vmem:[#allocation7 + $0xe8] sm:$0xff]
    %v2480 = vld [vmem:[#allocation7 + $0xf0] sm:$0xff]
    %v2481 = vld [vmem:[#allocation7 + $0xf8] sm:$0xff]
    %v2482 = vld [vmem:[#allocation7 + $0x100] sm:$0xff]
    %v2483 = vld [vmem:[#allocation7 + $0x108] sm:$0xff]
    %v2484 = vld [vmem:[#allocation7 + $0x110] sm:$0xff]
    %v2485 = vld [vmem:[#allocation7 + $0x118] sm:$0xff]
    %v2486 = vld [vmem:[#allocation7 + $0x120] sm:$0xff]
    %v2487 = vld [vmem:[#allocation7 + $0x128] sm:$0xff]
    %v2488 = vld [vmem:[#allocation7 + $0x130] sm:$0xff]
    %v2489 = vld [vmem:[#allocation7 + $0x138] sm:$0xff]
    %v2490 = vld [vmem:[#allocation7 + $0x140] sm:$0xff]
    %v2491 = vld [vmem:[#allocation7 + $0x148] sm:$0xff]
    %v2492 = vld [vmem:[#allocation7 + $0x150] sm:$0xff]
    %v2493 = vld [vmem:[#allocation7 + $0x158] sm:$0xff]
    %v2494 = vld [vmem:[#allocation7 + $0x160] sm:$0xff]
    %v2495 = vld [vmem:[#allocation7 + $0x168] sm:$0xff]
    %v2496 = vld [vmem:[#allocation7 + $0x170] sm:$0xff]
    %v2497 = vld [vmem:[#allocation7 + $0x178] sm:$0xff]
    %v2498 = vld [vmem:[#allocation7 + $0x180] sm:$0xff]
    %v2499 = vld [vmem:[#allocation7 + $0x188] sm:$0xff]
    %v2500 = vld [vmem:[#allocation7 + $0x190] sm:$0xff]
    %v2501 = vld [vmem:[#allocation7 + $0x198] sm:$0xff]
    %v2502 = vld [vmem:[#allocation7 + $0x1a0] sm:$0xff]
    %v2503 = vld [vmem:[#allocation7 + $0x1a8] sm:$0xff]
    %v2504 = vld [vmem:[#allocation7 + $0x1b0] sm:$0xff]
    %v2505 = vld [vmem:[#allocation7 + $0x1b8] sm:$0xff]
    %v2506 = vld [vmem:[#allocation7 + $0x1c0] sm:$0xff]
    %v2507 = vld [vmem:[#allocation7 + $0x1c8] sm:$0xff]
    %v2508 = vld [vmem:[#allocation7 + $0x1d0] sm:$0xff]
    %v2509 = vld [vmem:[#allocation7 + $0x1d8] sm:$0xff]
    %v2510 = vld [vmem:[#allocation7 + $0x1e0] sm:$0xff]
    %v2511 = vld [vmem:[#allocation7 + $0x1e8] sm:$0xff]
    %v2512 = vld [vmem:[#allocation7 + $0x1f0] sm:$0xff]
    %v2513 = vld [vmem:[#allocation7 + $0x1f8] sm:$0xff]
    %v2514 = vld [vmem:[#allocation7 + $0x200] sm:$0xff]
    %v2515 = vld [vmem:[#allocation7 + $0x208] sm:$0xff]
    %v2516 = vld [vmem:[#allocation7 + $0x210] sm:$0xff]
    %v2517 = vld [vmem:[#allocation7 + $0x218] sm:$0xff]
    %v2518 = vld [vmem:[#allocation7 + $0x220] sm:$0xff]
    %v2519 = vld [vmem:[#allocation7 + $0x228] sm:$0xff]
    %v2520 = vld [vmem:[#allocation7 + $0x230] sm:$0xff]
    %v2521 = vld [vmem:[#allocation7 + $0x238] sm:$0xff]
    %v2522 = vld [vmem:[#allocation7 + $0x240] sm:$0xff]
    %v2523 = vld [vmem:[#allocation7 + $0x248] sm:$0xff]
    %v2524 = vld [vmem:[#allocation7 + $0x250] sm:$0xff]
    %v2525 = vld [vmem:[#allocation7 + $0x258] sm:$0xff]
    %v2526 = vld [vmem:[#allocation7 + $0x260] sm:$0xff]
    %v2527 = vld [vmem:[#allocation7 + $0x268] sm:$0xff]
    %v2528 = vld [vmem:[#allocation7 + $0x270] sm:$0xff]
    %v2529 = vld [vmem:[#allocation7 + $0x278] sm:$0xff]
    %v2530 = vld [vmem:[#allocation7 + $0x280] sm:$0xff]
    %v2531 = vld [vmem:[#allocation7 + $0x288] sm:$0xff]
    %v2532 = vld [vmem:[#allocation7 + $0x290] sm:$0xff]
    %v2533 = vld [vmem:[#allocation7 + $0x298] sm:$0xff]
    %v2534 = vld [vmem:[#allocation7 + $0x2a0] sm:$0xff]
    %v2535 = vld [vmem:[#allocation7 + $0x2a8] sm:$0xff]
    %v2536 = vld [vmem:[#allocation7 + $0x2b0] sm:$0xff]
    %v2537 = vld [vmem:[#allocation7 + $0x2b8] sm:$0xff]
    %v2538 = vld [vmem:[#allocation7 + $0x2c0] sm:$0xff]
    %v2539 = vld [vmem:[#allocation7 + $0x2c8] sm:$0xff]
    %v2540 = vld [vmem:[#allocation7 + $0x2d0] sm:$0xff]
    %v2541 = vld [vmem:[#allocation7 + $0x2d8] sm:$0xff]
    %v2542 = vld [vmem:[#allocation7 + $0x2e0] sm:$0xff]
    %v2543 = vld [vmem:[#allocation7 + $0x2e8] sm:$0xff]
    %v2544 = vld [vmem:[#allocation7 + $0x2f0] sm:$0xff]
    %v2545 = vld [vmem:[#allocation7 + $0x2f8] sm:$0xff]
    %v2546 = vld [vmem:[#allocation7 + $0x300] sm:$0xff]
    %v2547 = vld [vmem:[#allocation7 + $0x308] sm:$0xff]
    %v2548 = vld [vmem:[#allocation7 + $0x310] sm:$0xff]
    %v2549 = vld [vmem:[#allocation7 + $0x318] sm:$0xff]
    %v2550 = vld [vmem:[#allocation7 + $0x320] sm:$0xff]
    %v2551 = vld [vmem:[#allocation7 + $0x328] sm:$0xff]
    %v2552 = vld [vmem:[#allocation7 + $0x330] sm:$0xff]
    %v2553 = vld [vmem:[#allocation7 + $0x338] sm:$0xff]
    %v2554 = vld [vmem:[#allocation7 + $0x340] sm:$0xff]
    %v2555 = vld [vmem:[#allocation7 + $0x348] sm:$0xff]
    %v2556 = vld [vmem:[#allocation7 + $0x350] sm:$0xff]
    %v2557 = vld [vmem:[#allocation7 + $0x358] sm:$0xff]
    %v2558 = vld [vmem:[#allocation7 + $0x360] sm:$0xff]
    %v2559 = vld [vmem:[#allocation7 + $0x368] sm:$0xff]
    %v2560 = vld [vmem:[#allocation7 + $0x370] sm:$0xff]
    %v2561 = vld [vmem:[#allocation7 + $0x378] sm:$0xff]
    %v2562 = vld [vmem:[#allocation7 + $0x380] sm:$0xff]
    %v2563 = vld [vmem:[#allocation7 + $0x388] sm:$0xff]
    %v2564 = vld [vmem:[#allocation7 + $0x390] sm:$0xff]
    %v2565 = vld [vmem:[#allocation7 + $0x398] sm:$0xff]
    %v2566 = vld [vmem:[#allocation7 + $0x3a0] sm:$0xff]
    %v2567 = vld [vmem:[#allocation7 + $0x3a8] sm:$0xff]
    %v2568 = vld [vmem:[#allocation7 + $0x3b0] sm:$0xff]
    %v2569 = vld [vmem:[#allocation7 + $0x3b8] sm:$0xff]
    %v2570 = vld [vmem:[#allocation7 + $0x3c0] sm:$0xff]
    %v2571 = vld [vmem:[#allocation7 + $0x3c8] sm:$0xff]
    %v2572 = vld [vmem:[#allocation7 + $0x3d0] sm:$0xff]
    %v2573 = vld [vmem:[#allocation7 + $0x3d8] sm:$0xff]
    %v2574 = vld [vmem:[#allocation7 + $0x3e0] sm:$0xff]
    %v2575 = vld [vmem:[#allocation7 + $0x3e8] sm:$0xff]
    %v2576 = vld [vmem:[#allocation7 + $0x3f0] sm:$0xff]
    %v2577 = vld [vmem:[#allocation7 + $0x3f8] sm:$0xff]
    %v2706 = vunpack.c.l.b16 %v2450
    %v2707 = vunpack.c.h.b16 %v2450
    %v2708 = vunpack.c.l.b16 %v2451
    %v2709 = vunpack.c.h.b16 %v2451
    %v2710 = vunpack.c.l.b16 %v2452
    %v2711 = vunpack.c.h.b16 %v2452
    %v2712 = vunpack.c.l.b16 %v2453
    %v2713 = vunpack.c.h.b16 %v2453
    %v2714 = vunpack.c.l.b16 %v2454
    %v2715 = vunpack.c.h.b16 %v2454
    %v2716 = vunpack.c.l.b16 %v2455
    %v2717 = vunpack.c.h.b16 %v2455
    %v2718 = vunpack.c.l.b16 %v2456
    %v2719 = vunpack.c.h.b16 %v2456
    %v2720 = vunpack.c.l.b16 %v2457
    %v2721 = vunpack.c.h.b16 %v2457
    %v2722 = vunpack.c.l.b16 %v2458
    %v2723 = vunpack.c.h.b16 %v2458
    %v2724 = vunpack.c.l.b16 %v2459
    %v2725 = vunpack.c.h.b16 %v2459
    %v2726 = vunpack.c.l.b16 %v2460
    %v2727 = vunpack.c.h.b16 %v2460
    %v2728 = vunpack.c.l.b16 %v2461
    %v2729 = vunpack.c.h.b16 %v2461
    %v2730 = vunpack.c.l.b16 %v2462
    %v2731 = vunpack.c.h.b16 %v2462
    %v2732 = vunpack.c.l.b16 %v2463
    %v2733 = vunpack.c.h.b16 %v2463
    %v2734 = vunpack.c.l.b16 %v2464
    %v2735 = vunpack.c.h.b16 %v2464
    %v2736 = vunpack.c.l.b16 %v2465
    %v2737 = vunpack.c.h.b16 %v2465
    %v2738 = vunpack.c.l.b16 %v2466
    %v2739 = vunpack.c.h.b16 %v2466
    %v2740 = vunpack.c.l.b16 %v2467
    %v2741 = vunpack.c.h.b16 %v2467
    %v2742 = vunpack.c.l.b16 %v2468
    %v2743 = vunpack.c.h.b16 %v2468
    %v2744 = vunpack.c.l.b16 %v2469
    %v2745 = vunpack.c.h.b16 %v2469
    %v2746 = vunpack.c.l.b16 %v2470
    %v2747 = vunpack.c.h.b16 %v2470
    %v2748 = vunpack.c.l.b16 %v2471
    %v2749 = vunpack.c.h.b16 %v2471
    %v2750 = vunpack.c.l.b16 %v2472
    %v2751 = vunpack.c.h.b16 %v2472
    %v2752 = vunpack.c.l.b16 %v2473
    %v2753 = vunpack.c.h.b16 %v2473
    %v2754 = vunpack.c.l.b16 %v2474
    %v2755 = vunpack.c.h.b16 %v2474
    %v2756 = vunpack.c.l.b16 %v2475
    %v2757 = vunpack.c.h.b16 %v2475
    %v2758 = vunpack.c.l.b16 %v2476
    %v2759 = vunpack.c.h.b16 %v2476
    %v2760 = vunpack.c.l.b16 %v2477
    %v2761 = vunpack.c.h.b16 %v2477
    %v2762 = vunpack.c.l.b16 %v2478
    %v2763 = vunpack.c.h.b16 %v2478
    %v2764 = vunpack.c.l.b16 %v2479
    %v2765 = vunpack.c.h.b16 %v2479
    %v2766 = vunpack.c.l.b16 %v2480
    %v2767 = vunpack.c.h.b16 %v2480
    %v2768 = vunpack.c.l.b16 %v2481
    %v2769 = vunpack.c.h.b16 %v2481
    %v2770 = vunpack.c.l.b16 %v2482
    %v2771 = vunpack.c.h.b16 %v2482
    %v2772 = vunpack.c.l.b16 %v2483
    %v2773 = vunpack.c.h.b16 %v2483
    %v2774 = vunpack.c.l.b16 %v2484
    %v2775 = vunpack.c.h.b16 %v2484
    %v2776 = vunpack.c.l.b16 %v2485
    %v2777 = vunpack.c.h.b16 %v2485
    %v2778 = vunpack.c.l.b16 %v2486
    %v2779 = vunpack.c.h.b16 %v2486
    %v2780 = vunpack.c.l.b16 %v2487
    %v2781 = vunpack.c.h.b16 %v2487
    %v2782 = vunpack.c.l.b16 %v2488
    %v2783 = vunpack.c.h.b16 %v2488
    %v2784 = vunpack.c.l.b16 %v2489
    %v2785 = vunpack.c.h.b16 %v2489
    %v2786 = vunpack.c.l.b16 %v2490
    %v2787 = vunpack.c.h.b16 %v2490
    %v2788 = vunpack.c.l.b16 %v2491
    %v2789 = vunpack.c.h.b16 %v2491
    %v2790 = vunpack.c.l.b16 %v2492
    %v2791 = vunpack.c.h.b16 %v2492
    %v2792 = vunpack.c.l.b16 %v2493
    %v2793 = vunpack.c.h.b16 %v2493
    %v2794 = vunpack.c.l.b16 %v2494
    %v2795 = vunpack.c.h.b16 %v2494
    %v2796 = vunpack.c.l.b16 %v2495
    %v2797 = vunpack.c.h.b16 %v2495
    %v2798 = vunpack.c.l.b16 %v2496
    %v2799 = vunpack.c.h.b16 %v2496
    %v2800 = vunpack.c.l.b16 %v2497
    %v2801 = vunpack.c.h.b16 %v2497
    %v2802 = vunpack.c.l.b16 %v2498
    %v2803 = vunpack.c.h.b16 %v2498
    %v2804 = vunpack.c.l.b16 %v2499
    %v2805 = vunpack.c.h.b16 %v2499
    %v2806 = vunpack.c.l.b16 %v2500
    %v2807 = vunpack.c.h.b16 %v2500
    %v2808 = vunpack.c.l.b16 %v2501
    %v2809 = vunpack.c.h.b16 %v2501
    %v2810 = vunpack.c.l.b16 %v2502
    %v2811 = vunpack.c.h.b16 %v2502
    %v2812 = vunpack.c.l.b16 %v2503
    %v2813 = vunpack.c.h.b16 %v2503
    %v2814 = vunpack.c.l.b16 %v2504
    %v2815 = vunpack.c.h.b16 %v2504
    %v2816 = vunpack.c.l.b16 %v2505
    %v2817 = vunpack.c.h.b16 %v2505
    %v2818 = vunpack.c.l.b16 %v2506
    %v2819 = vunpack.c.h.b16 %v2506
    %v2820 = vunpack.c.l.b16 %v2507
    %v2821 = vunpack.c.h.b16 %v2507
    %v2822 = vunpack.c.l.b16 %v2508
    %v2823 = vunpack.c.h.b16 %v2508
    %v2824 = vunpack.c.l.b16 %v2509
    %v2825 = vunpack.c.h.b16 %v2509
    %v2826 = vunpack.c.l.b16 %v2510
    %v2827 = vunpack.c.h.b16 %v2510
    %v2828 = vunpack.c.l.b16 %v2511
    %v2829 = vunpack.c.h.b16 %v2511
    %v2830 = vunpack.c.l.b16 %v2512
    %v2831 = vunpack.c.h.b16 %v2512
    %v2832 = vunpack.c.l.b16 %v2513
    %v2833 = vunpack.c.h.b16 %v2513
    %v2834 = vunpack.c.l.b16 %v2514
    %v2835 = vunpack.c.h.b16 %v2514
    %v2836 = vunpack.c.l.b16 %v2515
    %v2837 = vunpack.c.h.b16 %v2515
    %v2838 = vunpack.c.l.b16 %v2516
    %v2839 = vunpack.c.h.b16 %v2516
    %v2840 = vunpack.c.l.b16 %v2517
    %v2841 = vunpack.c.h.b16 %v2517
    %v2842 = vunpack.c.l.b16 %v2518
    %v2843 = vunpack.c.h.b16 %v2518
    %v2844 = vunpack.c.l.b16 %v2519
    %v2845 = vunpack.c.h.b16 %v2519
    %v2846 = vunpack.c.l.b16 %v2520
    %v2847 = vunpack.c.h.b16 %v2520
    %v2848 = vunpack.c.l.b16 %v2521
    %v2849 = vunpack.c.h.b16 %v2521
    %v2850 = vunpack.c.l.b16 %v2522
    %v2851 = vunpack.c.h.b16 %v2522
    %v2852 = vunpack.c.l.b16 %v2523
    %v2853 = vunpack.c.h.b16 %v2523
    %v2854 = vunpack.c.l.b16 %v2524
    %v2855 = vunpack.c.h.b16 %v2524
    %v2856 = vunpack.c.l.b16 %v2525
    %v2857 = vunpack.c.h.b16 %v2525
    %v2858 = vunpack.c.l.b16 %v2526
    %v2859 = vunpack.c.h.b16 %v2526
    %v2860 = vunpack.c.l.b16 %v2527
    %v2861 = vunpack.c.h.b16 %v2527
    %v2862 = vunpack.c.l.b16 %v2528
    %v2863 = vunpack.c.h.b16 %v2528
    %v2864 = vunpack.c.l.b16 %v2529
    %v2865 = vunpack.c.h.b16 %v2529
    %v2866 = vunpack.c.l.b16 %v2530
    %v2867 = vunpack.c.h.b16 %v2530
    %v2868 = vunpack.c.l.b16 %v2531
    %v2869 = vunpack.c.h.b16 %v2531
    %v2870 = vunpack.c.l.b16 %v2532
    %v2871 = vunpack.c.h.b16 %v2532
    %v2872 = vunpack.c.l.b16 %v2533
    %v2873 = vunpack.c.h.b16 %v2533
    %v2874 = vunpack.c.l.b16 %v2534
    %v2875 = vunpack.c.h.b16 %v2534
    %v2876 = vunpack.c.l.b16 %v2535
    %v2877 = vunpack.c.h.b16 %v2535
    %v2878 = vunpack.c.l.b16 %v2536
    %v2879 = vunpack.c.h.b16 %v2536
    %v2880 = vunpack.c.l.b16 %v2537
    %v2881 = vunpack.c.h.b16 %v2537
    %v2882 = vunpack.c.l.b16 %v2538
    %v2883 = vunpack.c.h.b16 %v2538
    %v2884 = vunpack.c.l.b16 %v2539
    %v2885 = vunpack.c.h.b16 %v2539
    %v2886 = vunpack.c.l.b16 %v2540
    %v2887 = vunpack.c.h.b16 %v2540
    %v2888 = vunpack.c.l.b16 %v2541
    %v2889 = vunpack.c.h.b16 %v2541
    %v2890 = vunpack.c.l.b16 %v2542
    %v2891 = vunpack.c.h.b16 %v2542
    %v2892 = vunpack.c.l.b16 %v2543
    %v2893 = vunpack.c.h.b16 %v2543
    %v2894 = vunpack.c.l.b16 %v2544
    %v2895 = vunpack.c.h.b16 %v2544
    %v2896 = vunpack.c.l.b16 %v2545
    %v2897 = vunpack.c.h.b16 %v2545
    %v2898 = vunpack.c.l.b16 %v2546
    %v2899 = vunpack.c.h.b16 %v2546
    %v2900 = vunpack.c.l.b16 %v2547
    %v2901 = vunpack.c.h.b16 %v2547
    %v2902 = vunpack.c.l.b16 %v2548
    %v2903 = vunpack.c.h.b16 %v2548
    %v2904 = vunpack.c.l.b16 %v2549
    %v2905 = vunpack.c.h.b16 %v2549
    %v2906 = vunpack.c.l.b16 %v2550
    %v2907 = vunpack.c.h.b16 %v2550
    %v2908 = vunpack.c.l.b16 %v2551
    %v2909 = vunpack.c.h.b16 %v2551
    %v2910 = vunpack.c.l.b16 %v2552
    %v2911 = vunpack.c.h.b16 %v2552
    %v2912 = vunpack.c.l.b16 %v2553
    %v2913 = vunpack.c.h.b16 %v2553
    %v2914 = vunpack.c.l.b16 %v2554
    %v2915 = vunpack.c.h.b16 %v2554
    %v2916 = vunpack.c.l.b16 %v2555
    %v2917 = vunpack.c.h.b16 %v2555
    %v2918 = vunpack.c.l.b16 %v2556
    %v2919 = vunpack.c.h.b16 %v2556
    %v2920 = vunpack.c.l.b16 %v2557
    %v2921 = vunpack.c.h.b16 %v2557
    %v2922 = vunpack.c.l.b16 %v2558
    %v2923 = vunpack.c.h.b16 %v2558
    %v2924 = vunpack.c.l.b16 %v2559
    %v2925 = vunpack.c.h.b16 %v2559
    %v2926 = vunpack.c.l.b16 %v2560
    %v2927 = vunpack.c.h.b16 %v2560
    %v2928 = vunpack.c.l.b16 %v2561
    %v2929 = vunpack.c.h.b16 %v2561
    %v2930 = vunpack.c.l.b16 %v2562
    %v2931 = vunpack.c.h.b16 %v2562
    %v2932 = vunpack.c.l.b16 %v2563
    %v2933 = vunpack.c.h.b16 %v2563
    %v2934 = vunpack.c.l.b16 %v2564
    %v2935 = vunpack.c.h.b16 %v2564
    %v2936 = vunpack.c.l.b16 %v2565
    %v2937 = vunpack.c.h.b16 %v2565
    %v2938 = vunpack.c.l.b16 %v2566
    %v2939 = vunpack.c.h.b16 %v2566
    %v2940 = vunpack.c.l.b16 %v2567
    %v2941 = vunpack.c.h.b16 %v2567
    %v2942 = vunpack.c.l.b16 %v2568
    %v2943 = vunpack.c.h.b16 %v2568
    %v2944 = vunpack.c.l.b16 %v2569
    %v2945 = vunpack.c.h.b16 %v2569
    %v2946 = vunpack.c.l.b16 %v2570
    %v2947 = vunpack.c.h.b16 %v2570
    %v2948 = vunpack.c.l.b16 %v2571
    %v2949 = vunpack.c.h.b16 %v2571
    %v2950 = vunpack.c.l.b16 %v2572
    %v2951 = vunpack.c.h.b16 %v2572
    %v2952 = vunpack.c.l.b16 %v2573
    %v2953 = vunpack.c.h.b16 %v2573
    %v2954 = vunpack.c.l.b16 %v2574
    %v2955 = vunpack.c.h.b16 %v2574
    %v2956 = vunpack.c.l.b16 %v2575
    %v2957 = vunpack.c.h.b16 %v2575
    %v2958 = vunpack.c.l.b16 %v2576
    %v2959 = vunpack.c.h.b16 %v2576
    %v2960 = vunpack.c.l.b16 %v2577
    %v2961 = vunpack.c.h.b16 %v2577
    %v2962 = vpack.c.b16 %v2710, %v2706
    %v2963 = vpack.c.b16 %v2711, %v2707
    %v2964 = vpack.c.b16 %v2712, %v2708
    %v2965 = vpack.c.b16 %v2713, %v2709
    %v2966 = vpack.c.b16 %v2718, %v2714
    %v2967 = vpack.c.b16 %v2719, %v2715
    %v2968 = vpack.c.b16 %v2720, %v2716
    %v2969 = vpack.c.b16 %v2721, %v2717
    %v2970 = vpack.c.b16 %v2726, %v2722
    %v2971 = vpack.c.b16 %v2727, %v2723
    %v2972 = vpack.c.b16 %v2728, %v2724
    %v2973 = vpack.c.b16 %v2729, %v2725
    %v2974 = vpack.c.b16 %v2734, %v2730
    %v2975 = vpack.c.b16 %v2735, %v2731
    %v2976 = vpack.c.b16 %v2736, %v2732
    %v2977 = vpack.c.b16 %v2737, %v2733
    %v2978 = vpack.c.b16 %v2742, %v2738
    %v2979 = vpack.c.b16 %v2743, %v2739
    %v2980 = vpack.c.b16 %v2744, %v2740
    %v2981 = vpack.c.b16 %v2745, %v2741
    %v2982 = vpack.c.b16 %v2750, %v2746
    %v2983 = vpack.c.b16 %v2751, %v2747
    %v2984 = vpack.c.b16 %v2752, %v2748
    %v2985 = vpack.c.b16 %v2753, %v2749
    %v2986 = vpack.c.b16 %v2758, %v2754
    %v2987 = vpack.c.b16 %v2759, %v2755
    %v2988 = vpack.c.b16 %v2760, %v2756
    %v2989 = vpack.c.b16 %v2761, %v2757
    %v2990 = vpack.c.b16 %v2766, %v2762
    %v2991 = vpack.c.b16 %v2767, %v2763
    %v2992 = vpack.c.b16 %v2768, %v2764
    %v2993 = vpack.c.b16 %v2769, %v2765
    %v2994 = vpack.c.b16 %v2774, %v2770
    %v2995 = vpack.c.b16 %v2775, %v2771
    %v2996 = vpack.c.b16 %v2776, %v2772
    %v2997 = vpack.c.b16 %v2777, %v2773
    %v2998 = vpack.c.b16 %v2782, %v2778
    %v2999 = vpack.c.b16 %v2783, %v2779
    %v3000 = vpack.c.b16 %v2784, %v2780
    %v3001 = vpack.c.b16 %v2785, %v2781
    %v3002 = vpack.c.b16 %v2790, %v2786
    %v3003 = vpack.c.b16 %v2791, %v2787
    %v3004 = vpack.c.b16 %v2792, %v2788
    %v3005 = vpack.c.b16 %v2793, %v2789
    %v3006 = vpack.c.b16 %v2798, %v2794
    %v3007 = vpack.c.b16 %v2799, %v2795
    %v3008 = vpack.c.b16 %v2800, %v2796
    %v3009 = vpack.c.b16 %v2801, %v2797
    %v3010 = vpack.c.b16 %v2806, %v2802
    %v3011 = vpack.c.b16 %v2807, %v2803
    %v3012 = vpack.c.b16 %v2808, %v2804
    %v3013 = vpack.c.b16 %v2809, %v2805
    %v3014 = vpack.c.b16 %v2814, %v2810
    %v3015 = vpack.c.b16 %v2815, %v2811
    %v3016 = vpack.c.b16 %v2816, %v2812
    %v3017 = vpack.c.b16 %v2817, %v2813
    %v3018 = vpack.c.b16 %v2822, %v2818
    %v3019 = vpack.c.b16 %v2823, %v2819
    %v3020 = vpack.c.b16 %v2824, %v2820
    %v3021 = vpack.c.b16 %v2825, %v2821
    %v3022 = vpack.c.b16 %v2830, %v2826
    %v3023 = vpack.c.b16 %v2831, %v2827
    %v3024 = vpack.c.b16 %v2832, %v2828
    %v3025 = vpack.c.b16 %v2833, %v2829
    %v3026 = vpack.c.b16 %v2838, %v2834
    %v3027 = vpack.c.b16 %v2839, %v2835
    %v3028 = vpack.c.b16 %v2840, %v2836
    %v3029 = vpack.c.b16 %v2841, %v2837
    %v3030 = vpack.c.b16 %v2846, %v2842
    %v3031 = vpack.c.b16 %v2847, %v2843
    %v3032 = vpack.c.b16 %v2848, %v2844
    %v3033 = vpack.c.b16 %v2849, %v2845
    %v3034 = vpack.c.b16 %v2854, %v2850
    %v3035 = vpack.c.b16 %v2855, %v2851
    %v3036 = vpack.c.b16 %v2856, %v2852
    %v3037 = vpack.c.b16 %v2857, %v2853
    %v3038 = vpack.c.b16 %v2862, %v2858
    %v3039 = vpack.c.b16 %v2863, %v2859
    %v3040 = vpack.c.b16 %v2864, %v2860
    %v3041 = vpack.c.b16 %v2865, %v2861
    %v3042 = vpack.c.b16 %v2870, %v2866
    %v3043 = vpack.c.b16 %v2871, %v2867
    %v3044 = vpack.c.b16 %v2872, %v2868
    %v3045 = vpack.c.b16 %v2873, %v2869
    %v3046 = vpack.c.b16 %v2878, %v2874
    %v3047 = vpack.c.b16 %v2879, %v2875
    %v3048 = vpack.c.b16 %v2880, %v2876
    %v3049 = vpack.c.b16 %v2881, %v2877
    %v3050 = vpack.c.b16 %v2886, %v2882
    %v3051 = vpack.c.b16 %v2887, %v2883
    %v3052 = vpack.c.b16 %v2888, %v2884
    %v3053 = vpack.c.b16 %v2889, %v2885
    %v3054 = vpack.c.b16 %v2894, %v2890
    %v3055 = vpack.c.b16 %v2895, %v2891
    %v3056 = vpack.c.b16 %v2896, %v2892
    %v3057 = vpack.c.b16 %v2897, %v2893
    %v3058 = vpack.c.b16 %v2902, %v2898
    %v3059 = vpack.c.b16 %v2903, %v2899
    %v3060 = vpack.c.b16 %v2904, %v2900
    %v3061 = vpack.c.b16 %v2905, %v2901
    %v3062 = vpack.c.b16 %v2910, %v2906
    %v3063 = vpack.c.b16 %v2911, %v2907
    %v3064 = vpack.c.b16 %v2912, %v2908
    %v3065 = vpack.c.b16 %v2913, %v2909
    %v3066 = vpack.c.b16 %v2918, %v2914
    %v3067 = vpack.c.b16 %v2919, %v2915
    %v3068 = vpack.c.b16 %v2920, %v2916
    %v3069 = vpack.c.b16 %v2921, %v2917
    %v3070 = vpack.c.b16 %v2926, %v2922
    %v3071 = vpack.c.b16 %v2927, %v2923
    %v3072 = vpack.c.b16 %v2928, %v2924
    %v3073 = vpack.c.b16 %v2929, %v2925
    %v3074 = vpack.c.b16 %v2934, %v2930
    %v3075 = vpack.c.b16 %v2935, %v2931
    %v3076 = vpack.c.b16 %v2936, %v2932
    %v3077 = vpack.c.b16 %v2937, %v2933
    %v3078 = vpack.c.b16 %v2942, %v2938
    %v3079 = vpack.c.b16 %v2943, %v2939
    %v3080 = vpack.c.b16 %v2944, %v2940
    %v3081 = vpack.c.b16 %v2945, %v2941
    %v3082 = vpack.c.b16 %v2950, %v2946
    %v3083 = vpack.c.b16 %v2951, %v2947
    %v3084 = vpack.c.b16 %v2952, %v2948
    %v3085 = vpack.c.b16 %v2953, %v2949
    %v3086 = vpack.c.b16 %v2958, %v2954
    %v3087 = vpack.c.b16 %v2959, %v2955
    %v3088 = vpack.c.b16 %v2960, %v2956
    %v3089 = vpack.c.b16 %v2961, %v2957
    %3218 = vmatprep.subr.bf16.mxu0 %v2963
    %3219 = vmatpush1.bf16.msra.mxu0 %v2962
    %3220 = vmatprep.subr.bf16.mxu0 %v2967
    %3221 = vmatpush1.bf16.msra.mxu0 %v2966
    %3222 = vmatprep.subr.bf16.mxu0 %v2971
    %3223 = vmatpush1.bf16.msra.mxu0 %v2970
    %3224 = vmatprep.subr.bf16.mxu0 %v2975
    %3225 = vmatpush1.bf16.msra.mxu0 %v2974
    %3226 = vmatprep.subr.bf16.mxu0 %v2979
    %3227 = vmatpush1.bf16.msra.mxu0 %v2978
    %3228 = vmatprep.subr.bf16.mxu0 %v2983
    %3229 = vmatpush1.bf16.msra.mxu0 %v2982
    %3230 = vmatprep.subr.bf16.mxu0 %v2987
    %3231 = vmatpush1.bf16.msra.mxu0 %v2986
    %3232 = vmatprep.subr.bf16.mxu0 %v2991
    %3233 = vmatpush1.bf16.msra.mxu0 %v2990
    %3234 = vmatprep.subr.bf16.mxu0 %v2995
    %3235 = vmatpush1.bf16.msra.mxu0 %v2994
    %3236 = vmatprep.subr.bf16.mxu0 %v2999
    %3237 = vmatpush1.bf16.msra.mxu0 %v2998
    %3238 = vmatprep.subr.bf16.mxu0 %v3003
    %3239 = vmatpush1.bf16.msra.mxu0 %v3002
    %3240 = vmatprep.subr.bf16.mxu0 %v3007
    %3241 = vmatpush1.bf16.msra.mxu0 %v3006
    %3242 = vmatprep.subr.bf16.mxu0 %v3011
    %3243 = vmatpush1.bf16.msra.mxu0 %v3010
    %3244 = vmatprep.subr.bf16.mxu0 %v3015
    %3245 = vmatpush1.bf16.msra.mxu0 %v3014
    %3246 = vmatprep.subr.bf16.mxu0 %v3019
    %3247 = vmatpush1.bf16.msra.mxu0 %v3018
    %3248 = vmatprep.subr.bf16.mxu0 %v3023
    %3249 = vmatpush1.bf16.msra.mxu0 %v3022
    %3250 = vmatprep.mubr.bf16.mxu0 %v2447
    %3251 = vmatmul.mubr.bf16.gmra.mrb[0].mxu0 %v2446
    %v3252 = vpop.f32.mrb[0].mxu0
    %v3253 = vadd.f32 0.0, %v3252
    %v3254 = vpop.f32.mrb[0].mxu0
    %v3255 = vadd.f32 0.0, %v3254
    %v3256 = vpop.f32.mrb[0].mxu0
    %v3257 = vpop.f32.mrb[0].mxu0
    %3258 = vdwg.mxu0
    %3259 = vmatprep.subr.bf16.mxu0 %v3027
    %3260 = vmatpush1.bf16.msra.mxu0 %v3026
    %3261 = vmatprep.subr.bf16.mxu0 %v3031
    %3262 = vmatpush1.bf16.msra.mxu0 %v3030
    %3263 = vmatprep.subr.bf16.mxu0 %v3035
    %3264 = vmatpush1.bf16.msra.mxu0 %v3034
    %3265 = vmatprep.subr.bf16.mxu0 %v3039
    %3266 = vmatpush1.bf16.msra.mxu0 %v3038
    %3267 = vmatprep.subr.bf16.mxu0 %v3043
    %3268 = vmatpush1.bf16.msra.mxu0 %v3042
    %3269 = vmatprep.subr.bf16.mxu0 %v3047
    %3270 = vmatpush1.bf16.msra.mxu0 %v3046
    %3271 = vmatprep.subr.bf16.mxu0 %v3051
    %3272 = vmatpush1.bf16.msra.mxu0 %v3050
    %3273 = vmatprep.subr.bf16.mxu0 %v3055
    %3274 = vmatpush1.bf16.msra.mxu0 %v3054
    %3275 = vmatprep.subr.bf16.mxu0 %v3059
    %3276 = vmatpush1.bf16.msra.mxu0 %v3058
    %3277 = vmatprep.subr.bf16.mxu0 %v3063
    %3278 = vmatpush1.bf16.msra.mxu0 %v3062
    %3279 = vmatprep.subr.bf16.mxu0 %v3067
    %3280 = vmatpush1.bf16.msra.mxu0 %v3066
    %3281 = vmatprep.subr.bf16.mxu0 %v3071
    %3282 = vmatpush1.bf16.msra.mxu0 %v3070
    %3283 = vmatprep.subr.bf16.mxu0 %v3075
    %3284 = vmatpush1.bf16.msra.mxu0 %v3074
    %3285 = vmatprep.subr.bf16.mxu0 %v3079
    %3286 = vmatpush1.bf16.msra.mxu0 %v3078
    %3287 = vmatprep.subr.bf16.mxu0 %v3083
    %3288 = vmatpush1.bf16.msra.mxu0 %v3082
    %3289 = vmatprep.subr.bf16.mxu0 %v3087
    %3290 = vmatpush1.bf16.msra.mxu0 %v3086
    %3291 = vmatprep.mubr.bf16.mxu0 %v2449
    %3292 = vmatmul.mubr.bf16.gmra.mrb[0].mxu0 %v2448
    %v3293 = vpop.f32.mrb[0].mxu0
    %v3294 = vadd.f32 %v3253, %v3293
    %v3295 = vpop.f32.mrb[0].mxu0
    %v3296 = vadd.f32 %v3255, %v3295
    %v3297 = vpop.f32.mrb[0].mxu0
    %v3298 = vpop.f32.mrb[0].mxu0
    %3299 = vdwg.mxu0
    %3300 = vmatprep.subr.bf16.mxu0 %v2965
    %3301 = vmatpush1.bf16.msra.mxu0 %v2964
    %3302 = vmatprep.subr.bf16.mxu0 %v2969
    %3303 = vmatpush1.bf16.msra.mxu0 %v2968
    %3304 = vmatprep.subr.bf16.mxu0 %v2973
    %3305 = vmatpush1.bf16.msra.mxu0 %v2972
    %3306 = vmatprep.subr.bf16.mxu0 %v2977
    %3307 = vmatpush1.bf16.msra.mxu0 %v2976
    %3308 = vmatprep.subr.bf16.mxu0 %v2981
    %3309 = vmatpush1.bf16.msra.mxu0 %v2980
    %3310 = vmatprep.subr.bf16.mxu0 %v2985
    %3311 = vmatpush1.bf16.msra.mxu0 %v2984
    %3312 = vmatprep.subr.bf16.mxu0 %v2989
    %3313 = vmatpush1.bf16.msra.mxu0 %v2988
    %3314 = vmatprep.subr.bf16.mxu0 %v2993
    %3315 = vmatpush1.bf16.msra.mxu0 %v2992
    %3316 = vmatprep.subr.bf16.mxu0 %v2997
    %3317 = vmatpush1.bf16.msra.mxu0 %v2996
    %3318 = vmatprep.subr.bf16.mxu0 %v3001
    %3319 = vmatpush1.bf16.msra.mxu0 %v3000
    %3320 = vmatprep.subr.bf16.mxu0 %v3005
    %3321 = vmatpush1.bf16.msra.mxu0 %v3004
    %3322 = vmatprep.subr.bf16.mxu0 %v3009
    %3323 = vmatpush1.bf16.msra.mxu0 %v3008
    %3324 = vmatprep.subr.bf16.mxu0 %v3013
    %3325 = vmatpush1.bf16.msra.mxu0 %v3012
    %3326 = vmatprep.subr.bf16.mxu0 %v3017
    %3327 = vmatpush1.bf16.msra.mxu0 %v3016
    %3328 = vmatprep.subr.bf16.mxu0 %v3021
    %3329 = vmatpush1.bf16.msra.mxu0 %v3020
    %3330 = vmatprep.subr.bf16.mxu0 %v3025
    %3331 = vmatpush1.bf16.msra.mxu0 %v3024
    %3332 = vmatprep.mubr.bf16.mxu0 %v2447
    %3333 = vmatmul.mubr.bf16.gmra.mrb[0].mxu0 %v2446
    %v3334 = vpop.f32.mrb[0].mxu0
    %v3335 = vadd.f32 0.0, %v3334
    %v3336 = vpop.f32.mrb[0].mxu0
    %v3337 = vadd.f32 0.0, %v3336
    %v3338 = vpop.f32.mrb[0].mxu0
    %v3339 = vpop.f32.mrb[0].mxu0
    %3340 = vdwg.mxu0
    %3341 = vmatprep.subr.bf16.mxu0 %v3029
    %3342 = vmatpush1.bf16.msra.mxu0 %v3028
    %3343 = vmatprep.subr.bf16.mxu0 %v3033
    %3344 = vmatpush1.bf16.msra.mxu0 %v3032
    %3345 = vmatprep.subr.bf16.mxu0 %v3037
    %3346 = vmatpush1.bf16.msra.mxu0 %v3036
    %3347 = vmatprep.subr.bf16.mxu0 %v3041
    %3348 = vmatpush1.bf16.msra.mxu0 %v3040
    %3349 = vmatprep.subr.bf16.mxu0 %v3045
    %3350 = vmatpush1.bf16.msra.mxu0 %v3044
    %3351 = vmatprep.subr.bf16.mxu0 %v3049
    %3352 = vmatpush1.bf16.msra.mxu0 %v3048
    %3353 = vmatprep.subr.bf16.mxu0 %v3053
    %3354 = vmatpush1.bf16.msra.mxu0 %v3052
    %3355 = vmatprep.subr.bf16.mxu0 %v3057
    %3356 = vmatpush1.bf16.msra.mxu0 %v3056
    %3357 = vmatprep.subr.bf16.mxu0 %v3061
    %3358 = vmatpush1.bf16.msra.mxu0 %v3060
    %3359 = vmatprep.subr.bf16.mxu0 %v3065
    %3360 = vmatpush1.bf16.msra.mxu0 %v3064
    %3361 = vmatprep.subr.bf16.mxu0 %v3069
    %3362 = vmatpush1.bf16.msra.mxu0 %v3068
    %3363 = vmatprep.subr.bf16.mxu0 %v3073
    %3364 = vmatpush1.bf16.msra.mxu0 %v3072
    %3365 = vmatprep.subr.bf16.mxu0 %v3077
    %3366 = vmatpush1.bf16.msra.mxu0 %v3076
    %3367 = vmatprep.subr.bf16.mxu0 %v3081
    %3368 = vmatpush1.bf16.msra.mxu0 %v3080
    %3369 = vmatprep.subr.bf16.mxu0 %v3085
    %3370 = vmatpush1.bf16.msra.mxu0 %v3084
    %3371 = vmatprep.subr.bf16.mxu0 %v3089
    %3372 = vmatpush1.bf16.msra.mxu0 %v3088
    %3373 = vmatprep.mubr.bf16.mxu0 %v2449
    %3374 = vmatmul.mubr.bf16.gmra.mrb[0].mxu0 %v2448
    %v3375 = vpop.f32.mrb[0].mxu0
    %v3376 = vadd.f32 %v3335, %v3375
    %v3377 = vpop.f32.mrb[0].mxu0
    %v3378 = vadd.f32 %v3337, %v3377
    %v3379 = vpop.f32.mrb[0].mxu0
    %v3380 = vpop.f32.mrb[0].mxu0
    %3381 = vdwg.mxu0
    %v3398 = vunpack.c.l.b16 %v2430
    %v3399 = vunpack.c.h.b16 %v2430
    %v3400 = vunpack.c.l.b16 %v2431
    %v3401 = vunpack.c.h.b16 %v2431
    %v3402 = vunpack.c.l.b16 %v2432
    %v3403 = vunpack.c.h.b16 %v2432
    %v3404 = vunpack.c.l.b16 %v2433
    %v3405 = vunpack.c.h.b16 %v2433
    %v3406 = vunpack.c.l.b16 %v2434
    %v3407 = vunpack.c.h.b16 %v2434
    %v3408 = vunpack.c.l.b16 %v2435
    %v3409 = vunpack.c.h.b16 %v2435
    %v3410 = vunpack.c.l.b16 %v2436
    %v3411 = vunpack.c.h.b16 %v2436
    %v3412 = vunpack.c.l.b16 %v2437
    %v3413 = vunpack.c.h.b16 %v2437
    %v3414 = vunpack.c.l.b16 %v2438
    %v3415 = vunpack.c.h.b16 %v2438
    %v3416 = vunpack.c.l.b16 %v2439
    %v3417 = vunpack.c.h.b16 %v2439
    %v3418 = vunpack.c.l.b16 %v2440
    %v3419 = vunpack.c.h.b16 %v2440
    %v3420 = vunpack.c.l.b16 %v2441
    %v3421 = vunpack.c.h.b16 %v2441
    %v3422 = vunpack.c.l.b16 %v2442
    %v3423 = vunpack.c.h.b16 %v2442
    %v3424 = vunpack.c.l.b16 %v2443
    %v3425 = vunpack.c.h.b16 %v2443
    %v3426 = vunpack.c.l.b16 %v2444
    %v3427 = vunpack.c.h.b16 %v2444
    %v3428 = vunpack.c.l.b16 %v2445
    %v3429 = vunpack.c.h.b16 %v2445
    %v3430 = vpack.c.b16 %v3402, %v3398
    %v3431 = vpack.c.b16 %v3403, %v3399
    %v3432 = vpack.c.b16 %v3404, %v3400
    %v3433 = vpack.c.b16 %v3405, %v3401
    %v3434 = vpack.c.b16 %v3410, %v3406
    %v3435 = vpack.c.b16 %v3411, %v3407
    %v3436 = vpack.c.b16 %v3412, %v3408
    %v3437 = vpack.c.b16 %v3413, %v3409
    %v3438 = vpack.c.b16 %v3418, %v3414
    %v3439 = vpack.c.b16 %v3419, %v3415
    %v3440 = vpack.c.b16 %v3420, %v3416
    %v3441 = vpack.c.b16 %v3421, %v3417
    %v3442 = vpack.c.b16 %v3426, %v3422
    %v3443 = vpack.c.b16 %v3427, %v3423
    %v3444 = vpack.c.b16 %v3428, %v3424
    %v3445 = vpack.c.b16 %v3429, %v3425
    %3462 = vmatprep.subr.bf16.mxu0 %v3431
    %3463 = vmatpush1.bf16.msra.mxu0 %v3430
    %3464 = vmatprep.subr.bf16.mxu0 %v3435
    %3465 = vmatpush1.bf16.msra.mxu0 %v3434
    %3466 = vmatprep.subr.bf16.mxu0 %v3439
    %3467 = vmatpush1.bf16.msra.mxu0 %v3438
    %3468 = vmatprep.subr.bf16.mxu0 %v3443
    %3469 = vmatpush1.bf16.msra.mxu0 %v3442
    %3470 = vmatprep.subr.bf16.mxu0 0
    %3471 = vmatpush1.bf16.msra.mxu0 0
    %3472 = vmatprep.subr.bf16.mxu0 0
    %3473 = vmatpush1.bf16.msra.mxu0 0
    %3474 = vmatprep.subr.bf16.mxu0 0
    %3475 = vmatpush1.bf16.msra.mxu0 0
    %3476 = vmatprep.subr.bf16.mxu0 0
    %3477 = vmatpush1.bf16.msra.mxu0 0
    %3478 = vmatprep.subr.bf16.mxu0 0
    %3479 = vmatpush1.bf16.msra.mxu0 0
    %3480 = vmatprep.subr.bf16.mxu0 0
    %3481 = vmatpush1.bf16.msra.mxu0 0
    %3482 = vmatprep.subr.bf16.mxu0 0
    %3483 = vmatpush1.bf16.msra.mxu0 0
    %3484 = vmatprep.subr.bf16.mxu0 0
    %3485 = vmatpush1.bf16.msra.mxu0 0
    %3486 = vmatprep.subr.bf16.mxu0 0
    %3487 = vmatpush1.bf16.msra.mxu0 0
    %3488 = vmatprep.subr.bf16.mxu0 0
    %3489 = vmatpush1.bf16.msra.mxu0 0
    %3490 = vmatprep.subr.bf16.mxu0 0
    %3491 = vmatpush1.bf16.msra.mxu0 0
    %3492 = vmatprep.subr.bf16.mxu0 0
    %3493 = vmatpush1.bf16.msra.mxu0 0
    %3494 = vmatprep.mubr.bf16.mxu0 0
    %3495 = vmatmul.mubr.bf16.gmra.mrb[0].mxu0 %v362
    %v3496 = vpop.f32.mrb[0].mxu0
    %v3497 = vadd.f32 %v3294, %v3496
    %v3498 = vpop.f32.mrb[0].mxu0
    %v3499 = vadd.f32 %v3296, %v3498
    %v3500 = vpop.f32.mrb[0].mxu0
    %v3501 = vpop.f32.mrb[0].mxu0
    %3502 = vdwg.mxu0
    %3503 = vmatprep.subr.bf16.mxu0 %v3433
    %3504 = vmatpush1.bf16.msra.mxu0 %v3432
    %3505 = vmatprep.subr.bf16.mxu0 %v3437
    %3506 = vmatpush1.bf16.msra.mxu0 %v3436
    %3507 = vmatprep.subr.bf16.mxu0 %v3441
    %3508 = vmatpush1.bf16.msra.mxu0 %v3440
    %3509 = vmatprep.subr.bf16.mxu0 %v3445
    %3510 = vmatpush1.bf16.msra.mxu0 %v3444
    %3511 = vmatprep.subr.bf16.mxu0 0
    %3512 = vmatpush1.bf16.msra.mxu0 0
    %3513 = vmatprep.subr.bf16.mxu0 0
    %3514 = vmatpush1.bf16.msra.mxu0 0
    %3515 = vmatprep.subr.bf16.mxu0 0
    %3516 = vmatpush1.bf16.msra.mxu0 0
    %3517 = vmatprep.subr.bf16.mxu0 0
    %3518 = vmatpush1.bf16.msra.mxu0 0
    %3519 = vmatprep.subr.bf16.mxu0 0
    %3520 = vmatpush1.bf16.msra.mxu0 0
    %3521 = vmatprep.subr.bf16.mxu0 0
    %3522 = vmatpush1.bf16.msra.mxu0 0
    %3523 = vmatprep.subr.bf16.mxu0 0
    %3524 = vmatpush1.bf16.msra.mxu0 0
    %3525 = vmatprep.subr.bf16.mxu0 0
    %3526 = vmatpush1.bf16.msra.mxu0 0
    %3527 = vmatprep.subr.bf16.mxu0 0
    %3528 = vmatpush1.bf16.msra.mxu0 0
    %3529 = vmatprep.subr.bf16.mxu0 0
    %3530 = vmatpush1.bf16.msra.mxu0 0
    %3531 = vmatprep.subr.bf16.mxu0 0
    %3532 = vmatpush1.bf16.msra.mxu0 0
    %3533 = vmatprep.subr.bf16.mxu0 0
    %3534 = vmatpush1.bf16.msra.mxu0 0
    %3535 = vmatprep.mubr.bf16.mxu0 0
    %3536 = vmatmul.mubr.bf16.gmra.mrb[0].mxu0 %v362
    %v3537 = vpop.f32.mrb[0].mxu0
    %v3538 = vadd.f32 %v3376, %v3537
    %v3539 = vpop.f32.mrb[0].mxu0
    %v3540 = vadd.f32 %v3378, %v3539
    %v3541 = vpop.f32.mrb[0].mxu0
    %v3542 = vpop.f32.mrb[0].mxu0
    %3543 = vdwg.mxu0
    %v3544 = vld [vmem:[%s7] sm:$0xf]
    %v3546 = vlaneseq
    %v3547 = vshrl.u32 %v3546, 7
    %v3548 = vsub.s32 0, %v3547
    %v3549 = vrot.slane %v3544, %v3548
    %v3550 = vlaneseq
    %v3551 = vshrl.u32 %v3550, 7
    %v3552 = vsub.s32 1, %v3551
    %v3553 = vrot.slane %v3544, %v3552
    %v3554 = vlaneseq
    %v3555 = vshrl.u32 %v3554, 7
    %v3556 = vsub.s32 2, %v3555
    %v3557 = vrot.slane %v3544, %v3556
    %v3558 = vlaneseq
    %v3559 = vshrl.u32 %v3558, 7
    %v3560 = vsub.s32 3, %v3559
    %v3561 = vrot.slane %v3544, %v3560
    %v3566 = vadd.f32 %v3497, %v3549
    %v3567 = vadd.f32 %v3499, %v3553
    %v3568 = vadd.f32 %v3538, %v3557
    %v3569 = vadd.f32 %v3540, %v3561
    %v3570 = vtanh.pop %v3566
    %v3571 = vtanh.pop %v3567
    %v3572 = vtanh.pop %v3568
    %v3573 = vtanh.pop %v3569
    %v3574 = vpack.c.bf16 %v3570, %v3570
    %v3575 = vpack.c.bf16 %v3571, %v3571
    %v3576 = vpack.c.bf16 %v3572, %v3572
    %v3577 = vpack.c.bf16 %v3573, %v3573
    %v3578 = vld [vmem:[#allocation9] sm:$0xff]
    %v3579 = vld [vmem:[#allocation9 + $0x8] sm:$0xff]
    %v3580 = vld [vmem:[#allocation9 + $0x10] sm:$0xff]
    %v3581 = vld [vmem:[#allocation9 + $0x18] sm:$0xff]
    %v3582 = vld [vmem:[#allocation9 + $0x20] sm:$0xff]
    %v3583 = vld [vmem:[#allocation9 + $0x28] sm:$0xff]
    %v3584 = vld [vmem:[#allocation9 + $0x30] sm:$0xff]
    %v3585 = vld [vmem:[#allocation9 + $0x38] sm:$0xff]
    %v3586 = vld [vmem:[#allocation9 + $0x40] sm:$0xff]
    %v3587 = vld [vmem:[#allocation9 + $0x48] sm:$0xff]
    %v3588 = vld [vmem:[#allocation9 + $0x50] sm:$0xff]
    %v3589 = vld [vmem:[#allocation9 + $0x58] sm:$0xff]
    %v3590 = vld [vmem:[#allocation9 + $0x60] sm:$0xff]
    %v3591 = vld [vmem:[#allocation9 + $0x68] sm:$0xff]
    %v3592 = vld [vmem:[#allocation9 + $0x70] sm:$0xff]
    %v3593 = vld [vmem:[#allocation9 + $0x78] sm:$0xff]
    %v3594 = vld [vmem:[#allocation9 + $0x80] sm:$0xff]
    %v3595 = vld [vmem:[#allocation9 + $0x88] sm:$0xff]
    %v3596 = vld [vmem:[#allocation9 + $0x90] sm:$0xff]
    %v3597 = vld [vmem:[#allocation9 + $0x98] sm:$0xff]
    %v3598 = vld [vmem:[#allocation9 + $0xa0] sm:$0xff]
    %v3599 = vld [vmem:[#allocation9 + $0xa8] sm:$0xff]
    %v3600 = vld [vmem:[#allocation9 + $0xb0] sm:$0xff]
    %v3601 = vld [vmem:[#allocation9 + $0xb8] sm:$0xff]
    %v3602 = vld [vmem:[#allocation9 + $0xc0] sm:$0xff]
    %v3603 = vld [vmem:[#allocation9 + $0xc8] sm:$0xff]
    %v3604 = vld [vmem:[#allocation9 + $0xd0] sm:$0xff]
    %v3605 = vld [vmem:[#allocation9 + $0xd8] sm:$0xff]
    %v3606 = vld [vmem:[#allocation9 + $0xe0] sm:$0xff]
    %v3607 = vld [vmem:[#allocation9 + $0xe8] sm:$0xff]
    %v3608 = vld [vmem:[#allocation9 + $0xf0] sm:$0xff]
    %v3609 = vld [vmem:[#allocation9 + $0xf8] sm:$0xff]
    %v3610 = vld [vmem:[#allocation9 + $0x100] sm:$0xff]
    %v3611 = vld [vmem:[#allocation9 + $0x108] sm:$0xff]
    %v3612 = vld [vmem:[#allocation9 + $0x110] sm:$0xff]
    %v3613 = vld [vmem:[#allocation9 + $0x118] sm:$0xff]
    %v3614 = vld [vmem:[#allocation9 + $0x120] sm:$0xff]
    %v3615 = vld [vmem:[#allocation9 + $0x128] sm:$0xff]
    %v3616 = vld [vmem:[#allocation9 + $0x130] sm:$0xff]
    %v3617 = vld [vmem:[#allocation9 + $0x138] sm:$0xff]
    %v3618 = vld [vmem:[#allocation9 + $0x140] sm:$0xff]
    %v3619 = vld [vmem:[#allocation9 + $0x148] sm:$0xff]
    %v3620 = vld [vmem:[#allocation9 + $0x150] sm:$0xff]
    %v3621 = vld [vmem:[#allocation9 + $0x158] sm:$0xff]
    %v3622 = vld [vmem:[#allocation9 + $0x160] sm:$0xff]
    %v3623 = vld [vmem:[#allocation9 + $0x168] sm:$0xff]
    %v3624 = vld [vmem:[#allocation9 + $0x170] sm:$0xff]
    %v3625 = vld [vmem:[#allocation9 + $0x178] sm:$0xff]
    %v3626 = vld [vmem:[#allocation9 + $0x180] sm:$0xff]
    %v3627 = vld [vmem:[#allocation9 + $0x188] sm:$0xff]
    %v3628 = vld [vmem:[#allocation9 + $0x190] sm:$0xff]
    %v3629 = vld [vmem:[#allocation9 + $0x198] sm:$0xff]
    %v3630 = vld [vmem:[#allocation9 + $0x1a0] sm:$0xff]
    %v3631 = vld [vmem:[#allocation9 + $0x1a8] sm:$0xff]
    %v3632 = vld [vmem:[#allocation9 + $0x1b0] sm:$0xff]
    %v3633 = vld [vmem:[#allocation9 + $0x1b8] sm:$0xff]
    %v3634 = vld [vmem:[#allocation9 + $0x1c0] sm:$0xff]
    %v3635 = vld [vmem:[#allocation9 + $0x1c8] sm:$0xff]
    %v3636 = vld [vmem:[#allocation9 + $0x1d0] sm:$0xff]
    %v3637 = vld [vmem:[#allocation9 + $0x1d8] sm:$0xff]
    %v3638 = vld [vmem:[#allocation9 + $0x1e0] sm:$0xff]
    %v3639 = vld [vmem:[#allocation9 + $0x1e8] sm:$0xff]
    %v3640 = vld [vmem:[#allocation9 + $0x1f0] sm:$0xff]
    %v3641 = vld [vmem:[#allocation9 + $0x1f8] sm:$0xff]
    %v3642 = vld [vmem:[#allocation9 + $0x200] sm:$0xff]
    %v3643 = vld [vmem:[#allocation9 + $0x208] sm:$0xff]
    %v3644 = vld [vmem:[#allocation9 + $0x210] sm:$0xff]
    %v3645 = vld [vmem:[#allocation9 + $0x218] sm:$0xff]
    %v3646 = vld [vmem:[#allocation9 + $0x220] sm:$0xff]
    %v3647 = vld [vmem:[#allocation9 + $0x228] sm:$0xff]
    %v3648 = vld [vmem:[#allocation9 + $0x230] sm:$0xff]
    %v3649 = vld [vmem:[#allocation9 + $0x238] sm:$0xff]
    %v3650 = vld [vmem:[#allocation9 + $0x240] sm:$0xff]
    %v3651 = vld [vmem:[#allocation9 + $0x248] sm:$0xff]
    %v3652 = vld [vmem:[#allocation9 + $0x250] sm:$0xff]
    %v3653 = vld [vmem:[#allocation9 + $0x258] sm:$0xff]
    %v3654 = vld [vmem:[#allocation9 + $0x260] sm:$0xff]
    %v3655 = vld [vmem:[#allocation9 + $0x268] sm:$0xff]
    %v3656 = vld [vmem:[#allocation9 + $0x270] sm:$0xff]
    %v3657 = vld [vmem:[#allocation9 + $0x278] sm:$0xff]
    %v3658 = vld [vmem:[#allocation9 + $0x280] sm:$0xff]
    %v3659 = vld [vmem:[#allocation9 + $0x288] sm:$0xff]
    %v3660 = vld [vmem:[#allocation9 + $0x290] sm:$0xff]
    %v3661 = vld [vmem:[#allocation9 + $0x298] sm:$0xff]
    %v3662 = vld [vmem:[#allocation9 + $0x2a0] sm:$0xff]
    %v3663 = vld [vmem:[#allocation9 + $0x2a8] sm:$0xff]
    %v3664 = vld [vmem:[#allocation9 + $0x2b0] sm:$0xff]
    %v3665 = vld [vmem:[#allocation9 + $0x2b8] sm:$0xff]
    %v3666 = vld [vmem:[#allocation9 + $0x2c0] sm:$0xff]
    %v3667 = vld [vmem:[#allocation9 + $0x2c8] sm:$0xff]
    %v3668 = vld [vmem:[#allocation9 + $0x2d0] sm:$0xff]
    %v3669 = vld [vmem:[#allocation9 + $0x2d8] sm:$0xff]
    %v3670 = vld [vmem:[#allocation9 + $0x2e0] sm:$0xff]
    %v3671 = vld [vmem:[#allocation9 + $0x2e8] sm:$0xff]
    %v3672 = vld [vmem:[#allocation9 + $0x2f0] sm:$0xff]
    %v3673 = vld [vmem:[#allocation9 + $0x2f8] sm:$0xff]
    %v3674 = vld [vmem:[#allocation9 + $0x300] sm:$0xff]
    %v3675 = vld [vmem:[#allocation9 + $0x308] sm:$0xff]
    %v3676 = vld [vmem:[#allocation9 + $0x310] sm:$0xff]
    %v3677 = vld [vmem:[#allocation9 + $0x318] sm:$0xff]
    %v3678 = vld [vmem:[#allocation9 + $0x320] sm:$0xff]
    %v3679 = vld [vmem:[#allocation9 + $0x328] sm:$0xff]
    %v3680 = vld [vmem:[#allocation9 + $0x330] sm:$0xff]
    %v3681 = vld [vmem:[#allocation9 + $0x338] sm:$0xff]
    %v3682 = vld [vmem:[#allocation9 + $0x340] sm:$0xff]
    %v3683 = vld [vmem:[#allocation9 + $0x348] sm:$0xff]
    %v3684 = vld [vmem:[#allocation9 + $0x350] sm:$0xff]
    %v3685 = vld [vmem:[#allocation9 + $0x358] sm:$0xff]
    %v3686 = vld [vmem:[#allocation9 + $0x360] sm:$0xff]
    %v3687 = vld [vmem:[#allocation9 + $0x368] sm:$0xff]
    %v3688 = vld [vmem:[#allocation9 + $0x370] sm:$0xff]
    %v3689 = vld [vmem:[#allocation9 + $0x378] sm:$0xff]
    %v3690 = vld [vmem:[#allocation9 + $0x380] sm:$0xff]
    %v3691 = vld [vmem:[#allocation9 + $0x388] sm:$0xff]
    %v3692 = vld [vmem:[#allocation9 + $0x390] sm:$0xff]
    %v3693 = vld [vmem:[#allocation9 + $0x398] sm:$0xff]
    %v3694 = vld [vmem:[#allocation9 + $0x3a0] sm:$0xff]
    %v3695 = vld [vmem:[#allocation9 + $0x3a8] sm:$0xff]
    %v3696 = vld [vmem:[#allocation9 + $0x3b0] sm:$0xff]
    %v3697 = vld [vmem:[#allocation9 + $0x3b8] sm:$0xff]
    %v3698 = vld [vmem:[#allocation9 + $0x3c0] sm:$0xff]
    %v3699 = vld [vmem:[#allocation9 + $0x3c8] sm:$0xff]
    %v3700 = vld [vmem:[#allocation9 + $0x3d0] sm:$0xff]
    %v3701 = vld [vmem:[#allocation9 + $0x3d8] sm:$0xff]
    %v3702 = vld [vmem:[#allocation9 + $0x3e0] sm:$0xff]
    %v3703 = vld [vmem:[#allocation9 + $0x3e8] sm:$0xff]
    %v3704 = vld [vmem:[#allocation9 + $0x3f0] sm:$0xff]
    %v3705 = vld [vmem:[#allocation9 + $0x3f8] sm:$0xff]
    %v3706 = vld [vmem:[%s9] sm:$0xf]
    %v3708 = vlaneseq
    %v3709 = vshrl.u32 %v3708, 7
    %v3710 = vsub.s32 0, %v3709
    %v3711 = vrot.slane %v3706, %v3710
    %v3712 = vlaneseq
    %v3713 = vshrl.u32 %v3712, 7
    %v3714 = vsub.s32 1, %v3713
    %v3715 = vrot.slane %v3706, %v3714
    %v3716 = vlaneseq
    %v3717 = vshrl.u32 %v3716, 7
    %v3718 = vsub.s32 2, %v3717
    %v3719 = vrot.slane %v3706, %v3718
    %v3720 = vlaneseq
    %v3721 = vshrl.u32 %v3720, 7
    %v3722 = vsub.s32 3, %v3721
    %v3723 = vrot.slane %v3706, %v3722
    %v3856 = vunpack.c.l.b16 %v3578
    %v3857 = vunpack.c.h.b16 %v3578
    %v3858 = vunpack.c.l.b16 %v3579
    %v3859 = vunpack.c.h.b16 %v3579
    %v3860 = vunpack.c.l.b16 %v3580
    %v3861 = vunpack.c.h.b16 %v3580
    %v3862 = vunpack.c.l.b16 %v3581
    %v3863 = vunpack.c.h.b16 %v3581
    %v3864 = vunpack.c.l.b16 %v3582
    %v3865 = vunpack.c.h.b16 %v3582
    %v3866 = vunpack.c.l.b16 %v3583
    %v3867 = vunpack.c.h.b16 %v3583
    %v3868 = vunpack.c.l.b16 %v3584
    %v3869 = vunpack.c.h.b16 %v3584
    %v3870 = vunpack.c.l.b16 %v3585
    %v3871 = vunpack.c.h.b16 %v3585
    %v3872 = vunpack.c.l.b16 %v3586
    %v3873 = vunpack.c.h.b16 %v3586
    %v3874 = vunpack.c.l.b16 %v3587
    %v3875 = vunpack.c.h.b16 %v3587
    %v3876 = vunpack.c.l.b16 %v3588
    %v3877 = vunpack.c.h.b16 %v3588
    %v3878 = vunpack.c.l.b16 %v3589
    %v3879 = vunpack.c.h.b16 %v3589
    %v3880 = vunpack.c.l.b16 %v3590
    %v3881 = vunpack.c.h.b16 %v3590
    %v3882 = vunpack.c.l.b16 %v3591
    %v3883 = vunpack.c.h.b16 %v3591
    %v3884 = vunpack.c.l.b16 %v3592
    %v3885 = vunpack.c.h.b16 %v3592
    %v3886 = vunpack.c.l.b16 %v3593
    %v3887 = vunpack.c.h.b16 %v3593
    %v3888 = vunpack.c.l.b16 %v3594
    %v3889 = vunpack.c.h.b16 %v3594
    %v3890 = vunpack.c.l.b16 %v3595
    %v3891 = vunpack.c.h.b16 %v3595
    %v3892 = vunpack.c.l.b16 %v3596
    %v3893 = vunpack.c.h.b16 %v3596
    %v3894 = vunpack.c.l.b16 %v3597
    %v3895 = vunpack.c.h.b16 %v3597
    %v3896 = vunpack.c.l.b16 %v3598
    %v3897 = vunpack.c.h.b16 %v3598
    %v3898 = vunpack.c.l.b16 %v3599
    %v3899 = vunpack.c.h.b16 %v3599
    %v3900 = vunpack.c.l.b16 %v3600
    %v3901 = vunpack.c.h.b16 %v3600
    %v3902 = vunpack.c.l.b16 %v3601
    %v3903 = vunpack.c.h.b16 %v3601
    %v3904 = vunpack.c.l.b16 %v3602
    %v3905 = vunpack.c.h.b16 %v3602
    %v3906 = vunpack.c.l.b16 %v3603
    %v3907 = vunpack.c.h.b16 %v3603
    %v3908 = vunpack.c.l.b16 %v3604
    %v3909 = vunpack.c.h.b16 %v3604
    %v3910 = vunpack.c.l.b16 %v3605
    %v3911 = vunpack.c.h.b16 %v3605
    %v3912 = vunpack.c.l.b16 %v3606
    %v3913 = vunpack.c.h.b16 %v3606
    %v3914 = vunpack.c.l.b16 %v3607
    %v3915 = vunpack.c.h.b16 %v3607
    %v3916 = vunpack.c.l.b16 %v3608
    %v3917 = vunpack.c.h.b16 %v3608
    %v3918 = vunpack.c.l.b16 %v3609
    %v3919 = vunpack.c.h.b16 %v3609
    %v3920 = vunpack.c.l.b16 %v3610
    %v3921 = vunpack.c.h.b16 %v3610
    %v3922 = vunpack.c.l.b16 %v3611
    %v3923 = vunpack.c.h.b16 %v3611
    %v3924 = vunpack.c.l.b16 %v3612
    %v3925 = vunpack.c.h.b16 %v3612
    %v3926 = vunpack.c.l.b16 %v3613
    %v3927 = vunpack.c.h.b16 %v3613
    %v3928 = vunpack.c.l.b16 %v3614
    %v3929 = vunpack.c.h.b16 %v3614
    %v3930 = vunpack.c.l.b16 %v3615
    %v3931 = vunpack.c.h.b16 %v3615
    %v3932 = vunpack.c.l.b16 %v3616
    %v3933 = vunpack.c.h.b16 %v3616
    %v3934 = vunpack.c.l.b16 %v3617
    %v3935 = vunpack.c.h.b16 %v3617
    %v3936 = vunpack.c.l.b16 %v3618
    %v3937 = vunpack.c.h.b16 %v3618
    %v3938 = vunpack.c.l.b16 %v3619
    %v3939 = vunpack.c.h.b16 %v3619
    %v3940 = vunpack.c.l.b16 %v3620
    %v3941 = vunpack.c.h.b16 %v3620
    %v3942 = vunpack.c.l.b16 %v3621
    %v3943 = vunpack.c.h.b16 %v3621
    %v3944 = vunpack.c.l.b16 %v3622
    %v3945 = vunpack.c.h.b16 %v3622
    %v3946 = vunpack.c.l.b16 %v3623
    %v3947 = vunpack.c.h.b16 %v3623
    %v3948 = vunpack.c.l.b16 %v3624
    %v3949 = vunpack.c.h.b16 %v3624
    %v3950 = vunpack.c.l.b16 %v3625
    %v3951 = vunpack.c.h.b16 %v3625
    %v3952 = vunpack.c.l.b16 %v3626
    %v3953 = vunpack.c.h.b16 %v3626
    %v3954 = vunpack.c.l.b16 %v3627
    %v3955 = vunpack.c.h.b16 %v3627
    %v3956 = vunpack.c.l.b16 %v3628
    %v3957 = vunpack.c.h.b16 %v3628
    %v3958 = vunpack.c.l.b16 %v3629
    %v3959 = vunpack.c.h.b16 %v3629
    %v3960 = vunpack.c.l.b16 %v3630
    %v3961 = vunpack.c.h.b16 %v3630
    %v3962 = vunpack.c.l.b16 %v3631
    %v3963 = vunpack.c.h.b16 %v3631
    %v3964 = vunpack.c.l.b16 %v3632
    %v3965 = vunpack.c.h.b16 %v3632
    %v3966 = vunpack.c.l.b16 %v3633
    %v3967 = vunpack.c.h.b16 %v3633
    %v3968 = vunpack.c.l.b16 %v3634
    %v3969 = vunpack.c.h.b16 %v3634
    %v3970 = vunpack.c.l.b16 %v3635
    %v3971 = vunpack.c.h.b16 %v3635
    %v3972 = vunpack.c.l.b16 %v3636
    %v3973 = vunpack.c.h.b16 %v3636
    %v3974 = vunpack.c.l.b16 %v3637
    %v3975 = vunpack.c.h.b16 %v3637
    %v3976 = vunpack.c.l.b16 %v3638
    %v3977 = vunpack.c.h.b16 %v3638
    %v3978 = vunpack.c.l.b16 %v3639
    %v3979 = vunpack.c.h.b16 %v3639
    %v3980 = vunpack.c.l.b16 %v3640
    %v3981 = vunpack.c.h.b16 %v3640
    %v3982 = vunpack.c.l.b16 %v3641
    %v3983 = vunpack.c.h.b16 %v3641
    %v3984 = vunpack.c.l.b16 %v3642
    %v3985 = vunpack.c.h.b16 %v3642
    %v3986 = vunpack.c.l.b16 %v3643
    %v3987 = vunpack.c.h.b16 %v3643
    %v3988 = vunpack.c.l.b16 %v3644
    %v3989 = vunpack.c.h.b16 %v3644
    %v3990 = vunpack.c.l.b16 %v3645
    %v3991 = vunpack.c.h.b16 %v3645
    %v3992 = vunpack.c.l.b16 %v3646
    %v3993 = vunpack.c.h.b16 %v3646
    %v3994 = vunpack.c.l.b16 %v3647
    %v3995 = vunpack.c.h.b16 %v3647
    %v3996 = vunpack.c.l.b16 %v3648
    %v3997 = vunpack.c.h.b16 %v3648
    %v3998 = vunpack.c.l.b16 %v3649
    %v3999 = vunpack.c.h.b16 %v3649
    %v4000 = vunpack.c.l.b16 %v3650
    %v4001 = vunpack.c.h.b16 %v3650
    %v4002 = vunpack.c.l.b16 %v3651
    %v4003 = vunpack.c.h.b16 %v3651
    %v4004 = vunpack.c.l.b16 %v3652
    %v4005 = vunpack.c.h.b16 %v3652
    %v4006 = vunpack.c.l.b16 %v3653
    %v4007 = vunpack.c.h.b16 %v3653
    %v4008 = vunpack.c.l.b16 %v3654
    %v4009 = vunpack.c.h.b16 %v3654
    %v4010 = vunpack.c.l.b16 %v3655
    %v4011 = vunpack.c.h.b16 %v3655
    %v4012 = vunpack.c.l.b16 %v3656
    %v4013 = vunpack.c.h.b16 %v3656
    %v4014 = vunpack.c.l.b16 %v3657
    %v4015 = vunpack.c.h.b16 %v3657
    %v4016 = vunpack.c.l.b16 %v3658
    %v4017 = vunpack.c.h.b16 %v3658
    %v4018 = vunpack.c.l.b16 %v3659
    %v4019 = vunpack.c.h.b16 %v3659
    %v4020 = vunpack.c.l.b16 %v3660
    %v4021 = vunpack.c.h.b16 %v3660
    %v4022 = vunpack.c.l.b16 %v3661
    %v4023 = vunpack.c.h.b16 %v3661
    %v4024 = vunpack.c.l.b16 %v3662
    %v4025 = vunpack.c.h.b16 %v3662
    %v4026 = vunpack.c.l.b16 %v3663
    %v4027 = vunpack.c.h.b16 %v3663
    %v4028 = vunpack.c.l.b16 %v3664
    %v4029 = vunpack.c.h.b16 %v3664
    %v4030 = vunpack.c.l.b16 %v3665
    %v4031 = vunpack.c.h.b16 %v3665
    %v4032 = vunpack.c.l.b16 %v3666
    %v4033 = vunpack.c.h.b16 %v3666
    %v4034 = vunpack.c.l.b16 %v3667
    %v4035 = vunpack.c.h.b16 %v3667
    %v4036 = vunpack.c.l.b16 %v3668
    %v4037 = vunpack.c.h.b16 %v3668
    %v4038 = vunpack.c.l.b16 %v3669
    %v4039 = vunpack.c.h.b16 %v3669
    %v4040 = vunpack.c.l.b16 %v3670
    %v4041 = vunpack.c.h.b16 %v3670
    %v4042 = vunpack.c.l.b16 %v3671
    %v4043 = vunpack.c.h.b16 %v3671
    %v4044 = vunpack.c.l.b16 %v3672
    %v4045 = vunpack.c.h.b16 %v3672
    %v4046 = vunpack.c.l.b16 %v3673
    %v4047 = vunpack.c.h.b16 %v3673
    %v4048 = vunpack.c.l.b16 %v3674
    %v4049 = vunpack.c.h.b16 %v3674
    %v4050 = vunpack.c.l.b16 %v3675
    %v4051 = vunpack.c.h.b16 %v3675
    %v4052 = vunpack.c.l.b16 %v3676
    %v4053 = vunpack.c.h.b16 %v3676
    %v4054 = vunpack.c.l.b16 %v3677
    %v4055 = vunpack.c.h.b16 %v3677
    %v4056 = vunpack.c.l.b16 %v3678
    %v4057 = vunpack.c.h.b16 %v3678
    %v4058 = vunpack.c.l.b16 %v3679
    %v4059 = vunpack.c.h.b16 %v3679
    %v4060 = vunpack.c.l.b16 %v3680
    %v4061 = vunpack.c.h.b16 %v3680
    %v4062 = vunpack.c.l.b16 %v3681
    %v4063 = vunpack.c.h.b16 %v3681
    %v4064 = vunpack.c.l.b16 %v3682
    %v4065 = vunpack.c.h.b16 %v3682
    %v4066 = vunpack.c.l.b16 %v3683
    %v4067 = vunpack.c.h.b16 %v3683
    %v4068 = vunpack.c.l.b16 %v3684
    %v4069 = vunpack.c.h.b16 %v3684
    %v4070 = vunpack.c.l.b16 %v3685
    %v4071 = vunpack.c.h.b16 %v3685
    %v4072 = vunpack.c.l.b16 %v3686
    %v4073 = vunpack.c.h.b16 %v3686
    %v4074 = vunpack.c.l.b16 %v3687
    %v4075 = vunpack.c.h.b16 %v3687
    %v4076 = vunpack.c.l.b16 %v3688
    %v4077 = vunpack.c.h.b16 %v3688
    %v4078 = vunpack.c.l.b16 %v3689
    %v4079 = vunpack.c.h.b16 %v3689
    %v4080 = vunpack.c.l.b16 %v3690
    %v4081 = vunpack.c.h.b16 %v3690
    %v4082 = vunpack.c.l.b16 %v3691
    %v4083 = vunpack.c.h.b16 %v3691
    %v4084 = vunpack.c.l.b16 %v3692
    %v4085 = vunpack.c.h.b16 %v3692
    %v4086 = vunpack.c.l.b16 %v3693
    %v4087 = vunpack.c.h.b16 %v3693
    %v4088 = vunpack.c.l.b16 %v3694
    %v4089 = vunpack.c.h.b16 %v3694
    %v4090 = vunpack.c.l.b16 %v3695
    %v4091 = vunpack.c.h.b16 %v3695
    %v4092 = vunpack.c.l.b16 %v3696
    %v4093 = vunpack.c.h.b16 %v3696
    %v4094 = vunpack.c.l.b16 %v3697
    %v4095 = vunpack.c.h.b16 %v3697
    %v4096 = vunpack.c.l.b16 %v3698
    %v4097 = vunpack.c.h.b16 %v3698
    %v4098 = vunpack.c.l.b16 %v3699
    %v4099 = vunpack.c.h.b16 %v3699
    %v4100 = vunpack.c.l.b16 %v3700
    %v4101 = vunpack.c.h.b16 %v3700
    %v4102 = vunpack.c.l.b16 %v3701
    %v4103 = vunpack.c.h.b16 %v3701
    %v4104 = vunpack.c.l.b16 %v3702
    %v4105 = vunpack.c.h.b16 %v3702
    %v4106 = vunpack.c.l.b16 %v3703
    %v4107 = vunpack.c.h.b16 %v3703
    %v4108 = vunpack.c.l.b16 %v3704
    %v4109 = vunpack.c.h.b16 %v3704
    %v4110 = vunpack.c.l.b16 %v3705
    %v4111 = vunpack.c.h.b16 %v3705
    %v4112 = vpack.c.b16 %v3860, %v3856
    %v4113 = vpack.c.b16 %v3861, %v3857
    %v4114 = vpack.c.b16 %v3862, %v3858
    %v4115 = vpack.c.b16 %v3863, %v3859
    %v4116 = vpack.c.b16 %v3868, %v3864
    %v4117 = vpack.c.b16 %v3869, %v3865
    %v4118 = vpack.c.b16 %v3870, %v3866
    %v4119 = vpack.c.b16 %v3871, %v3867
    %v4120 = vpack.c.b16 %v3876, %v3872
    %v4121 = vpack.c.b16 %v3877, %v3873
    %v4122 = vpack.c.b16 %v3878, %v3874
    %v4123 = vpack.c.b16 %v3879, %v3875
    %v4124 = vpack.c.b16 %v3884, %v3880
    %v4125 = vpack.c.b16 %v3885, %v3881
    %v4126 = vpack.c.b16 %v3886, %v3882
    %v4127 = vpack.c.b16 %v3887, %v3883
    %v4128 = vpack.c.b16 %v3892, %v3888
    %v4129 = vpack.c.b16 %v3893, %v3889
    %v4130 = vpack.c.b16 %v3894, %v3890
    %v4131 = vpack.c.b16 %v3895, %v3891
    %v4132 = vpack.c.b16 %v3900, %v3896
    %v4133 = vpack.c.b16 %v3901, %v3897
    %v4134 = vpack.c.b16 %v3902, %v3898
    %v4135 = vpack.c.b16 %v3903, %v3899
    %v4136 = vpack.c.b16 %v3908, %v3904
    %v4137 = vpack.c.b16 %v3909, %v3905
    %v4138 = vpack.c.b16 %v3910, %v3906
    %v4139 = vpack.c.b16 %v3911, %v3907
    %v4140 = vpack.c.b16 %v3916, %v3912
    %v4141 = vpack.c.b16 %v3917, %v3913
    %v4142 = vpack.c.b16 %v3918, %v3914
    %v4143 = vpack.c.b16 %v3919, %v3915
    %v4144 = vpack.c.b16 %v3924, %v3920
    %v4145 = vpack.c.b16 %v3925, %v3921
    %v4146 = vpack.c.b16 %v3926, %v3922
    %v4147 = vpack.c.b16 %v3927, %v3923
    %v4148 = vpack.c.b16 %v3932, %v3928
    %v4149 = vpack.c.b16 %v3933, %v3929
    %v4150 = vpack.c.b16 %v3934, %v3930
    %v4151 = vpack.c.b16 %v3935, %v3931
    %v4152 = vpack.c.b16 %v3940, %v3936
    %v4153 = vpack.c.b16 %v3941, %v3937
    %v4154 = vpack.c.b16 %v3942, %v3938
    %v4155 = vpack.c.b16 %v3943, %v3939
    %v4156 = vpack.c.b16 %v3948, %v3944
    %v4157 = vpack.c.b16 %v3949, %v3945
    %v4158 = vpack.c.b16 %v3950, %v3946
    %v4159 = vpack.c.b16 %v3951, %v3947
    %v4160 = vpack.c.b16 %v3956, %v3952
    %v4161 = vpack.c.b16 %v3957, %v3953
    %v4162 = vpack.c.b16 %v3958, %v3954
    %v4163 = vpack.c.b16 %v3959, %v3955
    %v4164 = vpack.c.b16 %v3964, %v3960
    %v4165 = vpack.c.b16 %v3965, %v3961
    %v4166 = vpack.c.b16 %v3966, %v3962
    %v4167 = vpack.c.b16 %v3967, %v3963
    %v4168 = vpack.c.b16 %v3972, %v3968
    %v4169 = vpack.c.b16 %v3973, %v3969
    %v4170 = vpack.c.b16 %v3974, %v3970
    %v4171 = vpack.c.b16 %v3975, %v3971
    %v4172 = vpack.c.b16 %v3980, %v3976
    %v4173 = vpack.c.b16 %v3981, %v3977
    %v4174 = vpack.c.b16 %v3982, %v3978
    %v4175 = vpack.c.b16 %v3983, %v3979
    %v4176 = vpack.c.b16 %v3988, %v3984
    %v4177 = vpack.c.b16 %v3989, %v3985
    %v4178 = vpack.c.b16 %v3990, %v3986
    %v4179 = vpack.c.b16 %v3991, %v3987
    %v4180 = vpack.c.b16 %v3996, %v3992
    %v4181 = vpack.c.b16 %v3997, %v3993
    %v4182 = vpack.c.b16 %v3998, %v3994
    %v4183 = vpack.c.b16 %v3999, %v3995
    %v4184 = vpack.c.b16 %v4004, %v4000
    %v4185 = vpack.c.b16 %v4005, %v4001
    %v4186 = vpack.c.b16 %v4006, %v4002
    %v4187 = vpack.c.b16 %v4007, %v4003
    %v4188 = vpack.c.b16 %v4012, %v4008
    %v4189 = vpack.c.b16 %v4013, %v4009
    %v4190 = vpack.c.b16 %v4014, %v4010
    %v4191 = vpack.c.b16 %v4015, %v4011
    %v4192 = vpack.c.b16 %v4020, %v4016
    %v4193 = vpack.c.b16 %v4021, %v4017
    %v4194 = vpack.c.b16 %v4022, %v4018
    %v4195 = vpack.c.b16 %v4023, %v4019
    %v4196 = vpack.c.b16 %v4028, %v4024
    %v4197 = vpack.c.b16 %v4029, %v4025
    %v4198 = vpack.c.b16 %v4030, %v4026
    %v4199 = vpack.c.b16 %v4031, %v4027
    %v4200 = vpack.c.b16 %v4036, %v4032
    %v4201 = vpack.c.b16 %v4037, %v4033
    %v4202 = vpack.c.b16 %v4038, %v4034
    %v4203 = vpack.c.b16 %v4039, %v4035
    %v4204 = vpack.c.b16 %v4044, %v4040
    %v4205 = vpack.c.b16 %v4045, %v4041
    %v4206 = vpack.c.b16 %v4046, %v4042
    %v4207 = vpack.c.b16 %v4047, %v4043
    %v4208 = vpack.c.b16 %v4052, %v4048
    %v4209 = vpack.c.b16 %v4053, %v4049
    %v4210 = vpack.c.b16 %v4054, %v4050
    %v4211 = vpack.c.b16 %v4055, %v4051
    %v4212 = vpack.c.b16 %v4060, %v4056
    %v4213 = vpack.c.b16 %v4061, %v4057
    %v4214 = vpack.c.b16 %v4062, %v4058
    %v4215 = vpack.c.b16 %v4063, %v4059
    %v4216 = vpack.c.b16 %v4068, %v4064
    %v4217 = vpack.c.b16 %v4069, %v4065
    %v4218 = vpack.c.b16 %v4070, %v4066
    %v4219 = vpack.c.b16 %v4071, %v4067
    %v4220 = vpack.c.b16 %v4076, %v4072
    %v4221 = vpack.c.b16 %v4077, %v4073
    %v4222 = vpack.c.b16 %v4078, %v4074
    %v4223 = vpack.c.b16 %v4079, %v4075
    %v4224 = vpack.c.b16 %v4084, %v4080
    %v4225 = vpack.c.b16 %v4085, %v4081
    %v4226 = vpack.c.b16 %v4086, %v4082
    %v4227 = vpack.c.b16 %v4087, %v4083
    %v4228 = vpack.c.b16 %v4092, %v4088
    %v4229 = vpack.c.b16 %v4093, %v4089
    %v4230 = vpack.c.b16 %v4094, %v4090
    %v4231 = vpack.c.b16 %v4095, %v4091
    %v4232 = vpack.c.b16 %v4100, %v4096
    %v4233 = vpack.c.b16 %v4101, %v4097
    %v4234 = vpack.c.b16 %v4102, %v4098
    %v4235 = vpack.c.b16 %v4103, %v4099
    %v4236 = vpack.c.b16 %v4108, %v4104
    %v4237 = vpack.c.b16 %v4109, %v4105
    %v4238 = vpack.c.b16 %v4110, %v4106
    %v4239 = vpack.c.b16 %v4111, %v4107
    %4368 = vmatprep.subr.bf16.mxu0 %v4113
    %4369 = vmatpush1.bf16.msra.mxu0 %v4112
    %4370 = vmatprep.subr.bf16.mxu0 %v4117
    %4371 = vmatpush1.bf16.msra.mxu0 %v4116
    %4372 = vmatprep.subr.bf16.mxu0 %v4121
    %4373 = vmatpush1.bf16.msra.mxu0 %v4120
    %4374 = vmatprep.subr.bf16.mxu0 %v4125
    %4375 = vmatpush1.bf16.msra.mxu0 %v4124
    %4376 = vmatprep.subr.bf16.mxu0 %v4129
    %4377 = vmatpush1.bf16.msra.mxu0 %v4128
    %4378 = vmatprep.subr.bf16.mxu0 %v4133
    %4379 = vmatpush1.bf16.msra.mxu0 %v4132
    %4380 = vmatprep.subr.bf16.mxu0 %v4137
    %4381 = vmatpush1.bf16.msra.mxu0 %v4136
    %4382 = vmatprep.subr.bf16.mxu0 %v4141
    %4383 = vmatpush1.bf16.msra.mxu0 %v4140
    %4384 = vmatprep.subr.bf16.mxu0 %v4145
    %4385 = vmatpush1.bf16.msra.mxu0 %v4144
    %4386 = vmatprep.subr.bf16.mxu0 %v4149
    %4387 = vmatpush1.bf16.msra.mxu0 %v4148
    %4388 = vmatprep.subr.bf16.mxu0 %v4153
    %4389 = vmatpush1.bf16.msra.mxu0 %v4152
    %4390 = vmatprep.subr.bf16.mxu0 %v4157
    %4391 = vmatpush1.bf16.msra.mxu0 %v4156
    %4392 = vmatprep.subr.bf16.mxu0 %v4161
    %4393 = vmatpush1.bf16.msra.mxu0 %v4160
    %4394 = vmatprep.subr.bf16.mxu0 %v4165
    %4395 = vmatpush1.bf16.msra.mxu0 %v4164
    %4396 = vmatprep.subr.bf16.mxu0 %v4169
    %4397 = vmatpush1.bf16.msra.mxu0 %v4168
    %4398 = vmatprep.subr.bf16.mxu0 %v4173
    %4399 = vmatpush1.bf16.msra.mxu0 %v4172
    %4400 = vmatprep.mubr.bf16.mxu0 %v3575
    %4401 = vmatmul.mubr.bf16.gmra.mrb[0].mxu0 %v3574
    %v4402 = vpop.f32.mrb[0].mxu0
    %v4403 = vadd.f32 %v3711, %v4402
    %v4404 = vpop.f32.mrb[0].mxu0
    %v4405 = vadd.f32 %v3715, %v4404
    %v4406 = vpop.f32.mrb[0].mxu0
    %v4407 = vpop.f32.mrb[0].mxu0
    %4408 = vdwg.mxu0
    %4409 = vmatprep.subr.bf16.mxu0 %v4177
    %4410 = vmatpush1.bf16.msra.mxu0 %v4176
    %4411 = vmatprep.subr.bf16.mxu0 %v4181
    %4412 = vmatpush1.bf16.msra.mxu0 %v4180
    %4413 = vmatprep.subr.bf16.mxu0 %v4185
    %4414 = vmatpush1.bf16.msra.mxu0 %v4184
    %4415 = vmatprep.subr.bf16.mxu0 %v4189
    %4416 = vmatpush1.bf16.msra.mxu0 %v4188
    %4417 = vmatprep.subr.bf16.mxu0 %v4193
    %4418 = vmatpush1.bf16.msra.mxu0 %v4192
    %4419 = vmatprep.subr.bf16.mxu0 %v4197
    %4420 = vmatpush1.bf16.msra.mxu0 %v4196
    %4421 = vmatprep.subr.bf16.mxu0 %v4201
    %4422 = vmatpush1.bf16.msra.mxu0 %v4200
    %4423 = vmatprep.subr.bf16.mxu0 %v4205
    %4424 = vmatpush1.bf16.msra.mxu0 %v4204
    %4425 = vmatprep.subr.bf16.mxu0 %v4209
    %4426 = vmatpush1.bf16.msra.mxu0 %v4208
    %4427 = vmatprep.subr.bf16.mxu0 %v4213
    %4428 = vmatpush1.bf16.msra.mxu0 %v4212
    %4429 = vmatprep.subr.bf16.mxu0 %v4217
    %4430 = vmatpush1.bf16.msra.mxu0 %v4216
    %4431 = vmatprep.subr.bf16.mxu0 %v4221
    %4432 = vmatpush1.bf16.msra.mxu0 %v4220
    %4433 = vmatprep.subr.bf16.mxu0 %v4225
    %4434 = vmatpush1.bf16.msra.mxu0 %v4224
    %4435 = vmatprep.subr.bf16.mxu0 %v4229
    %4436 = vmatpush1.bf16.msra.mxu0 %v4228
    %4437 = vmatprep.subr.bf16.mxu0 %v4233
    %4438 = vmatpush1.bf16.msra.mxu0 %v4232
    %4439 = vmatprep.subr.bf16.mxu0 %v4237
    %4440 = vmatpush1.bf16.msra.mxu0 %v4236
    %4441 = vmatprep.mubr.bf16.mxu0 %v3577
    %4442 = vmatmul.mubr.bf16.gmra.mrb[0].mxu0 %v3576
    %v4443 = vpop.f32.mrb[0].mxu0
    %v4444 = vadd.f32 %v4403, %v4443
    %v4445 = vpop.f32.mrb[0].mxu0
    %v4446 = vadd.f32 %v4405, %v4445
    %v4447 = vpop.f32.mrb[0].mxu0
    %v4448 = vpop.f32.mrb[0].mxu0
    %4449 = vdwg.mxu0
    %4450 = vmatprep.subr.bf16.mxu0 %v4115
    %4451 = vmatpush1.bf16.msra.mxu0 %v4114
    %4452 = vmatprep.subr.bf16.mxu0 %v4119
    %4453 = vmatpush1.bf16.msra.mxu0 %v4118
    %4454 = vmatprep.subr.bf16.mxu0 %v4123
    %4455 = vmatpush1.bf16.msra.mxu0 %v4122
    %4456 = vmatprep.subr.bf16.mxu0 %v4127
    %4457 = vmatpush1.bf16.msra.mxu0 %v4126
    %4458 = vmatprep.subr.bf16.mxu0 %v4131
    %4459 = vmatpush1.bf16.msra.mxu0 %v4130
    %4460 = vmatprep.subr.bf16.mxu0 %v4135
    %4461 = vmatpush1.bf16.msra.mxu0 %v4134
    %4462 = vmatprep.subr.bf16.mxu0 %v4139
    %4463 = vmatpush1.bf16.msra.mxu0 %v4138
    %4464 = vmatprep.subr.bf16.mxu0 %v4143
    %4465 = vmatpush1.bf16.msra.mxu0 %v4142
    %4466 = vmatprep.subr.bf16.mxu0 %v4147
    %4467 = vmatpush1.bf16.msra.mxu0 %v4146
    %4468 = vmatprep.subr.bf16.mxu0 %v4151
    %4469 = vmatpush1.bf16.msra.mxu0 %v4150
    %4470 = vmatprep.subr.bf16.mxu0 %v4155
    %4471 = vmatpush1.bf16.msra.mxu0 %v4154
    %4472 = vmatprep.subr.bf16.mxu0 %v4159
    %4473 = vmatpush1.bf16.msra.mxu0 %v4158
    %4474 = vmatprep.subr.bf16.mxu0 %v4163
    %4475 = vmatpush1.bf16.msra.mxu0 %v4162
    %4476 = vmatprep.subr.bf16.mxu0 %v4167
    %4477 = vmatpush1.bf16.msra.mxu0 %v4166
    %4478 = vmatprep.subr.bf16.mxu0 %v4171
    %4479 = vmatpush1.bf16.msra.mxu0 %v4170
    %4480 = vmatprep.subr.bf16.mxu0 %v4175
    %4481 = vmatpush1.bf16.msra.mxu0 %v4174
    %4482 = vmatprep.mubr.bf16.mxu0 %v3575
    %4483 = vmatmul.mubr.bf16.gmra.mrb[0].mxu0 %v3574
    %v4484 = vpop.f32.mrb[0].mxu0
    %v4485 = vadd.f32 %v3719, %v4484
    %v4486 = vpop.f32.mrb[0].mxu0
    %v4487 = vadd.f32 %v3723, %v4486
    %v4488 = vpop.f32.mrb[0].mxu0
    %v4489 = vpop.f32.mrb[0].mxu0
    %4490 = vdwg.mxu0
    %4491 = vmatprep.subr.bf16.mxu0 %v4179
    %4492 = vmatpush1.bf16.msra.mxu0 %v4178
    %4493 = vmatprep.subr.bf16.mxu0 %v4183
    %4494 = vmatpush1.bf16.msra.mxu0 %v4182
    %4495 = vmatprep.subr.bf16.mxu0 %v4187
    %4496 = vmatpush1.bf16.msra.mxu0 %v4186
    %4497 = vmatprep.subr.bf16.mxu0 %v4191
    %4498 = vmatpush1.bf16.msra.mxu0 %v4190
    %4499 = vmatprep.subr.bf16.mxu0 %v4195
    %4500 = vmatpush1.bf16.msra.mxu0 %v4194
    %4501 = vmatprep.subr.bf16.mxu0 %v4199
    %4502 = vmatpush1.bf16.msra.mxu0 %v4198
    %4503 = vmatprep.subr.bf16.mxu0 %v4203
    %4504 = vmatpush1.bf16.msra.mxu0 %v4202
    %4505 = vmatprep.subr.bf16.mxu0 %v4207
    %4506 = vmatpush1.bf16.msra.mxu0 %v4206
    %4507 = vmatprep.subr.bf16.mxu0 %v4211
    %4508 = vmatpush1.bf16.msra.mxu0 %v4210
    %4509 = vmatprep.subr.bf16.mxu0 %v4215
    %4510 = vmatpush1.bf16.msra.mxu0 %v4214
    %4511 = vmatprep.subr.bf16.mxu0 %v4219
    %4512 = vmatpush1.bf16.msra.mxu0 %v4218
    %4513 = vmatprep.subr.bf16.mxu0 %v4223
    %4514 = vmatpush1.bf16.msra.mxu0 %v4222
    %4515 = vmatprep.subr.bf16.mxu0 %v4227
    %4516 = vmatpush1.bf16.msra.mxu0 %v4226
    %4517 = vmatprep.subr.bf16.mxu0 %v4231
    %4518 = vmatpush1.bf16.msra.mxu0 %v4230
    %4519 = vmatprep.subr.bf16.mxu0 %v4235
    %4520 = vmatpush1.bf16.msra.mxu0 %v4234
    %4521 = vmatprep.subr.bf16.mxu0 %v4239
    %4522 = vmatpush1.bf16.msra.mxu0 %v4238
    %4523 = vmatprep.mubr.bf16.mxu0 %v3577
    %4524 = vmatmul.mubr.bf16.gmra.mrb[0].mxu0 %v3576
    %v4525 = vpop.f32.mrb[0].mxu0
    %v4526 = vadd.f32 %v4485, %v4525
    %v4527 = vpop.f32.mrb[0].mxu0
    %v4528 = vadd.f32 %v4487, %v4527
    %v4529 = vpop.f32.mrb[0].mxu0
    %v4530 = vpop.f32.mrb[0].mxu0
    %4531 = vdwg.mxu0
    %v4532 = vtanh.pop %v4444
    %v4533 = vtanh.pop %v4446
    %v4534 = vtanh.pop %v4526
    %v4535 = vtanh.pop %v4528
    %v4536 = vpack.c.bf16 %v4532, %v4532
    %v4537 = vpack.c.bf16 %v4533, %v4533
    %v4538 = vpack.c.bf16 %v4534, %v4534
    %v4539 = vpack.c.bf16 %v4535, %v4535
    %v4540 = vld [vmem:[#allocation10] sm:$0xf]
    %v4541 = vld [vmem:[#allocation10 + $0x4] sm:$0xf]
    %v4542 = vld [vmem:[#allocation10 + $0x8] sm:$0xf]
    %v4543 = vld [vmem:[#allocation10 + $0xc] sm:$0xf]
    %v4544 = vld [vmem:[#allocation10 + $0x10] sm:$0xf]
    %v4545 = vld [vmem:[#allocation10 + $0x14] sm:$0xf]
    %v4546 = vld [vmem:[#allocation10 + $0x18] sm:$0xf]
    %v4547 = vld [vmem:[#allocation10 + $0x1c] sm:$0xf]
    %v4548 = vld [vmem:[#allocation10 + $0x20] sm:$0xf]
    %v4549 = vld [vmem:[#allocation10 + $0x24] sm:$0xf]
    %v4550 = vld [vmem:[#allocation10 + $0x28] sm:$0xf]
    %v4551 = vld [vmem:[#allocation10 + $0x2c] sm:$0xf]
    %v4552 = vld [vmem:[#allocation10 + $0x30] sm:$0xf]
    %v4553 = vld [vmem:[#allocation10 + $0x34] sm:$0xf]
    %v4554 = vld [vmem:[#allocation10 + $0x38] sm:$0xf]
    %v4555 = vld [vmem:[#allocation10 + $0x3c] sm:$0xf]
    %v4556 = vld [vmem:[#allocation10 + $0x40] sm:$0xf]
    %v4557 = vld [vmem:[#allocation10 + $0x44] sm:$0xf]
    %v4558 = vld [vmem:[#allocation10 + $0x48] sm:$0xf]
    %v4559 = vld [vmem:[#allocation10 + $0x4c] sm:$0xf]
    %v4560 = vld [vmem:[#allocation10 + $0x50] sm:$0xf]
    %v4561 = vld [vmem:[#allocation10 + $0x54] sm:$0xf]
    %v4562 = vld [vmem:[#allocation10 + $0x58] sm:$0xf]
    %v4563 = vld [vmem:[#allocation10 + $0x5c] sm:$0xf]
    %v4564 = vld [vmem:[#allocation10 + $0x60] sm:$0xf]
    %v4565 = vld [vmem:[#allocation10 + $0x64] sm:$0xf]
    %v4566 = vld [vmem:[#allocation10 + $0x68] sm:$0xf]
    %v4567 = vld [vmem:[#allocation10 + $0x6c] sm:$0xf]
    %v4568 = vld [vmem:[#allocation10 + $0x70] sm:$0xf]
    %v4569 = vld [vmem:[#allocation10 + $0x74] sm:$0xf]
    %v4570 = vld [vmem:[#allocation10 + $0x78] sm:$0xf]
    %v4571 = vld [vmem:[#allocation10 + $0x7c] sm:$0xf]
    %v4572 = vld [vmem:[#allocation10 + $0x80] sm:$0xf]
    %v4573 = vld [vmem:[#allocation10 + $0x84] sm:$0xf]
    %v4574 = vld [vmem:[#allocation10 + $0x88] sm:$0xf]
    %v4575 = vld [vmem:[#allocation10 + $0x8c] sm:$0xf]
    %v4576 = vld [vmem:[#allocation10 + $0x90] sm:$0xf]
    %v4577 = vld [vmem:[#allocation10 + $0x94] sm:$0xf]
    %v4578 = vld [vmem:[#allocation10 + $0x98] sm:$0xf]
    %v4579 = vld [vmem:[#allocation10 + $0x9c] sm:$0xf]
    %v4580 = vld [vmem:[#allocation10 + $0xa0] sm:$0xf]
    %v4581 = vld [vmem:[#allocation10 + $0xa4] sm:$0xf]
    %v4582 = vld [vmem:[#allocation10 + $0xa8] sm:$0xf]
    %v4583 = vld [vmem:[#allocation10 + $0xac] sm:$0xf]
    %v4584 = vld [vmem:[#allocation10 + $0xb0] sm:$0xf]
    %v4585 = vld [vmem:[#allocation10 + $0xb4] sm:$0xf]
    %v4586 = vld [vmem:[#allocation10 + $0xb8] sm:$0xf]
    %v4587 = vld [vmem:[#allocation10 + $0xbc] sm:$0xf]
    %v4588 = vld [vmem:[#allocation10 + $0xc0] sm:$0xf]
    %v4589 = vld [vmem:[#allocation10 + $0xc4] sm:$0xf]
    %v4590 = vld [vmem:[#allocation10 + $0xc8] sm:$0xf]
    %v4591 = vld [vmem:[#allocation10 + $0xcc] sm:$0xf]
    %v4592 = vld [vmem:[#allocation10 + $0xd0] sm:$0xf]
    %v4593 = vld [vmem:[#allocation10 + $0xd4] sm:$0xf]
    %v4594 = vld [vmem:[#allocation10 + $0xd8] sm:$0xf]
    %v4595 = vld [vmem:[#allocation10 + $0xdc] sm:$0xf]
    %v4596 = vld [vmem:[#allocation10 + $0xe0] sm:$0xf]
    %v4597 = vld [vmem:[#allocation10 + $0xe4] sm:$0xf]
    %v4598 = vld [vmem:[#allocation10 + $0xe8] sm:$0xf]
    %v4599 = vld [vmem:[#allocation10 + $0xec] sm:$0xf]
    %v4600 = vld [vmem:[#allocation10 + $0xf0] sm:$0xf]
    %v4601 = vld [vmem:[#allocation10 + $0xf4] sm:$0xf]
    %v4602 = vld [vmem:[#allocation10 + $0xf8] sm:$0xf]
    %v4603 = vld [vmem:[#allocation10 + $0xfc] sm:$0xf]
    %v4604 = vld [vmem:[%s11] sm:$0x1]
    %v4606 = vlaneseq
    %v4607 = vshrl.u32 %v4606, 7
    %v4608 = vsub.s32 0, %v4607
    %v4609 = vrot.slane %v4604, %v4608
    %v4675 = vunpack.c.l.b16 %v4540
    %v4676 = vunpack.c.l.b16 %v4541
    %v4677 = vunpack.c.l.b16 %v4542
    %v4678 = vunpack.c.l.b16 %v4543
    %v4679 = vunpack.c.l.b16 %v4544
    %v4680 = vunpack.c.l.b16 %v4545
    %v4681 = vunpack.c.l.b16 %v4546
    %v4682 = vunpack.c.l.b16 %v4547
    %v4683 = vunpack.c.l.b16 %v4548
    %v4684 = vunpack.c.l.b16 %v4549
    %v4685 = vunpack.c.l.b16 %v4550
    %v4686 = vunpack.c.l.b16 %v4551
    %v4687 = vunpack.c.l.b16 %v4552
    %v4688 = vunpack.c.l.b16 %v4553
    %v4689 = vunpack.c.l.b16 %v4554
    %v4690 = vunpack.c.l.b16 %v4555
    %v4691 = vunpack.c.l.b16 %v4556
    %v4692 = vunpack.c.l.b16 %v4557
    %v4693 = vunpack.c.l.b16 %v4558
    %v4694 = vunpack.c.l.b16 %v4559
    %v4695 = vunpack.c.l.b16 %v4560
    %v4696 = vunpack.c.l.b16 %v4561
    %v4697 = vunpack.c.l.b16 %v4562
    %v4698 = vunpack.c.l.b16 %v4563
    %v4699 = vunpack.c.l.b16 %v4564
    %v4700 = vunpack.c.l.b16 %v4565
    %v4701 = vunpack.c.l.b16 %v4566
    %v4702 = vunpack.c.l.b16 %v4567
    %v4703 = vunpack.c.l.b16 %v4568
    %v4704 = vunpack.c.l.b16 %v4569
    %v4705 = vunpack.c.l.b16 %v4570
    %v4706 = vunpack.c.l.b16 %v4571
    %v4707 = vunpack.c.l.b16 %v4572
    %v4708 = vunpack.c.l.b16 %v4573
    %v4709 = vunpack.c.l.b16 %v4574
    %v4710 = vunpack.c.l.b16 %v4575
    %v4711 = vunpack.c.l.b16 %v4576
    %v4712 = vunpack.c.l.b16 %v4577
    %v4713 = vunpack.c.l.b16 %v4578
    %v4714 = vunpack.c.l.b16 %v4579
    %v4715 = vunpack.c.l.b16 %v4580
    %v4716 = vunpack.c.l.b16 %v4581
    %v4717 = vunpack.c.l.b16 %v4582
    %v4718 = vunpack.c.l.b16 %v4583
    %v4719 = vunpack.c.l.b16 %v4584
    %v4720 = vunpack.c.l.b16 %v4585
    %v4721 = vunpack.c.l.b16 %v4586
    %v4722 = vunpack.c.l.b16 %v4587
    %v4723 = vunpack.c.l.b16 %v4588
    %v4724 = vunpack.c.l.b16 %v4589
    %v4725 = vunpack.c.l.b16 %v4590
    %v4726 = vunpack.c.l.b16 %v4591
    %v4727 = vunpack.c.l.b16 %v4592
    %v4728 = vunpack.c.l.b16 %v4593
    %v4729 = vunpack.c.l.b16 %v4594
    %v4730 = vunpack.c.l.b16 %v4595
    %v4731 = vunpack.c.l.b16 %v4596
    %v4732 = vunpack.c.l.b16 %v4597
    %v4733 = vunpack.c.l.b16 %v4598
    %v4734 = vunpack.c.l.b16 %v4599
    %v4735 = vunpack.c.l.b16 %v4600
    %v4736 = vunpack.c.l.b16 %v4601
    %v4737 = vunpack.c.l.b16 %v4602
    %v4738 = vunpack.c.l.b16 %v4603
    %v4739 = vpack.c.b16 %v4676, %v4675
    %v4740 = vpack.c.b16 %v4678, %v4677
    %v4741 = vpack.c.b16 %v4680, %v4679
    %v4742 = vpack.c.b16 %v4682, %v4681
    %v4743 = vpack.c.b16 %v4684, %v4683
    %v4744 = vpack.c.b16 %v4686, %v4685
    %v4745 = vpack.c.b16 %v4688, %v4687
    %v4746 = vpack.c.b16 %v4690, %v4689
    %v4747 = vpack.c.b16 %v4692, %v4691
    %v4748 = vpack.c.b16 %v4694, %v4693
    %v4749 = vpack.c.b16 %v4696, %v4695
    %v4750 = vpack.c.b16 %v4698, %v4697
    %v4751 = vpack.c.b16 %v4700, %v4699
    %v4752 = vpack.c.b16 %v4702, %v4701
    %v4753 = vpack.c.b16 %v4704, %v4703
    %v4754 = vpack.c.b16 %v4706, %v4705
    %v4755 = vpack.c.b16 %v4708, %v4707
    %v4756 = vpack.c.b16 %v4710, %v4709
    %v4757 = vpack.c.b16 %v4712, %v4711
    %v4758 = vpack.c.b16 %v4714, %v4713
    %v4759 = vpack.c.b16 %v4716, %v4715
    %v4760 = vpack.c.b16 %v4718, %v4717
    %v4761 = vpack.c.b16 %v4720, %v4719
    %v4762 = vpack.c.b16 %v4722, %v4721
    %v4763 = vpack.c.b16 %v4724, %v4723
    %v4764 = vpack.c.b16 %v4726, %v4725
    %v4765 = vpack.c.b16 %v4728, %v4727
    %v4766 = vpack.c.b16 %v4730, %v4729
    %v4767 = vpack.c.b16 %v4732, %v4731
    %v4768 = vpack.c.b16 %v4734, %v4733
    %v4769 = vpack.c.b16 %v4736, %v4735
    %v4770 = vpack.c.b16 %v4738, %v4737
    %4803 = vmatprep.subr.bf16.mxu0 0
    %4804 = vmatpush1.bf16.msra.mxu0 %v4739
    %4805 = vmatprep.subr.bf16.mxu0 0
    %4806 = vmatpush1.bf16.msra.mxu0 %v4740
    %4807 = vmatprep.subr.bf16.mxu0 0
    %4808 = vmatpush1.bf16.msra.mxu0 %v4741
    %4809 = vmatprep.subr.bf16.mxu0 0
    %4810 = vmatpush1.bf16.msra.mxu0 %v4742
    %4811 = vmatprep.subr.bf16.mxu0 0
    %4812 = vmatpush1.bf16.msra.mxu0 %v4743
    %4813 = vmatprep.subr.bf16.mxu0 0
    %4814 = vmatpush1.bf16.msra.mxu0 %v4744
    %4815 = vmatprep.subr.bf16.mxu0 0
    %4816 = vmatpush1.bf16.msra.mxu0 %v4745
    %4817 = vmatprep.subr.bf16.mxu0 0
    %4818 = vmatpush1.bf16.msra.mxu0 %v4746
    %4819 = vmatprep.subr.bf16.mxu0 0
    %4820 = vmatpush1.bf16.msra.mxu0 %v4747
    %4821 = vmatprep.subr.bf16.mxu0 0
    %4822 = vmatpush1.bf16.msra.mxu0 %v4748
    %4823 = vmatprep.subr.bf16.mxu0 0
    %4824 = vmatpush1.bf16.msra.mxu0 %v4749
    %4825 = vmatprep.subr.bf16.mxu0 0
    %4826 = vmatpush1.bf16.msra.mxu0 %v4750
    %4827 = vmatprep.subr.bf16.mxu0 0
    %4828 = vmatpush1.bf16.msra.mxu0 %v4751
    %4829 = vmatprep.subr.bf16.mxu0 0
    %4830 = vmatpush1.bf16.msra.mxu0 %v4752
    %4831 = vmatprep.subr.bf16.mxu0 0
    %4832 = vmatpush1.bf16.msra.mxu0 %v4753
    %4833 = vmatprep.subr.bf16.mxu0 0
    %4834 = vmatpush1.bf16.msra.mxu0 %v4754
    %4835 = vmatprep.mubr.bf16.mxu0 %v4537
    %4836 = vmatmul.mubr.bf16.gmra.mrb[0].mxu0 %v4536
    %v4837 = vpop.f32.mrb[0].mxu0
    %v4838 = vadd.f32 %v4609, %v4837
    %v4839 = vpop.f32.mrb[0].mxu0
    %v4840 = vpop.f32.mrb[0].mxu0
    %v4841 = vpop.f32.mrb[0].mxu0
    %4842 = vdwg.mxu0
    %4843 = vmatprep.subr.bf16.mxu0 0
    %4844 = vmatpush1.bf16.msra.mxu0 %v4755
    %4845 = vmatprep.subr.bf16.mxu0 0
    %4846 = vmatpush1.bf16.msra.mxu0 %v4756
    %4847 = vmatprep.subr.bf16.mxu0 0
    %4848 = vmatpush1.bf16.msra.mxu0 %v4757
    %4849 = vmatprep.subr.bf16.mxu0 0
    %4850 = vmatpush1.bf16.msra.mxu0 %v4758
    %4851 = vmatprep.subr.bf16.mxu0 0
    %4852 = vmatpush1.bf16.msra.mxu0 %v4759
    %4853 = vmatprep.subr.bf16.mxu0 0
    %4854 = vmatpush1.bf16.msra.mxu0 %v4760
    %4855 = vmatprep.subr.bf16.mxu0 0
    %4856 = vmatpush1.bf16.msra.mxu0 %v4761
    %4857 = vmatprep.subr.bf16.mxu0 0
    %4858 = vmatpush1.bf16.msra.mxu0 %v4762
    %4859 = vmatprep.subr.bf16.mxu0 0
    %4860 = vmatpush1.bf16.msra.mxu0 %v4763
    %4861 = vmatprep.subr.bf16.mxu0 0
    %4862 = vmatpush1.bf16.msra.mxu0 %v4764
    %4863 = vmatprep.subr.bf16.mxu0 0
    %4864 = vmatpush1.bf16.msra.mxu0 %v4765
    %4865 = vmatprep.subr.bf16.mxu0 0
    %4866 = vmatpush1.bf16.msra.mxu0 %v4766
    %4867 = vmatprep.subr.bf16.mxu0 0
    %4868 = vmatpush1.bf16.msra.mxu0 %v4767
    %4869 = vmatprep.subr.bf16.mxu0 0
    %4870 = vmatpush1.bf16.msra.mxu0 %v4768
    %4871 = vmatprep.subr.bf16.mxu0 0
    %4872 = vmatpush1.bf16.msra.mxu0 %v4769
    %4873 = vmatprep.subr.bf16.mxu0 0
    %4874 = vmatpush1.bf16.msra.mxu0 %v4770
    %4875 = vmatprep.mubr.bf16.mxu0 %v4539
    %4876 = vmatmul.mubr.bf16.gmra.mrb[0].mxu0 %v4538
    %v4877 = vpop.f32.mrb[0].mxu0
    %v4878 = vadd.f32 %v4838, %v4877
    %v4879 = vpop.f32.mrb[0].mxu0
    %v4880 = vpop.f32.mrb[0].mxu0
    %v4881 = vpop.f32.mrb[0].mxu0
    %4882 = vdwg.mxu0
    %4883 = vst [vmem:[%s12] sm:$0xff] %v4878
    // Predicated region
    $region74: #{gppo_branch_forward.1} parent=1 // pred_check
      _
    $region75: #{gppo_branch_forward.1} parent=1 // pred_check_branch
      %4885 = sbr.rel (0) target = $region77
    $region76: #{gppo_branch_forward.1} parent=1 // pred_region
      _
    $region77: #{gppo_branch_forward.1} parent=1 // pred_fallthru
      _
    // Predicated region
    $region78: #{gppo_branch_forward.1} parent=1 // pred_check
      _
    $region79: #{gppo_branch_forward.1} parent=1 // pred_check_branch
      %4887 = sbr.rel (0) target = $region81
    $region80: #{gppo_branch_forward.1} parent=1 // pred_region
      _
    $region81: #{gppo_branch_forward.1} parent=1 // pred_fallthru
      _
    %4888 = vsyncpa [#allocation3], 1
    %4889 = vsyncpa [#allocation5], 1
    %4890 = vsyncpa [#allocation8], 1
    %4891 = vsyncpa [#allocation11], 1

</llo_original>
